<compile_context>
chip_gen: v6e
topology: v6e:2x2x1
jax: 0.10.0
libtpu: 0.0.40
codegen_flags: <defaults>
</compile_context>

<pallas_src>
import functools

import jax
import jax.numpy as jnp
from jax import lax
from jax.experimental import pallas as pl
from jax.experimental.pallas import tpu as pltpu


RESIDUAL_BLOCKS = 8


# ---------------------------------------------------------------------------
# Helpers
# ---------------------------------------------------------------------------

def _vmem_limit_bytes():
    # ~3/4 of physical VMEM: 96 MiB on v5e/v6e (128 MiB), 48 MiB on v7x (64 MiB).
    try:
        cap = pltpu.get_tpu_info().vmem_capacity_bytes
    except Exception:
        cap = 64 << 20
    return int(min(cap * 3 // 4, 96 << 20))


def _apply_act(y, act):
    if act == 'relu':
        return jnp.maximum(y, 0.0)
    if act == 'tanh':
        return jnp.tanh(y)
    if act == 'tanh01':
        return (jnp.tanh(y) + 1.0) * 0.5
    return y


# ---------------------------------------------------------------------------
# Pallas conv kernel: in-kernel im2col over kh*kw taps + fused epilogue
# ---------------------------------------------------------------------------

def _make_conv_kernel(taps, OH, OW, has_scale, has_gate, has_skip, act):
    M = OH * OW

    def kernel(*refs):
        it = iter(refs)
        x_ref = next(it)                                  # (1, Hp, Wp, Cin) bf16
        w_ref = next(it)                                  # (T, Cin, Coutp)  bf16
        b_ref = next(it)                                  # (1, Coutp)       f32
        scale_ref = next(it) if has_scale else None       # (1, M, 1)        f32
        gate_ref = next(it) if has_gate else None         # (1, M, 1)        f32
        skip_ref = next(it) if has_skip else None         # (1, M, Coutp)
        o_ref = next(it)                                  # (1, M, Coutp)

        acc = None
        for t, (i, j) in enumerate(taps):
            # Shifted window straight from VMEM (im2col never hits HBM).
            win = x_ref[0, i:i + OH, j:j + OW, :]          # (OH, OW, Cin)
            a = win.reshape(M, win.shape[-1])              # lane dim unchanged,
            d = jnp.dot(a, w_ref[t],                       # OW % 8 == 0 -> no-op
                        preferred_element_type=jnp.float32)
            acc = d if acc is None else acc + d

        y = acc                                            # f32 (M, Coutp)
        if has_scale:
            y = y * scale_ref[0]
        y = y + b_ref[...]
        if has_gate:
            y = y * gate_ref[0]
        if has_skip:
            y = y + skip_ref[0].astype(jnp.float32)
        o_ref[0] = _apply_act(y, act).astype(o_ref.dtype)

    return kernel


@functools.lru_cache(maxsize=None)
def _build_conv_call(N, Hp, Wp, cin, kh, kw, coutp,
                     has_scale, has_gate, has_skip, act, out_dtype_name):
    OH, OW = Hp - kh + 1, Wp - kw + 1
    assert OW % 8 == 0, "output width must be a multiple of 8 (sublane tile)"
    M = OH * OW
    T = kh * kw
    taps = tuple((i, j) for i in range(kh) for j in range(kw))

    in_specs = [
        pl.BlockSpec((1, Hp, Wp, cin), lambda n: (n, 0, 0, 0)),
        pl.BlockSpec((T, cin, coutp), lambda n: (0, 0, 0)),
        pl.BlockSpec((1, coutp), lambda n: (0, 0)),
    ]
    if has_scale:
        in_specs.append(pl.BlockSpec((1, M, 1), lambda n: (n, 0, 0)))
    if has_gate:
        in_specs.append(pl.BlockSpec((1, M, 1), lambda n: (n, 0, 0)))
    if has_skip:
        in_specs.append(pl.BlockSpec((1, M, coutp), lambda n: (n, 0, 0)))

    kernel = _make_conv_kernel(taps, OH, OW, has_scale, has_gate, has_skip, act)
    return pl.pallas_call(
        kernel,
        out_shape=jax.ShapeDtypeStruct((N, M, coutp), jnp.dtype(out_dtype_name)),
        grid=(N,),
        in_specs=in_specs,
        out_specs=pl.BlockSpec((1, M, coutp), lambda n: (n, 0, 0)),
        compiler_params=pltpu.CompilerParams(
            dimension_semantics=("parallel",),       # batch -> both v7x cores
            vmem_limit_bytes=_vmem_limit_bytes()),
    )


def _conv_core(x_pad, w_taps, bias, kh, kw, act='none',
               scale=None, gate=None, skip=None, out_dtype=jnp.bfloat16):
    """Stride-1 'valid' conv with in-kernel im2col and fused epilogue:
         out = act(((x_pad (*) w) * scale + bias) * gate + skip)."""
    x_pad = x_pad.astype(jnp.bfloat16)
    N, Hp, Wp, cin = x_pad.shape
    T, cin_w, coutp = w_taps.shape
    assert T == kh * kw and cin_w == cin
    OH, OW = Hp - kh + 1, Wp - kw + 1
    M = OH * OW

    call = _build_conv_call(N, Hp, Wp, cin, kh, kw, coutp,
                            scale is not None, gate is not None,
                            skip is not None, act, jnp.dtype(out_dtype).name)
    args = [x_pad, w_taps, bias]
    if scale is not None:
        args.append(scale.astype(jnp.float32).reshape(N, M, 1))
    if gate is not None:
        args.append(gate.astype(jnp.float32).reshape(N, M, 1))
    if skip is not None:
        args.append(skip.reshape(N, M, coutp))
    return call(*args).reshape(N, OH, OW, coutp)


# ---------------------------------------------------------------------------
# Layer wrappers (only padding / space-to-depth / pixel-shuffle stay in XLA)
# ---------------------------------------------------------------------------

def conv_s1(x, w_taps, bias, kh, kw, pad, act='none', scale=None, gate=None,
            skip=None, out_dtype=jnp.bfloat16, cin_pad=0):
    xb = x.astype(jnp.bfloat16)
    if pad or cin_pad:
        xb = jnp.pad(xb, ((0, 0), (pad, pad), (pad, pad), (0, cin_pad)))
    return _conv_core(xb, w_taps, bias, kh, kw, act, scale, gate, skip, out_dtype)


def conv_s2_4x4(x, w_taps_s2d, bias, act='none', scale=None, gate=None,
                out_dtype=jnp.bfloat16):
    """PyTorch Conv2d(k=4, s=2, p=1) == stride-1 2x2 conv over the
    space-to-depth parity planes of the pad-1 input (no strided loads)."""
    N, H, W, C = x.shape
    xb = jnp.pad(x.astype(jnp.bfloat16), ((0, 0), (1, 1), (1, 1), (0, 0)))
    h2, w2 = (H + 2) // 2, (W + 2) // 2
    xs = xb.reshape(N, h2, 2, w2, 2, C).transpose(0, 1, 3, 2, 4, 5)
    xs = xs.reshape(N, h2, w2, 4 * C)
    return _conv_core(xs, w_taps_s2d, bias, 2, 2, act, scale, gate, None, out_dtype)


def conv_transpose_4x4_s2(x, w_taps_par, bias4, act='relu',
                          out_dtype=jnp.bfloat16):
    """PyTorch ConvTranspose2d(k=4, s=2, p=1): pad-1 3x3 stride-1 conv whose
    4*Cout channels are the (py,px) sub-pixel parities, then a pixel shuffle."""
    N, H, W, _ = x.shape
    cout = w_taps_par.shape[-1] // 4
    y = conv_s1(x, w_taps_par, bias4, 3, 3, pad=1, act=act, out_dtype=out_dtype)
    y = y.reshape(N, H, W, 2, 2, cout).transpose(0, 1, 3, 2, 4, 5)
    return y.reshape(N, 2 * H, 2 * W, cout)


def _mask_stats(mask, kh, kw, stride, pad):
    # Mask-sum "convolution" via reduce_window (pure VPU, no Pallas launch).
    msum = lax.reduce_window(mask, 0.0, lax.add,
                             window_dimensions=(1, kh, kw, 1),
                             window_strides=(1, stride, stride, 1),
                             padding=((0, 0), (pad, pad), (pad, pad), (0, 0)))
    gate = jnp.clip(msum, 0.0, 1.0)
    scale = float(kh * kw) / (msum + 1e-8)
    return scale, gate


def pconv_s1(x, mask, w_taps, bias, kh, kw, pad, act='none', skip=None,
             out_dtype=jnp.bfloat16, cin_pad=0):
    scale, gate = _mask_stats(mask, kh, kw, 1, pad)
    out = conv_s1(x * mask, w_taps, bias, kh, kw, pad, act=act, scale=scale,
                  gate=gate, skip=skip, out_dtype=out_dtype, cin_pad=cin_pad)
    return out, gate


def pconv_s2(x, mask, w_taps_s2d, bias, act='none', out_dtype=jnp.bfloat16):
    scale, gate = _mask_stats(mask, 4, 4, 2, 1)
    out = conv_s2_4x4(x * mask, w_taps_s2d, bias, act=act, scale=scale,
                      gate=gate, out_dtype=out_dtype)
    return out, gate


# ---------------------------------------------------------------------------
# Init-time weight re-layouts (never traced inside the forward)
# ---------------------------------------------------------------------------

def _to_taps(w_hwio, cin_pad=0, cout_pad=0):
    """(kh,kw,Cin,Cout) f32 -> kernel-ready (kh*kw, Cin+p, Cout+p) bf16."""
    kh, kw, cin, cout = w_hwio.shape
    w = jnp.pad(w_hwio, ((0, 0), (0, 0), (0, cin_pad), (0, cout_pad)))
    return w.reshape(kh * kw, cin + cin_pad, cout + cout_pad).astype(jnp.bfloat16)


def _s2d_weight(w_hwio):
    """(4,4,Cin,Cout) -> (4, 4*Cin, Cout) taps for the space-to-depth form
    (channel order (row-parity, col-parity, Cin), matching conv_s2_4x4)."""
    _, _, cin, cout = w_hwio.shape
    w = w_hwio.reshape(2, 2, 2, 2, cin, cout)       # [a, p, b, q, ci, co]
    w = w.transpose(0, 2, 1, 3, 4, 5)               # [a, b, p, q, ci, co]
    return w.reshape(4, 4 * cin, cout).astype(jnp.bfloat16)


def _deconv_parity_weight(w_t):
    """torch ConvTranspose2d weight (Cin,Cout,4,4), s=2, p=1 -> (9, Cin, 4*Cout)
    taps of a pad-1 3x3 conv whose outputs are the (py,px) sub-pixel parities."""
    cin, cout = w_t.shape[0], w_t.shape[1]
    wc = jnp.zeros((3, 3, cin, 2, 2, cout), jnp.float32)
    for ty in range(3):
        for py in range(2):
            ky = 3 + py - 2 * ty
            if not 0 <= ky <= 3:
                continue
            for tx in range(3):
                for px in range(2):
                    kx = 3 + px - 2 * tx
                    if not 0 <= kx <= 3:
                        continue
                    wc = wc.at[ty, tx, :, py, px, :].set(w_t[:, :, ky, kx])
    return wc.reshape(9, cin, 4 * cout).astype(jnp.bfloat16)


def init_params(key, residual_blocks=RESIDUAL_BLOCKS, gain=1e-3):
    """init_weights('normal', gain=0.001): weights ~ N(0, gain), biases = 0."""
    keys = iter(jax.random.split(key, 16 + 2 * residual_blocks))

    def nrm(shape):
        return gain * jax.random.normal(next(keys), shape, jnp.float32)

    def zb(c):
        return jnp.zeros((1, c), jnp.float32)

    p = {}
    p['enc1_w'] = _to_taps(nrm((7, 7, 3, 64)), cin_pad=5)       # Cin 3 -> 8
    p['enc1_b'] = zb(64)
    p['link1_w'] = _to_taps(nrm((3, 3, 64, 64)));    p['link1_b'] = zb(64)
    p['enc2_w'] = _s2d_weight(nrm((4, 4, 64, 128))); p['enc2_b'] = zb(128)
    p['link2_w'] = _to_taps(nrm((3, 3, 128, 128)));  p['link2_b'] = zb(128)
    p['enc3_w'] = _s2d_weight(nrm((4, 4, 128, 256))); p['enc3_b'] = zb(256)
    p['link3_w'] = _to_taps(nrm((3, 3, 256, 256)));  p['link3_b'] = zb(256)
    for i in range(residual_blocks):
        p[f'mid{i}_w1'] = _to_taps(nrm((3, 3, 256, 256))); p[f'mid{i}_b1'] = zb(256)
        p[f'mid{i}_w2'] = _to_taps(nrm((3, 3, 256, 256))); p[f'mid{i}_b2'] = zb(256)
    p['dec3_w'] = _deconv_parity_weight(nrm((256, 128, 4, 4))); p['dec3_b'] = zb(512)
    p['dec2_w'] = _deconv_parity_weight(nrm((128, 64, 4, 4)));  p['dec2_b'] = zb(256)
    p['dec1_w'] = _to_taps(nrm((7, 7, 64, 3)), cout_pad=5)      # Cout 3 -> 8
    p['dec1_b'] = zb(8)
    return p


# ---------------------------------------------------------------------------
# Generator forward
# ---------------------------------------------------------------------------

def generator_forward(params, x_nchw, mask_nchw, residual_blocks=RESIDUAL_BLOCKS):
    relu = jax.nn.relu
    x = jnp.transpose(x_nchw, (0, 2, 3, 1)).astype(jnp.float32)        # NHWC
    mask = jnp.transpose(mask_nchw, (0, 2, 3, 1)).astype(jnp.float32)  # (N,H,W,1)

    enc1, m1 = pconv_s1(x, mask, params['enc1_w'], params['enc1_b'],
                        7, 7, pad=3, cin_pad=5)
    enc2, m2 = pconv_s2(relu(enc1), m1, params['enc2_w'], params['enc2_b'])
    enc3, m3 = pconv_s2(relu(enc2), m2, params['enc3_w'], params['enc3_b'])

    h, m = relu(enc3), m3
    for i in range(residual_blocks):
        # conv1 -> tanh (fused);  conv2 -> tanh(x + .) (skip-add + tanh fused)
        r, m = pconv_s1(h, m, params[f'mid{i}_w1'], params[f'mid{i}_b1'],
                        3, 3, pad=1, act='tanh')
        h, m = pconv_s1(r, m, params[f'mid{i}_w2'], params[f'mid{i}_b2'],
                        3, 3, pad=1, act='tanh', skip=h)

    # link(enc) + h fused into the link conv; decoders fuse bias + relu.
    lnk, _ = pconv_s1(enc3, m3, params['link3_w'], params['link3_b'],
                      3, 3, pad=1, skip=h)
    h = conv_transpose_4x4_s2(lnk, params['dec3_w'], params['dec3_b'], act='relu')

    lnk, _ = pconv_s1(enc2, m2, params['link2_w'], params['link2_b'],
                      3, 3, pad=1, skip=h)
    h = conv_transpose_4x4_s2(lnk, params['dec2_w'], params['dec2_b'], act='relu')

    lnk, _ = pconv_s1(enc1, m1, params['link1_w'], params['link1_b'],
                      3, 3, pad=1, skip=h)
    hp = jnp.pad(lnk, ((0, 0), (3, 3), (3, 3), (0, 0)), mode='reflect')
    out = _conv_core(hp, params['dec1_w'], params['dec1_b'], 7, 7,
                     act='tanh01', out_dtype=jnp.float32)   # (tanh(x)+1)/2 fused
    out = out[..., :3]                                      # drop Cout padding
    return jnp.transpose(out, (0, 3, 1, 2))                 # back to NCHW


# ---------------------------------------------------------------------------
# Numeric cross-check of the three Pallas conv building blocks vs. XLA convs
# ---------------------------------------------------------------------------

def _self_check():
    k = jax.random.PRNGKey(1)
    kx, kw1, kw2, kw3 = jax.random.split(k, 4)
    dn = ('NHWC', 'HWIO', 'NHWC')

    def rel_err(a, b):
        return float(jnp.mean(jnp.abs(a - b)) / (jnp.mean(jnp.abs(b)) + 1e-12))

    x = jax.random.normal(kx, (2, 16, 16, 64), jnp.float32)
    xq = x.astype(jnp.bfloat16).astype(jnp.float32)
    b32 = jnp.zeros((1, 32), jnp.float32)

    # 1) stride-1 3x3 pad-1 conv
    w = jax.random.normal(kw1, (3, 3, 64, 32), jnp.float32)
    wq = w.astype(jnp.bfloat16).astype(jnp.float32)
    ref = lax.conv_general_dilated(xq, wq, (1, 1), ((1, 1), (1, 1)),
                                   dimension_numbers=dn)
    got = conv_s1(x, _to_taps(w), b32, 3, 3, pad=1, out_dtype=jnp.float32)
    assert rel_err(got, ref) < 0.05, 'stride-1 conv mismatch'

    # 2) stride-2 4x4 pad-1 conv via space-to-depth
    w2 = jax.random.normal(kw2, (4, 4, 64, 32), jnp.float32)
    wq2 = w2.astype(jnp.bfloat16).astype(jnp.float32)
    ref = lax.conv_general_dilated(xq, wq2, (2, 2), ((1, 1), (1, 1)),
                                   dimension_numbers=dn)
    got = conv_s2_4x4(x, _s2d_weight(w2), b32, out_dtype=jnp.float32)
    assert rel_err(got, ref) < 0.05, 'stride-2 conv mismatch'

    # 3) ConvTranspose2d(k=4, s=2, p=1) via parity decomposition
    wt = jax.random.normal(kw3, (64, 32, 4, 4), jnp.float32)   # torch layout
    wq3 = wt.astype(jnp.bfloat16).astype(jnp.float32)
    w_hwio = jnp.flip(jnp.transpose(wq3, (2, 3, 0, 1)), axis=(0, 1))
    ref = lax.conv_general_dilated(xq, w_hwio, (1, 1), ((2, 2), (2, 2)),
                                   lhs_dilation=(2, 2), dimension_numbers=dn)
    got = conv_transpose_4x4_s2(x, _deconv_parity_weight(wt),
                                jnp.zeros((1, 128), jnp.float32),
                                act='none', out_dtype=jnp.float32)
    assert rel_err(got, ref) < 0.05, 'conv-transpose mismatch'


# ---------------------------------------------------------------------------
# Main
# ---------------------------------------------------------------------------

if __name__ == "__main__":
    _self_check()

    key = jax.random.PRNGKey(0)
    k_param, k_x = jax.random.split(key)
    params = init_params(k_param)

    N, H, W = 2, 32, 32
    x = jax.random.normal(k_x, (N, 3, H, W), jnp.float32)        # NCHW input
    mask = jnp.ones((N, 1, H, W), jnp.float32)
    mask = mask.at[:, :, 10:22, 10:22].set(0.0)                  # hole (invalid)

    fwd = jax.jit(generator_forward)
    out = jax.block_until_ready(fwd(params, x, mask))

    assert out.shape == (N, 3, H, W), out.shape
    assert bool(jnp.all(jnp.isfinite(out)))
    print("KERNEL_OK")
</pallas_src>

<mosaic_0001>
module attributes {stable_mosaic.version = 11 : i64} {
  func.func @kernel(%arg0: i32, %arg1: memref<1x18x18x64xbf16, #tpu.memory_space<vmem>>, %arg2: memref<9x64x32xbf16, #tpu.memory_space<vmem>>, %arg3: memref<1x32xf32, #tpu.memory_space<vmem>>, %arg4: memref<1x256x32xf32, #tpu.memory_space<vmem>>) attributes {dimension_semantics = [#tpu.dimension_semantics<parallel>], iteration_bounds = array<i64: 2>, scalar_prefetch = 0 : i64, scratch_operands = 0 : i64, tpu.core_type = #tpu.core_type<tc>, window_params = [{transform_indices = @transform_0, window_bounds = array<i64: 1, 18, 18, 64>}, {pipeline_mode = #tpu.pipeline_mode<synchronous>, transform_indices = @transform_1, window_bounds = array<i64: 9, 64, 32>}, {pipeline_mode = #tpu.pipeline_mode<synchronous>, transform_indices = @transform_2, window_bounds = array<i64: 1, 32>}, {transform_indices = @transform_3, window_bounds = array<i64: 1, 256, 32>}]} {
    %c0 = arith.constant 0 : index
    %c0_0 = arith.constant 0 : index
    %c0_1 = arith.constant 0 : index
    %c0_2 = arith.constant 0 : index
    %0 = vector.load %arg1[%c0, %c0_0, %c0_1, %c0_2] : memref<1x18x18x64xbf16, #tpu.memory_space<vmem>>, vector<1x16x16x64xbf16>
    %1 = vector.shape_cast %0 : vector<1x16x16x64xbf16> to vector<16x16x64xbf16>
    %2 = vector.shape_cast %1 : vector<16x16x64xbf16> to vector<256x64xbf16>
    %c0_3 = arith.constant 0 : index
    %c0_4 = arith.constant 0 : index
    %c0_5 = arith.constant 0 : index
    %3 = vector.load %arg2[%c0_3, %c0_4, %c0_5] : memref<9x64x32xbf16, #tpu.memory_space<vmem>>, vector<1x64x32xbf16>
    %4 = vector.shape_cast %3 : vector<1x64x32xbf16> to vector<64x32xbf16>
    %cst = arith.constant dense<0.000000e+00> : vector<256x32xf32>
    %5 = tpu.matmul %2, %4, %cst {dimension_numbers = #tpu.dot_dimension_numbers<[1], [0], [0], [1], [0, 0, 1, 1], [], []>} : vector<256x64xbf16>, vector<64x32xbf16>, vector<256x32xf32> -> vector<256x32xf32>
    %c0_6 = arith.constant 0 : index
    %c0_7 = arith.constant 0 : index
    %c1 = arith.constant 1 : index
    %c0_8 = arith.constant 0 : index
    %6 = vector.load %arg1[%c0_6, %c0_7, %c1, %c0_8] : memref<1x18x18x64xbf16, #tpu.memory_space<vmem>>, vector<1x16x16x64xbf16>
    %7 = vector.shape_cast %6 : vector<1x16x16x64xbf16> to vector<16x16x64xbf16>
    %8 = vector.shape_cast %7 : vector<16x16x64xbf16> to vector<256x64xbf16>
    %c1_9 = arith.constant 1 : index
    %c0_10 = arith.constant 0 : index
    %c0_11 = arith.constant 0 : index
    %9 = vector.load %arg2[%c1_9, %c0_10, %c0_11] : memref<9x64x32xbf16, #tpu.memory_space<vmem>>, vector<1x64x32xbf16>
    %10 = vector.shape_cast %9 : vector<1x64x32xbf16> to vector<64x32xbf16>
    %cst_12 = arith.constant dense<0.000000e+00> : vector<256x32xf32>
    %11 = tpu.matmul %8, %10, %cst_12 {dimension_numbers = #tpu.dot_dimension_numbers<[1], [0], [0], [1], [0, 0, 1, 1], [], []>} : vector<256x64xbf16>, vector<64x32xbf16>, vector<256x32xf32> -> vector<256x32xf32>
    %12 = arith.addf %5, %11 : vector<256x32xf32>
    %c0_13 = arith.constant 0 : index
    %c0_14 = arith.constant 0 : index
    %c2 = arith.constant 2 : index
    %c0_15 = arith.constant 0 : index
    %13 = vector.load %arg1[%c0_13, %c0_14, %c2, %c0_15] : memref<1x18x18x64xbf16, #tpu.memory_space<vmem>>, vector<1x16x16x64xbf16>
    %14 = vector.shape_cast %13 : vector<1x16x16x64xbf16> to vector<16x16x64xbf16>
    %15 = vector.shape_cast %14 : vector<16x16x64xbf16> to vector<256x64xbf16>
    %c2_16 = arith.constant 2 : index
    %c0_17 = arith.constant 0 : index
    %c0_18 = arith.constant 0 : index
    %16 = vector.load %arg2[%c2_16, %c0_17, %c0_18] : memref<9x64x32xbf16, #tpu.memory_space<vmem>>, vector<1x64x32xbf16>
    %17 = vector.shape_cast %16 : vector<1x64x32xbf16> to vector<64x32xbf16>
    %cst_19 = arith.constant dense<0.000000e+00> : vector<256x32xf32>
    %18 = tpu.matmul %15, %17, %cst_19 {dimension_numbers = #tpu.dot_dimension_numbers<[1], [0], [0], [1], [0, 0, 1, 1], [], []>} : vector<256x64xbf16>, vector<64x32xbf16>, vector<256x32xf32> -> vector<256x32xf32>
    %19 = arith.addf %12, %18 : vector<256x32xf32>
    %c0_20 = arith.constant 0 : index
    %c1_21 = arith.constant 1 : index
    %c0_22 = arith.constant 0 : index
    %c0_23 = arith.constant 0 : index
    %20 = vector.load %arg1[%c0_20, %c1_21, %c0_22, %c0_23] : memref<1x18x18x64xbf16, #tpu.memory_space<vmem>>, vector<1x16x16x64xbf16>
    %21 = vector.shape_cast %20 : vector<1x16x16x64xbf16> to vector<16x16x64xbf16>
    %22 = vector.shape_cast %21 : vector<16x16x64xbf16> to vector<256x64xbf16>
    %c3 = arith.constant 3 : index
    %c0_24 = arith.constant 0 : index
    %c0_25 = arith.constant 0 : index
    %23 = vector.load %arg2[%c3, %c0_24, %c0_25] : memref<9x64x32xbf16, #tpu.memory_space<vmem>>, vector<1x64x32xbf16>
    %24 = vector.shape_cast %23 : vector<1x64x32xbf16> to vector<64x32xbf16>
    %cst_26 = arith.constant dense<0.000000e+00> : vector<256x32xf32>
    %25 = tpu.matmul %22, %24, %cst_26 {dimension_numbers = #tpu.dot_dimension_numbers<[1], [0], [0], [1], [0, 0, 1, 1], [], []>} : vector<256x64xbf16>, vector<64x32xbf16>, vector<256x32xf32> -> vector<256x32xf32>
    %26 = arith.addf %19, %25 : vector<256x32xf32>
    %c0_27 = arith.constant 0 : index
    %c1_28 = arith.constant 1 : index
    %c1_29 = arith.constant 1 : index
    %c0_30 = arith.constant 0 : index
    %27 = vector.load %arg1[%c0_27, %c1_28, %c1_29, %c0_30] : memref<1x18x18x64xbf16, #tpu.memory_space<vmem>>, vector<1x16x16x64xbf16>
    %28 = vector.shape_cast %27 : vector<1x16x16x64xbf16> to vector<16x16x64xbf16>
    %29 = vector.shape_cast %28 : vector<16x16x64xbf16> to vector<256x64xbf16>
    %c4 = arith.constant 4 : index
    %c0_31 = arith.constant 0 : index
    %c0_32 = arith.constant 0 : index
    %30 = vector.load %arg2[%c4, %c0_31, %c0_32] : memref<9x64x32xbf16, #tpu.memory_space<vmem>>, vector<1x64x32xbf16>
    %31 = vector.shape_cast %30 : vector<1x64x32xbf16> to vector<64x32xbf16>
    %cst_33 = arith.constant dense<0.000000e+00> : vector<256x32xf32>
    %32 = tpu.matmul %29, %31, %cst_33 {dimension_numbers = #tpu.dot_dimension_numbers<[1], [0], [0], [1], [0, 0, 1, 1], [], []>} : vector<256x64xbf16>, vector<64x32xbf16>, vector<256x32xf32> -> vector<256x32xf32>
    %33 = arith.addf %26, %32 : vector<256x32xf32>
    %c0_34 = arith.constant 0 : index
    %c1_35 = arith.constant 1 : index
    %c2_36 = arith.constant 2 : index
    %c0_37 = arith.constant 0 : index
    %34 = vector.load %arg1[%c0_34, %c1_35, %c2_36, %c0_37] : memref<1x18x18x64xbf16, #tpu.memory_space<vmem>>, vector<1x16x16x64xbf16>
    %35 = vector.shape_cast %34 : vector<1x16x16x64xbf16> to vector<16x16x64xbf16>
    %36 = vector.shape_cast %35 : vector<16x16x64xbf16> to vector<256x64xbf16>
    %c5 = arith.constant 5 : index
    %c0_38 = arith.constant 0 : index
    %c0_39 = arith.constant 0 : index
    %37 = vector.load %arg2[%c5, %c0_38, %c0_39] : memref<9x64x32xbf16, #tpu.memory_space<vmem>>, vector<1x64x32xbf16>
    %38 = vector.shape_cast %37 : vector<1x64x32xbf16> to vector<64x32xbf16>
    %cst_40 = arith.constant dense<0.000000e+00> : vector<256x32xf32>
    %39 = tpu.matmul %36, %38, %cst_40 {dimension_numbers = #tpu.dot_dimension_numbers<[1], [0], [0], [1], [0, 0, 1, 1], [], []>} : vector<256x64xbf16>, vector<64x32xbf16>, vector<256x32xf32> -> vector<256x32xf32>
    %40 = arith.addf %33, %39 : vector<256x32xf32>
    %c0_41 = arith.constant 0 : index
    %c2_42 = arith.constant 2 : index
    %c0_43 = arith.constant 0 : index
    %c0_44 = arith.constant 0 : index
    %41 = vector.load %arg1[%c0_41, %c2_42, %c0_43, %c0_44] : memref<1x18x18x64xbf16, #tpu.memory_space<vmem>>, vector<1x16x16x64xbf16>
    %42 = vector.shape_cast %41 : vector<1x16x16x64xbf16> to vector<16x16x64xbf16>
    %43 = vector.shape_cast %42 : vector<16x16x64xbf16> to vector<256x64xbf16>
    %c6 = arith.constant 6 : index
    %c0_45 = arith.constant 0 : index
    %c0_46 = arith.constant 0 : index
    %44 = vector.load %arg2[%c6, %c0_45, %c0_46] : memref<9x64x32xbf16, #tpu.memory_space<vmem>>, vector<1x64x32xbf16>
    %45 = vector.shape_cast %44 : vector<1x64x32xbf16> to vector<64x32xbf16>
    %cst_47 = arith.constant dense<0.000000e+00> : vector<256x32xf32>
    %46 = tpu.matmul %43, %45, %cst_47 {dimension_numbers = #tpu.dot_dimension_numbers<[1], [0], [0], [1], [0, 0, 1, 1], [], []>} : vector<256x64xbf16>, vector<64x32xbf16>, vector<256x32xf32> -> vector<256x32xf32>
    %47 = arith.addf %40, %46 : vector<256x32xf32>
    %c0_48 = arith.constant 0 : index
    %c2_49 = arith.constant 2 : index
    %c1_50 = arith.constant 1 : index
    %c0_51 = arith.constant 0 : index
    %48 = vector.load %arg1[%c0_48, %c2_49, %c1_50, %c0_51] : memref<1x18x18x64xbf16, #tpu.memory_space<vmem>>, vector<1x16x16x64xbf16>
    %49 = vector.shape_cast %48 : vector<1x16x16x64xbf16> to vector<16x16x64xbf16>
    %50 = vector.shape_cast %49 : vector<16x16x64xbf16> to vector<256x64xbf16>
    %c7 = arith.constant 7 : index
    %c0_52 = arith.constant 0 : index
    %c0_53 = arith.constant 0 : index
    %51 = vector.load %arg2[%c7, %c0_52, %c0_53] : memref<9x64x32xbf16, #tpu.memory_space<vmem>>, vector<1x64x32xbf16>
    %52 = vector.shape_cast %51 : vector<1x64x32xbf16> to vector<64x32xbf16>
    %cst_54 = arith.constant dense<0.000000e+00> : vector<256x32xf32>
    %53 = tpu.matmul %50, %52, %cst_54 {dimension_numbers = #tpu.dot_dimension_numbers<[1], [0], [0], [1], [0, 0, 1, 1], [], []>} : vector<256x64xbf16>, vector<64x32xbf16>, vector<256x32xf32> -> vector<256x32xf32>
    %54 = arith.addf %47, %53 : vector<256x32xf32>
    %c0_55 = arith.constant 0 : index
    %c2_56 = arith.constant 2 : index
    %c2_57 = arith.constant 2 : index
    %c0_58 = arith.constant 0 : index
    %55 = vector.load %arg1[%c0_55, %c2_56, %c2_57, %c0_58] : memref<1x18x18x64xbf16, #tpu.memory_space<vmem>>, vector<1x16x16x64xbf16>
    %56 = vector.shape_cast %55 : vector<1x16x16x64xbf16> to vector<16x16x64xbf16>
    %57 = vector.shape_cast %56 : vector<16x16x64xbf16> to vector<256x64xbf16>
    %c8 = arith.constant 8 : index
    %c0_59 = arith.constant 0 : index
    %c0_60 = arith.constant 0 : index
    %58 = vector.load %arg2[%c8, %c0_59, %c0_60] : memref<9x64x32xbf16, #tpu.memory_space<vmem>>, vector<1x64x32xbf16>
    %59 = vector.shape_cast %58 : vector<1x64x32xbf16> to vector<64x32xbf16>
    %cst_61 = arith.constant dense<0.000000e+00> : vector<256x32xf32>
    %60 = tpu.matmul %57, %59, %cst_61 {dimension_numbers = #tpu.dot_dimension_numbers<[1], [0], [0], [1], [0, 0, 1, 1], [], []>} : vector<256x64xbf16>, vector<64x32xbf16>, vector<256x32xf32> -> vector<256x32xf32>
    %61 = arith.addf %54, %60 : vector<256x32xf32>
    %c0_62 = arith.constant 0 : index
    %c0_63 = arith.constant 0 : index
    %62 = vector.load %arg3[%c0_62, %c0_63] : memref<1x32xf32, #tpu.memory_space<vmem>>, vector<1x32xf32>
    %63 = vector.broadcast %62 : vector<1x32xf32> to vector<256x32xf32>
    %64 = arith.addf %61, %63 : vector<256x32xf32>
    %c0_64 = arith.constant 0 : index
    %c0_65 = arith.constant 0 : index
    %c0_66 = arith.constant 0 : index
    %65 = vector.load %arg4[%c0_64, %c0_65, %c0_66] : memref<1x256x32xf32, #tpu.memory_space<vmem>>, vector<1x256x32xf32>
    %66 = vector.shape_cast %65 : vector<1x256x32xf32> to vector<256x32xf32>
    %67 = vector.shape_cast %64 : vector<256x32xf32> to vector<1x256x32xf32>
    tpu.vector_store %arg4[%c0_64, %c0_65, %c0_66], %67 {strides = array<i32>} : memref<1x256x32xf32, #tpu.memory_space<vmem>>, vector<1x256x32xf32>,
    return
  }
  func.func @transform_0(%arg0: i32) -> (i32, i32, i32, i32) {
    %c0_i32 = arith.constant 0 : i32
    %c0_i32_0 = arith.constant 0 : i32
    %c0_i32_1 = arith.constant 0 : i32
    %c0_i32_2 = arith.constant 0 : i32
    return %arg0, %c0_i32, %c0_i32_0, %c0_i32_1 : i32, i32, i32, i32
  }
  func.func @transform_1(%arg0: i32) -> (i32, i32, i32) {
    %c0_i32 = arith.constant 0 : i32
    %c0_i32_0 = arith.constant 0 : i32
    %c0_i32_1 = arith.constant 0 : i32
    %c0_i32_2 = arith.constant 0 : i32
    return %c0_i32, %c0_i32_0, %c0_i32_1 : i32, i32, i32
  }
  func.func @transform_2(%arg0: i32) -> (i32, i32) {
    %c0_i32 = arith.constant 0 : i32
    %c0_i32_0 = arith.constant 0 : i32
    %c0_i32_1 = arith.constant 0 : i32
    return %c0_i32, %c0_i32_0 : i32, i32
  }
  func.func @transform_3(%arg0: i32) -> (i32, i32, i32) {
    %c0_i32 = arith.constant 0 : i32
    %c0_i32_0 = arith.constant 0 : i32
    %c0_i32_1 = arith.constant 0 : i32
    return %arg0, %c0_i32, %c0_i32_0 : i32, i32, i32
  }
}

</mosaic_0001>

<llo_original>
// kernel: tpu_custom_call.1
$region0: #{tpu_custom_call.1}
  #allocation0 [shape = 'u32[]', space=smem, size = 0x4, offset = 0x4, fixed_abs, tag = 'smem constant byte address 0x4 - core index']
  #allocation1 [shape = 'u32[144,128]{1,0:T(1,128)}', space=vmem, size = 0x12000, scoped, tag = 'internal scratch']
  %s0 = inlined_call_operand.vmem [shape: bf16[2,18,18,64], index: 0, kind: input, shape index: {}]
  %s1 = inlined_call_operand.vmem [shape: bf16[9,64,32], index: 1, kind: input, shape index: {}]
  %s2 = inlined_call_operand.vmem [shape: f32[1,32], index: 2, kind: input, shape index: {}]
  %s3 = inlined_call_operand.vmem [shape: f32[2,256,32], index: 3, kind: output, shape index: {}]
  %s4 = sld [smem:[#allocation0]]
  $region45: #{tpu_custom_call.1} parent=0
    _
  %s6 = ssub.s32 1, %s4
  %s7 = scalar_select 0, %s6, %s4
  loop: start=0, step=1, limit=4
  $region2: #{tpu_custom_call.1} parent=0 // loop_pre_header
    _
  $region3: #{tpu_custom_call.1} parent=0 // loop_header
    %s9 = sphi 0, %s13
    %p10 = scmp.ge.s32.totalorder %s9, 4
    %s19 = sphi 0, %s21
    %s22 = sphi 0, %s19
    %s23 = sphi 0, %s22
    %s39 = sphi 0, %s23
    %s43 = sphi 0, %s43
    %s45 = sphi 0, %s43
    %s46 = sphi 0, %s45
    %s60 = sphi 0, %s46
    %s64 = sphi 0, %s64
    %s66 = sphi 0, %s64
    %s67 = sphi 0, %s66
    %s81 = sphi 0, %s67
    %s87 = sphi 0, %s89
    %s90 = sphi 0, %s87
    %s91 = sphi 0, %s90
    %s107 = sphi 0, %s91
  $region4: #{tpu_custom_call.1} parent=0 // loop_header_branch
    %12 = sbr.rel (%p10) target = $region8
  $region5: #{tpu_custom_call.1} parent=0 // loop_body
    %s14 = ssub.s32 %s9, 1
    %s15 = ssub.s32 %s9, 2
    %s16 = sadd.s32 %s9, 1
    %s17 = ssub.s32 %s9, %s16
    %p18 = scmp.eq.s32.totalorder %s17, 0
    %s20 = sadd.s32 %s19, 1
    %s21 = scalar_select %p18, %s19, %s20
    %p24 = pneg %p18
    %p25 = scmp.eq.s32.totalorder %s9, 1
    %p26 = por %p24, %p25
    %p27 = scmp.ne.s32.totalorder %s19, %s22
    %p28 = scmp.eq.s32.totalorder %s9, 0
    %p29 = por %p27, %p28
    %p30 = scmp.ne.s32.totalorder %s19, %s22
    %p31 = scmp.eq.s32.totalorder %s14, 1
    %p32 = por %p30, %p31
    %p33 = scmp.ne.s32.totalorder %s22, %s23
    %p34 = scmp.eq.s32.totalorder %s14, 0
    %p35 = por %p33, %p34
    %p36 = scmp.ne.s32.totalorder %s22, %s23
    %p37 = scmp.eq.s32.totalorder %s15, 1
    %p38 = por %p36, %p37
    %p40 = scmp.ne.s32.totalorder %s23, %s39
    %p41 = scmp.eq.s32.totalorder %s15, 0
    %p42 = por %p40, %p41
    %s44 = sadd.s32 %s43, 1
    %p47 = scmp.eq.s32.totalorder %s9, 1
    %p48 = scmp.ne.s32.totalorder %s43, %s45
    %p49 = scmp.eq.s32.totalorder %s9, 0
    %p50 = por %p48, %p49
    %p51 = scmp.ne.s32.totalorder %s43, %s45
    %p52 = scmp.eq.s32.totalorder %s14, 1
    %p53 = por %p51, %p52
    %p54 = scmp.ne.s32.totalorder %s45, %s46
    %p55 = scmp.eq.s32.totalorder %s14, 0
    %p56 = por %p54, %p55
    %p57 = scmp.ne.s32.totalorder %s45, %s46
    %p58 = scmp.eq.s32.totalorder %s15, 1
    %p59 = por %p57, %p58
    %p61 = scmp.ne.s32.totalorder %s46, %s60
    %p62 = scmp.eq.s32.totalorder %s15, 0
    %p63 = por %p61, %p62
    %s65 = sadd.s32 %s64, 1
    %p68 = scmp.eq.s32.totalorder %s9, 1
    %p69 = scmp.ne.s32.totalorder %s64, %s66
    %p70 = scmp.eq.s32.totalorder %s9, 0
    %p71 = por %p69, %p70
    %p72 = scmp.ne.s32.totalorder %s64, %s66
    %p73 = scmp.eq.s32.totalorder %s14, 1
    %p74 = por %p72, %p73
    %p75 = scmp.ne.s32.totalorder %s66, %s67
    %p76 = scmp.eq.s32.totalorder %s14, 0
    %p77 = por %p75, %p76
    %p78 = scmp.ne.s32.totalorder %s66, %s67
    %p79 = scmp.eq.s32.totalorder %s15, 1
    %p80 = por %p78, %p79
    %p82 = scmp.ne.s32.totalorder %s67, %s81
    %p83 = scmp.eq.s32.totalorder %s15, 0
    %p84 = por %p82, %p83
    %s85 = ssub.s32 %s9, %s16
    %p86 = scmp.eq.s32.totalorder %s85, 0
    %s88 = sadd.s32 %s87, 1
    %s89 = scalar_select %p86, %s87, %s88
    %p92 = pneg %p86
    %p93 = scmp.eq.s32.totalorder %s9, 1
    %p94 = por %p92, %p93
    %p95 = scmp.ne.s32.totalorder %s87, %s90
    %p96 = scmp.eq.s32.totalorder %s9, 0
    %p97 = por %p95, %p96
    %p98 = scmp.ne.s32.totalorder %s87, %s90
    %p99 = scmp.eq.s32.totalorder %s14, 1
    %p100 = por %p98, %p99
    %p101 = scmp.ne.s32.totalorder %s90, %s91
    %p102 = scmp.eq.s32.totalorder %s14, 0
    %p103 = por %p101, %p102
    %p104 = scmp.ne.s32.totalorder %s90, %s91
    %p105 = scmp.eq.s32.totalorder %s15, 1
    %p106 = por %p104, %p105
    %p108 = scmp.ne.s32.totalorder %s91, %s107
    %p109 = scmp.eq.s32.totalorder %s15, 0
    %p110 = por %p108, %p109
    %p111 = scmp.le.s32.totalorder 1, %s9
    %p112 = scmp.lt.s32.totalorder %s9, 3
    %p113 = pnand %p111, %p112
    %p114 = pneg %p113
    // Predicated region
    $region9: #{tpu_custom_call.1} parent=5 // pred_check
      _
    $region10: #{tpu_custom_call.1} parent=5 // pred_check_branch
      %116 = sbr.rel (%p113) target = $region12
    $region11: #{tpu_custom_call.1} parent=5 // pred_region
      %s117 = ssub.s32 %s9, 1
      // Predicated region
      $region13: #{tpu_custom_call.1} parent=11 // pred_check
        %p118 = pneg %p56
      $region14: #{tpu_custom_call.1} parent=11 // pred_check_branch
        %120 = sbr.rel (%p118) target = $region16
      $region15: #{tpu_custom_call.1} parent=11 // pred_region
        _
      $region16: #{tpu_custom_call.1} parent=11 // pred_fallthru
        _
      // Predicated region
      $region17: #{tpu_custom_call.1} parent=11 // pred_check
        %p121 = pneg %p77
      $region18: #{tpu_custom_call.1} parent=11 // pred_check_branch
        %123 = sbr.rel (%p121) target = $region20
      $region19: #{tpu_custom_call.1} parent=11 // pred_region
        _
      $region20: #{tpu_custom_call.1} parent=11 // pred_fallthru
        _
    $region12: #{tpu_custom_call.1} parent=5 // pred_fallthru
      _
    %p124 = scmp.lt.s32.totalorder %s9, 2
    // Predicated region
    $region21: #{tpu_custom_call.1} parent=5 // pred_check
      %p125 = pneg %p124
    $region22: #{tpu_custom_call.1} parent=5 // pred_check_branch
      %127 = sbr.rel (%p125) target = $region24
    $region23: #{tpu_custom_call.1} parent=5 // pred_region
      // Predicated region
      $region25: #{tpu_custom_call.1} parent=23 // pred_check
        %p128 = pneg %p29
      $region26: #{tpu_custom_call.1} parent=23 // pred_check_branch
        %130 = sbr.rel (%p128) target = $region28
      $region27: #{tpu_custom_call.1} parent=23 // pred_region
        %p131 = scmp.lt.s32.totalorder %s9, 1
        %s132 = scalar_select %p131, %s9, 1
        %s133 = smul.addr %s132, 54
        %s134 = smul.addr %s133, 4
        %s135 = scalar_lea.vmem %s0, %s134
      $region28: #{tpu_custom_call.1} parent=23 // pred_fallthru
        _
    $region24: #{tpu_custom_call.1} parent=5 // pred_fallthru
      _
    %p136 = scmp.le.s32.totalorder 1, %s9
    %p137 = scmp.lt.s32.totalorder %s9, 3
    %p138 = pnand %p136, %p137
    %p139 = pneg %p138
    // Predicated region
    $region29: #{tpu_custom_call.1} parent=5 // pred_check
      _
    $region30: #{tpu_custom_call.1} parent=5 // pred_check_branch
      %141 = sbr.rel (%p138) target = $region32
    $region31: #{tpu_custom_call.1} parent=5 // pred_region
      %s142 = ssub.s32 %s9, 1
      %p143 = scmp.lt.s32.totalorder %s14, 1
      %s144 = scalar_select %p143, %s14, 1
      %s145 = smul.addr %s144, 54
      %s146 = smul.addr %s145, 4
      %s147 = scalar_lea.vmem %s0, %s146
      %p148 = pneg %p35
      %p149 = pneg %p32
      %p150 = pneg %p56
      %p151 = pneg %p53
      %p152 = pneg %p77
      %p153 = pneg %p74
      %p154 = pneg %p103
      %p155 = pneg %p100
      %p156 = scmp.lt.s32.totalorder %s14, 1
      %s157 = scalar_select %p156, %s14, 1
      %s158 = smul.addr %s157, 32
      %s159 = smul.addr %s158, 8
      %s160 = scalar_lea.vmem %s3, %s159
      %p161 = scmp.lt.s32.totalorder %s14, 1
      %s162 = scalar_select %p161, %s14, 1
      %s163 = smul.addr %s162, 54
      %s164 = smul.addr %s163, 4
      %s165 = scalar_lea.vmem %s0, %s164
      %p166 = scmp.lt.s32.totalorder %s14, 1
      %s167 = scalar_select %p166, %s14, 1
      %s168 = smul.addr %s167, 32
      %s169 = smul.addr %s168, 8
      %s170 = scalar_lea.vmem %s3, %s169
      %v172 = vld [vmem:[%s165] sm:$0xf]
      %v173 = vld [vmem:[%s165 + $0x4] sm:$0xf]
      %v174 = vld [vmem:[%s165 + $0xc] sm:$0xf]
      %v175 = vld [vmem:[%s165 + $0x10] sm:$0xf]
      %v176 = vld [vmem:[%s165 + $0x18] sm:$0xf]
      %v177 = vld [vmem:[%s165 + $0x1c] sm:$0xf]
      %v178 = vld [vmem:[%s165 + $0x24] sm:$0xf]
      %v179 = vld [vmem:[%s165 + $0x28] sm:$0xf]
      %v180 = vld [vmem:[%s165 + $0x30] sm:$0xf]
      %v181 = vld [vmem:[%s165 + $0x34] sm:$0xf]
      %v182 = vld [vmem:[%s165 + $0x3c] sm:$0xf]
      %v183 = vld [vmem:[%s165 + $0x40] sm:$0xf]
      %v184 = vld [vmem:[%s165 + $0x48] sm:$0xf]
      %v185 = vld [vmem:[%s165 + $0x4c] sm:$0xf]
      %v186 = vld [vmem:[%s165 + $0x54] sm:$0xf]
      %v187 = vld [vmem:[%s165 + $0x58] sm:$0xf]
      %v188 = vld [vmem:[%s165 + $0x60] sm:$0xf]
      %v189 = vld [vmem:[%s165 + $0x64] sm:$0xf]
      %v190 = vld [vmem:[%s165 + $0x6c] sm:$0xf]
      %v191 = vld [vmem:[%s165 + $0x70] sm:$0xf]
      %v192 = vld [vmem:[%s165 + $0x78] sm:$0xf]
      %v193 = vld [vmem:[%s165 + $0x7c] sm:$0xf]
      %v194 = vld [vmem:[%s165 + $0x84] sm:$0xf]
      %v195 = vld [vmem:[%s165 + $0x88] sm:$0xf]
      %v196 = vld [vmem:[%s165 + $0x90] sm:$0xf]
      %v197 = vld [vmem:[%s165 + $0x94] sm:$0xf]
      %v198 = vld [vmem:[%s165 + $0x9c] sm:$0xf]
      %v199 = vld [vmem:[%s165 + $0xa0] sm:$0xf]
      %v200 = vld [vmem:[%s165 + $0xa8] sm:$0xf]
      %v201 = vld [vmem:[%s165 + $0xac] sm:$0xf]
      %v202 = vld [vmem:[%s165 + $0xb4] sm:$0xf]
      %v203 = vld [vmem:[%s165 + $0xb8] sm:$0xf]
      %v204 = vld [vmem:[%s1] sm:$0xf]
      %v205 = vld [vmem:[%s1 + $0x4] sm:$0xf]
      %v206 = vld [vmem:[%s1 + $0x8] sm:$0xf]
      %v207 = vld [vmem:[%s1 + $0xc] sm:$0xf]
      %v208 = vld [vmem:[%s1 + $0x10] sm:$0xf]
      %v209 = vld [vmem:[%s1 + $0x14] sm:$0xf]
      %v210 = vld [vmem:[%s1 + $0x18] sm:$0xf]
      %v211 = vld [vmem:[%s1 + $0x1c] sm:$0xf]
      %v212 = vld [vmem:[%s165 + $0x8] sm:$0x1]
      %v213 = vld [vmem:[%s165 + $0x14] sm:$0x1]
      %v214 = vld [vmem:[%s165 + $0x20] sm:$0x1]
      %v215 = vld [vmem:[%s165 + $0x2c] sm:$0x1]
      %v216 = vld [vmem:[%s165 + $0x38] sm:$0x1]
      %v217 = vld [vmem:[%s165 + $0x44] sm:$0x1]
      %v218 = vld [vmem:[%s165 + $0x50] sm:$0x1]
      %v219 = vld [vmem:[%s165 + $0x5c] sm:$0x1]
      %v220 = vld [vmem:[%s165 + $0x68] sm:$0x1]
      %v221 = vld [vmem:[%s165 + $0x74] sm:$0x1]
      %v222 = vld [vmem:[%s165 + $0x80] sm:$0x1]
      %v223 = vld [vmem:[%s165 + $0x8c] sm:$0x1]
      %v224 = vld [vmem:[%s165 + $0x98] sm:$0x1]
      %v225 = vld [vmem:[%s165 + $0xa4] sm:$0x1]
      %v226 = vld [vmem:[%s165 + $0xb0] sm:$0x1]
      %v227 = vld [vmem:[%s165 + $0xbc] sm:$0x1]
      %vm228 = vsmask.f32 3328
      %vm229 = vsmask.f32 7440
      %vm230 = vmor %vm228, %vm229
      %v232 = vshrl.u32 %v172, 16
      %v234 = vrot.slane %v232, 4
      %v235 = vshll.u32 %v172, 16
      %v237 = vrot.slane %v235, 5
      %v238 = vor.u32 %v234, %v237
      %v239 = vrot.slane %v238, 4
      %v241 = vshll.u32 %v173, 16
      %v243 = vrot.slane %v241, 5
      %v244 = vsel %vm230, %v239, %v243
      %v245 = vshrl.u32 %v173, 16
      %v247 = vrot.slane %v245, 4
      %v248 = vor.u32 %v247, %v243
      %v249 = vrot.slane %v248, 4
      %v251 = vshll.u32 %v212, 16
      %v253 = vrot.slane %v251, 5
      %v254 = vsel %vm230, %v249, %v253
      %v256 = vshrl.u32 %v174, 16
      %v258 = vrot.slane %v256, 4
      %v259 = vshll.u32 %v174, 16
      %v261 = vrot.slane %v259, 5
      %v262 = vor.u32 %v258, %v261
      %v263 = vrot.slane %v262, 4
      %v265 = vshll.u32 %v175, 16
      %v267 = vrot.slane %v265, 5
      %v268 = vsel %vm230, %v263, %v267
      %v269 = vshrl.u32 %v175, 16
      %v271 = vrot.slane %v269, 4
      %v272 = vor.u32 %v271, %v267
      %v273 = vrot.slane %v272, 4
      %v275 = vshll.u32 %v213, 16
      %v277 = vrot.slane %v275, 5
      %v278 = vsel %vm230, %v273, %v277
      %v280 = vshrl.u32 %v176, 16
      %v282 = vrot.slane %v280, 4
      %v283 = vshll.u32 %v176, 16
      %v285 = vrot.slane %v283, 5
      %v286 = vor.u32 %v282, %v285
      %v287 = vrot.slane %v286, 4
      %v289 = vshll.u32 %v177, 16
      %v291 = vrot.slane %v289, 5
      %v292 = vsel %vm230, %v287, %v291
      %v293 = vshrl.u32 %v177, 16
      %v295 = vrot.slane %v293, 4
      %v296 = vor.u32 %v295, %v291
      %v297 = vrot.slane %v296, 4
      %v299 = vshll.u32 %v214, 16
      %v301 = vrot.slane %v299, 5
      %v302 = vsel %vm230, %v297, %v301
      %v304 = vshrl.u32 %v178, 16
      %v306 = vrot.slane %v304, 4
      %v307 = vshll.u32 %v178, 16
      %v309 = vrot.slane %v307, 5
      %v310 = vor.u32 %v306, %v309
      %v311 = vrot.slane %v310, 4
      %v313 = vshll.u32 %v179, 16
      %v315 = vrot.slane %v313, 5
      %v316 = vsel %vm230, %v311, %v315
      %v317 = vshrl.u32 %v179, 16
      %v319 = vrot.slane %v317, 4
      %v320 = vor.u32 %v319, %v315
      %v321 = vrot.slane %v320, 4
      %v323 = vshll.u32 %v215, 16
      %v325 = vrot.slane %v323, 5
      %v326 = vsel %vm230, %v321, %v325
      %v328 = vshrl.u32 %v180, 16
      %v330 = vrot.slane %v328, 4
      %v331 = vshll.u32 %v180, 16
      %v333 = vrot.slane %v331, 5
      %v334 = vor.u32 %v330, %v333
      %v335 = vrot.slane %v334, 4
      %v337 = vshll.u32 %v181, 16
      %v339 = vrot.slane %v337, 5
      %v340 = vsel %vm230, %v335, %v339
      %v341 = vshrl.u32 %v181, 16
      %v343 = vrot.slane %v341, 4
      %v344 = vor.u32 %v343, %v339
      %v345 = vrot.slane %v344, 4
      %v347 = vshll.u32 %v216, 16
      %v349 = vrot.slane %v347, 5
      %v350 = vsel %vm230, %v345, %v349
      %v352 = vshrl.u32 %v182, 16
      %v354 = vrot.slane %v352, 4
      %v355 = vshll.u32 %v182, 16
      %v357 = vrot.slane %v355, 5
      %v358 = vor.u32 %v354, %v357
      %v359 = vrot.slane %v358, 4
      %v361 = vshll.u32 %v183, 16
      %v363 = vrot.slane %v361, 5
      %v364 = vsel %vm230, %v359, %v363
      %v365 = vshrl.u32 %v183, 16
      %v367 = vrot.slane %v365, 4
      %v368 = vor.u32 %v367, %v363
      %v369 = vrot.slane %v368, 4
      %v371 = vshll.u32 %v217, 16
      %v373 = vrot.slane %v371, 5
      %v374 = vsel %vm230, %v369, %v373
      %v376 = vshrl.u32 %v184, 16
      %v378 = vrot.slane %v376, 4
      %v379 = vshll.u32 %v184, 16
      %v381 = vrot.slane %v379, 5
      %v382 = vor.u32 %v378, %v381
      %v383 = vrot.slane %v382, 4
      %v385 = vshll.u32 %v185, 16
      %v387 = vrot.slane %v385, 5
      %v388 = vsel %vm230, %v383, %v387
      %v389 = vshrl.u32 %v185, 16
      %v391 = vrot.slane %v389, 4
      %v392 = vor.u32 %v391, %v387
      %v393 = vrot.slane %v392, 4
      %v395 = vshll.u32 %v218, 16
      %v397 = vrot.slane %v395, 5
      %v398 = vsel %vm230, %v393, %v397
      %v400 = vshrl.u32 %v186, 16
      %v402 = vrot.slane %v400, 4
      %v403 = vshll.u32 %v186, 16
      %v405 = vrot.slane %v403, 5
      %v406 = vor.u32 %v402, %v405
      %v407 = vrot.slane %v406, 4
      %v409 = vshll.u32 %v187, 16
      %v411 = vrot.slane %v409, 5
      %v412 = vsel %vm230, %v407, %v411
      %v413 = vshrl.u32 %v187, 16
      %v415 = vrot.slane %v413, 4
      %v416 = vor.u32 %v415, %v411
      %v417 = vrot.slane %v416, 4
      %v419 = vshll.u32 %v219, 16
      %v421 = vrot.slane %v419, 5
      %v422 = vsel %vm230, %v417, %v421
      %v424 = vshrl.u32 %v188, 16
      %v426 = vrot.slane %v424, 4
      %v427 = vshll.u32 %v188, 16
      %v429 = vrot.slane %v427, 5
      %v430 = vor.u32 %v426, %v429
      %v431 = vrot.slane %v430, 4
      %v433 = vshll.u32 %v189, 16
      %v435 = vrot.slane %v433, 5
      %v436 = vsel %vm230, %v431, %v435
      %v437 = vshrl.u32 %v189, 16
      %v439 = vrot.slane %v437, 4
      %v440 = vor.u32 %v439, %v435
      %v441 = vrot.slane %v440, 4
      %v443 = vshll.u32 %v220, 16
      %v445 = vrot.slane %v443, 5
      %v446 = vsel %vm230, %v441, %v445
      %v448 = vshrl.u32 %v190, 16
      %v450 = vrot.slane %v448, 4
      %v451 = vshll.u32 %v190, 16
      %v453 = vrot.slane %v451, 5
      %v454 = vor.u32 %v450, %v453
      %v455 = vrot.slane %v454, 4
      %v457 = vshll.u32 %v191, 16
      %v459 = vrot.slane %v457, 5
      %v460 = vsel %vm230, %v455, %v459
      %v461 = vshrl.u32 %v191, 16
      %v463 = vrot.slane %v461, 4
      %v464 = vor.u32 %v463, %v459
      %v465 = vrot.slane %v464, 4
      %v467 = vshll.u32 %v221, 16
      %v469 = vrot.slane %v467, 5
      %v470 = vsel %vm230, %v465, %v469
      %v472 = vshrl.u32 %v192, 16
      %v474 = vrot.slane %v472, 4
      %v475 = vshll.u32 %v192, 16
      %v477 = vrot.slane %v475, 5
      %v478 = vor.u32 %v474, %v477
      %v479 = vrot.slane %v478, 4
      %v481 = vshll.u32 %v193, 16
      %v483 = vrot.slane %v481, 5
      %v484 = vsel %vm230, %v479, %v483
      %v485 = vshrl.u32 %v193, 16
      %v487 = vrot.slane %v485, 4
      %v488 = vor.u32 %v487, %v483
      %v489 = vrot.slane %v488, 4
      %v491 = vshll.u32 %v222, 16
      %v493 = vrot.slane %v491, 5
      %v494 = vsel %vm230, %v489, %v493
      %v496 = vshrl.u32 %v194, 16
      %v498 = vrot.slane %v496, 4
      %v499 = vshll.u32 %v194, 16
      %v501 = vrot.slane %v499, 5
      %v502 = vor.u32 %v498, %v501
      %v503 = vrot.slane %v502, 4
      %v505 = vshll.u32 %v195, 16
      %v507 = vrot.slane %v505, 5
      %v508 = vsel %vm230, %v503, %v507
      %v509 = vshrl.u32 %v195, 16
      %v511 = vrot.slane %v509, 4
      %v512 = vor.u32 %v511, %v507
      %v513 = vrot.slane %v512, 4
      %v515 = vshll.u32 %v223, 16
      %v517 = vrot.slane %v515, 5
      %v518 = vsel %vm230, %v513, %v517
      %v520 = vshrl.u32 %v196, 16
      %v522 = vrot.slane %v520, 4
      %v523 = vshll.u32 %v196, 16
      %v525 = vrot.slane %v523, 5
      %v526 = vor.u32 %v522, %v525
      %v527 = vrot.slane %v526, 4
      %v529 = vshll.u32 %v197, 16
      %v531 = vrot.slane %v529, 5
      %v532 = vsel %vm230, %v527, %v531
      %v533 = vshrl.u32 %v197, 16
      %v535 = vrot.slane %v533, 4
      %v536 = vor.u32 %v535, %v531
      %v537 = vrot.slane %v536, 4
      %v539 = vshll.u32 %v224, 16
      %v541 = vrot.slane %v539, 5
      %v542 = vsel %vm230, %v537, %v541
      %v544 = vshrl.u32 %v198, 16
      %v546 = vrot.slane %v544, 4
      %v547 = vshll.u32 %v198, 16
      %v549 = vrot.slane %v547, 5
      %v550 = vor.u32 %v546, %v549
      %v551 = vrot.slane %v550, 4
      %v553 = vshll.u32 %v199, 16
      %v555 = vrot.slane %v553, 5
      %v556 = vsel %vm230, %v551, %v555
      %v557 = vshrl.u32 %v199, 16
      %v559 = vrot.slane %v557, 4
      %v560 = vor.u32 %v559, %v555
      %v561 = vrot.slane %v560, 4
      %v563 = vshll.u32 %v225, 16
      %v565 = vrot.slane %v563, 5
      %v566 = vsel %vm230, %v561, %v565
      %v568 = vshrl.u32 %v200, 16
      %v570 = vrot.slane %v568, 4
      %v571 = vshll.u32 %v200, 16
      %v573 = vrot.slane %v571, 5
      %v574 = vor.u32 %v570, %v573
      %v575 = vrot.slane %v574, 4
      %v577 = vshll.u32 %v201, 16
      %v579 = vrot.slane %v577, 5
      %v580 = vsel %vm230, %v575, %v579
      %v581 = vshrl.u32 %v201, 16
      %v583 = vrot.slane %v581, 4
      %v584 = vor.u32 %v583, %v579
      %v585 = vrot.slane %v584, 4
      %v587 = vshll.u32 %v226, 16
      %v589 = vrot.slane %v587, 5
      %v590 = vsel %vm230, %v585, %v589
      %v592 = vshrl.u32 %v202, 16
      %v594 = vrot.slane %v592, 4
      %v595 = vshll.u32 %v202, 16
      %v597 = vrot.slane %v595, 5
      %v598 = vor.u32 %v594, %v597
      %v599 = vrot.slane %v598, 4
      %v601 = vshll.u32 %v203, 16
      %v603 = vrot.slane %v601, 5
      %v604 = vsel %vm230, %v599, %v603
      %v605 = vshrl.u32 %v203, 16
      %v607 = vrot.slane %v605, 4
      %v608 = vor.u32 %v607, %v603
      %v609 = vrot.slane %v608, 4
      %v611 = vshll.u32 %v227, 16
      %v613 = vrot.slane %v611, 5
      %v614 = vsel %vm230, %v609, %v613
      %s615 = scalar_lea.vmem %s1, 32
      %v616 = vld [vmem:[%s615] sm:$0xf]
      %v617 = vld [vmem:[%s615 + $0x4] sm:$0xf]
      %v618 = vld [vmem:[%s615 + $0x8] sm:$0xf]
      %v619 = vld [vmem:[%s615 + $0xc] sm:$0xf]
      %v620 = vld [vmem:[%s615 + $0x10] sm:$0xf]
      %v621 = vld [vmem:[%s615 + $0x14] sm:$0xf]
      %v622 = vld [vmem:[%s615 + $0x18] sm:$0xf]
      %v623 = vld [vmem:[%s615 + $0x1c] sm:$0xf]
      %v624 = vunpack.c.l.b16 %v244
      %v625 = vunpack.c.l.b16 %v254
      %v626 = vunpack.c.l.b16 %v268
      %v627 = vunpack.c.l.b16 %v278
      %v628 = vunpack.c.l.b16 %v292
      %v629 = vunpack.c.l.b16 %v302
      %v630 = vunpack.c.l.b16 %v316
      %v631 = vunpack.c.l.b16 %v326
      %v632 = vunpack.c.l.b16 %v340
      %v633 = vunpack.c.l.b16 %v350
      %v634 = vunpack.c.l.b16 %v364
      %v635 = vunpack.c.l.b16 %v374
      %v636 = vunpack.c.l.b16 %v388
      %v637 = vunpack.c.l.b16 %v398
      %v638 = vunpack.c.l.b16 %v412
      %v639 = vunpack.c.l.b16 %v422
      %v640 = vunpack.c.l.b16 %v436
      %v641 = vunpack.c.l.b16 %v446
      %v642 = vunpack.c.l.b16 %v460
      %v643 = vunpack.c.l.b16 %v470
      %v644 = vunpack.c.l.b16 %v484
      %v645 = vunpack.c.l.b16 %v494
      %v646 = vunpack.c.l.b16 %v508
      %v647 = vunpack.c.l.b16 %v518
      %v648 = vunpack.c.l.b16 %v532
      %v649 = vunpack.c.l.b16 %v542
      %v650 = vunpack.c.l.b16 %v556
      %v651 = vunpack.c.l.b16 %v566
      %v652 = vunpack.c.l.b16 %v580
      %v653 = vunpack.c.l.b16 %v590
      %v654 = vunpack.c.l.b16 %v604
      %v655 = vunpack.c.l.b16 %v614
      %v656 = vpack.c.b16 %v625, %v624
      %v657 = vpack.c.b16 %v627, %v626
      %v658 = vpack.c.b16 %v629, %v628
      %v659 = vpack.c.b16 %v631, %v630
      %v660 = vpack.c.b16 %v633, %v632
      %v661 = vpack.c.b16 %v635, %v634
      %v662 = vpack.c.b16 %v637, %v636
      %v663 = vpack.c.b16 %v639, %v638
      %v664 = vpack.c.b16 %v641, %v640
      %v665 = vpack.c.b16 %v643, %v642
      %v666 = vpack.c.b16 %v645, %v644
      %v667 = vpack.c.b16 %v647, %v646
      %v668 = vpack.c.b16 %v649, %v648
      %v669 = vpack.c.b16 %v651, %v650
      %v670 = vpack.c.b16 %v653, %v652
      %v671 = vpack.c.b16 %v655, %v654
      %v680 = vunpack.c.l.b16 %v616
      %v681 = vunpack.c.l.b16 %v617
      %v682 = vunpack.c.l.b16 %v618
      %v683 = vunpack.c.l.b16 %v619
      %v684 = vunpack.c.l.b16 %v620
      %v685 = vunpack.c.l.b16 %v621
      %v686 = vunpack.c.l.b16 %v622
      %v687 = vunpack.c.l.b16 %v623
      %v688 = vpack.c.b16 %v681, %v680
      %v689 = vpack.c.b16 %v683, %v682
      %v690 = vpack.c.b16 %v685, %v684
      %v691 = vpack.c.b16 %v687, %v686
      %vm696 = vcmask 523264
      %v698 = vsel %vm696, %v656, 0
      %v701 = vsel %vm696, %v657, 0
      %v704 = vsel %vm696, %v658, 0
      %v707 = vsel %vm696, %v659, 0
      %v710 = vsel %vm696, %v660, 0
      %v713 = vsel %vm696, %v661, 0
      %v716 = vsel %vm696, %v662, 0
      %v719 = vsel %vm696, %v663, 0
      %v722 = vsel %vm696, %v664, 0
      %v725 = vsel %vm696, %v665, 0
      %v728 = vsel %vm696, %v666, 0
      %v731 = vsel %vm696, %v667, 0
      %v734 = vsel %vm696, %v668, 0
      %v737 = vsel %vm696, %v669, 0
      %v740 = vsel %vm696, %v670, 0
      %v743 = vsel %vm696, %v671, 0
      %745 = vmatprep.subr.bf16.mxu0 0
      %746 = vmatpush1.bf16.msra.mxu0 0
      %747 = vmatprep.subr.bf16.mxu0 0
      %748 = vmatpush1.bf16.msra.mxu0 0
      %749 = vmatprep.subr.bf16.mxu0 0
      %750 = vmatpush1.bf16.msra.mxu0 0
      %751 = vmatprep.subr.bf16.mxu0 0
      %752 = vmatpush1.bf16.msra.mxu0 0
      %753 = vmatprep.subr.bf16.mxu0 0
      %754 = vmatpush1.bf16.msra.mxu0 %v691
      %755 = vmatprep.subr.bf16.mxu0 0
      %756 = vmatpush1.bf16.msra.mxu0 %v690
      %757 = vmatprep.subr.bf16.mxu0 0
      %758 = vmatpush1.bf16.msra.mxu0 %v689
      %759 = vmatprep.subr.bf16.mxu0 0
      %760 = vmatpush1.bf16.msra.mxu0 %v688
      %761 = vmatprep.subr.bf16.mxu0 0
      %762 = vmatpush2.bf16.msra.mxu0 0
      %763 = vmatprep.subr.bf16.mxu0 0
      %764 = vmatpush2.bf16.msra.mxu0 0
      %765 = vmatprep.subr.bf16.mxu0 0
      %766 = vmatpush2.bf16.msra.mxu0 0
      %767 = vmatprep.subr.bf16.mxu0 0
      %768 = vmatpush2.bf16.msra.mxu0 0
      %769 = vmatprep.subr.bf16.mxu0 0
      %770 = vmatpush2.bf16.msra.mxu0 0
      %771 = vmatprep.subr.bf16.mxu0 0
      %772 = vmatpush2.bf16.msra.mxu0 0
      %773 = vmatprep.subr.bf16.mxu0 0
      %774 = vmatpush2.bf16.msra.mxu0 0
      %775 = vmatprep.subr.bf16.mxu0 0
      %776 = vmatpush2.bf16.msra.mxu0 0
      %777 = vmatprep.mubr.bf16.mxu0 0
      %778 = vmatmul.mubr.bf16.gmra.mxu0 %v698
      %v779 = vpop.f32.mrf.mxu0
      %v780 = vadd.f32 0.0, %v779
      %v781 = vpop.f32.mrf.mxu0
      %v782 = vpop.f32.mrf.mxu0
      %v783 = vadd.f32 0.0, %v782
      %v784 = vpop.f32.mrf.mxu0
      %785 = vmatprep.mubr.bf16.mxu0 0
      %786 = vmatmul.mubr.bf16.gmra.mxu0 %v701
      %v787 = vpop.f32.mrf.mxu0
      %v788 = vadd.f32 0.0, %v787
      %v789 = vpop.f32.mrf.mxu0
      %v790 = vpop.f32.mrf.mxu0
      %v791 = vadd.f32 0.0, %v790
      %v792 = vpop.f32.mrf.mxu0
      %793 = vmatprep.mubr.bf16.mxu0 0
      %794 = vmatmul.mubr.bf16.gmra.mxu0 %v704
      %v795 = vpop.f32.mrf.mxu0
      %v796 = vadd.f32 0.0, %v795
      %v797 = vpop.f32.mrf.mxu0
      %v798 = vpop.f32.mrf.mxu0
      %v799 = vadd.f32 0.0, %v798
      %v800 = vpop.f32.mrf.mxu0
      %801 = vmatprep.mubr.bf16.mxu0 0
      %802 = vmatmul.mubr.bf16.gmra.mxu0 %v707
      %v803 = vpop.f32.mrf.mxu0
      %v804 = vadd.f32 0.0, %v803
      %v805 = vpop.f32.mrf.mxu0
      %v806 = vpop.f32.mrf.mxu0
      %v807 = vadd.f32 0.0, %v806
      %v808 = vpop.f32.mrf.mxu0
      %809 = vmatprep.mubr.bf16.mxu0 0
      %810 = vmatmul.mubr.bf16.gmra.mxu0 %v710
      %v811 = vpop.f32.mrf.mxu0
      %v812 = vadd.f32 0.0, %v811
      %v813 = vpop.f32.mrf.mxu0
      %v814 = vpop.f32.mrf.mxu0
      %v815 = vadd.f32 0.0, %v814
      %v816 = vpop.f32.mrf.mxu0
      %817 = vmatprep.mubr.bf16.mxu0 0
      %818 = vmatmul.mubr.bf16.gmra.mxu0 %v713
      %v819 = vpop.f32.mrf.mxu0
      %v820 = vadd.f32 0.0, %v819
      %v821 = vpop.f32.mrf.mxu0
      %v822 = vpop.f32.mrf.mxu0
      %v823 = vadd.f32 0.0, %v822
      %v824 = vpop.f32.mrf.mxu0
      %825 = vmatprep.mubr.bf16.mxu0 0
      %826 = vmatmul.mubr.bf16.gmra.mxu0 %v716
      %v827 = vpop.f32.mrf.mxu0
      %v828 = vadd.f32 0.0, %v827
      %v829 = vpop.f32.mrf.mxu0
      %v830 = vpop.f32.mrf.mxu0
      %v831 = vadd.f32 0.0, %v830
      %v832 = vpop.f32.mrf.mxu0
      %833 = vmatprep.mubr.bf16.mxu0 0
      %834 = vmatmul.mubr.bf16.gmra.mxu0 %v719
      %v835 = vpop.f32.mrf.mxu0
      %v836 = vadd.f32 0.0, %v835
      %v837 = vpop.f32.mrf.mxu0
      %v838 = vpop.f32.mrf.mxu0
      %v839 = vadd.f32 0.0, %v838
      %v840 = vpop.f32.mrf.mxu0
      %841 = vmatprep.mubr.bf16.mxu0 0
      %842 = vmatmul.mubr.bf16.gmra.mxu0 %v722
      %v843 = vpop.f32.mrf.mxu0
      %v844 = vadd.f32 0.0, %v843
      %v845 = vpop.f32.mrf.mxu0
      %v846 = vpop.f32.mrf.mxu0
      %v847 = vadd.f32 0.0, %v846
      %v848 = vpop.f32.mrf.mxu0
      %849 = vmatprep.mubr.bf16.mxu0 0
      %850 = vmatmul.mubr.bf16.gmra.mxu0 %v725
      %v851 = vpop.f32.mrf.mxu0
      %v852 = vadd.f32 0.0, %v851
      %v853 = vpop.f32.mrf.mxu0
      %v854 = vpop.f32.mrf.mxu0
      %v855 = vadd.f32 0.0, %v854
      %v856 = vpop.f32.mrf.mxu0
      %857 = vmatprep.mubr.bf16.mxu0 0
      %858 = vmatmul.mubr.bf16.gmra.mxu0 %v728
      %v859 = vpop.f32.mrf.mxu0
      %v860 = vadd.f32 0.0, %v859
      %v861 = vpop.f32.mrf.mxu0
      %v862 = vpop.f32.mrf.mxu0
      %v863 = vadd.f32 0.0, %v862
      %v864 = vpop.f32.mrf.mxu0
      %865 = vmatprep.mubr.bf16.mxu0 0
      %866 = vmatmul.mubr.bf16.gmra.mxu0 %v731
      %v867 = vpop.f32.mrf.mxu0
      %v868 = vadd.f32 0.0, %v867
      %v869 = vpop.f32.mrf.mxu0
      %v870 = vpop.f32.mrf.mxu0
      %v871 = vadd.f32 0.0, %v870
      %v872 = vpop.f32.mrf.mxu0
      %873 = vmatprep.mubr.bf16.mxu0 0
      %874 = vmatmul.mubr.bf16.gmra.mxu0 %v734
      %v875 = vpop.f32.mrf.mxu0
      %v876 = vadd.f32 0.0, %v875
      %v877 = vpop.f32.mrf.mxu0
      %v878 = vpop.f32.mrf.mxu0
      %v879 = vadd.f32 0.0, %v878
      %v880 = vpop.f32.mrf.mxu0
      %881 = vmatprep.mubr.bf16.mxu0 0
      %882 = vmatmul.mubr.bf16.gmra.mxu0 %v737
      %v883 = vpop.f32.mrf.mxu0
      %v884 = vadd.f32 0.0, %v883
      %v885 = vpop.f32.mrf.mxu0
      %v886 = vpop.f32.mrf.mxu0
      %v887 = vadd.f32 0.0, %v886
      %v888 = vpop.f32.mrf.mxu0
      %889 = vmatprep.mubr.bf16.mxu0 0
      %890 = vmatmul.mubr.bf16.gmra.mxu0 %v740
      %v891 = vpop.f32.mrf.mxu0
      %v892 = vadd.f32 0.0, %v891
      %v893 = vpop.f32.mrf.mxu0
      %v894 = vpop.f32.mrf.mxu0
      %v895 = vadd.f32 0.0, %v894
      %v896 = vpop.f32.mrf.mxu0
      %897 = vmatprep.mubr.bf16.mxu0 0
      %898 = vmatmul.mubr.bf16.gmra.mxu0 %v743
      %v899 = vpop.f32.mrf.mxu0
      %v900 = vadd.f32 0.0, %v899
      %v901 = vpop.f32.mrf.mxu0
      %v902 = vpop.f32.mrf.mxu0
      %v903 = vadd.f32 0.0, %v902
      %v904 = vpop.f32.mrf.mxu0
      %905 = vdwg.mxu0
      %v938 = vunpack.c.l.b16 %v172
      %v939 = vunpack.c.l.b16 %v173
      %v940 = vunpack.c.l.b16 %v174
      %v941 = vunpack.c.l.b16 %v175
      %v942 = vunpack.c.l.b16 %v176
      %v943 = vunpack.c.l.b16 %v177
      %v944 = vunpack.c.l.b16 %v178
      %v945 = vunpack.c.l.b16 %v179
      %v946 = vunpack.c.l.b16 %v180
      %v947 = vunpack.c.l.b16 %v181
      %v948 = vunpack.c.l.b16 %v182
      %v949 = vunpack.c.l.b16 %v183
      %v950 = vunpack.c.l.b16 %v184
      %v951 = vunpack.c.l.b16 %v185
      %v952 = vunpack.c.l.b16 %v186
      %v953 = vunpack.c.l.b16 %v187
      %v954 = vunpack.c.l.b16 %v188
      %v955 = vunpack.c.l.b16 %v189
      %v956 = vunpack.c.l.b16 %v190
      %v957 = vunpack.c.l.b16 %v191
      %v958 = vunpack.c.l.b16 %v192
      %v959 = vunpack.c.l.b16 %v193
      %v960 = vunpack.c.l.b16 %v194
      %v961 = vunpack.c.l.b16 %v195
      %v962 = vunpack.c.l.b16 %v196
      %v963 = vunpack.c.l.b16 %v197
      %v964 = vunpack.c.l.b16 %v198
      %v965 = vunpack.c.l.b16 %v199
      %v966 = vunpack.c.l.b16 %v200
      %v967 = vunpack.c.l.b16 %v201
      %v968 = vunpack.c.l.b16 %v202
      %v969 = vunpack.c.l.b16 %v203
      %v970 = vpack.c.b16 %v939, %v938
      %v971 = vpack.c.b16 %v941, %v940
      %v972 = vpack.c.b16 %v943, %v942
      %v973 = vpack.c.b16 %v945, %v944
      %v974 = vpack.c.b16 %v947, %v946
      %v975 = vpack.c.b16 %v949, %v948
      %v976 = vpack.c.b16 %v951, %v950
      %v977 = vpack.c.b16 %v953, %v952
      %v978 = vpack.c.b16 %v955, %v954
      %v979 = vpack.c.b16 %v957, %v956
      %v980 = vpack.c.b16 %v959, %v958
      %v981 = vpack.c.b16 %v961, %v960
      %v982 = vpack.c.b16 %v963, %v962
      %v983 = vpack.c.b16 %v965, %v964
      %v984 = vpack.c.b16 %v967, %v966
      %v985 = vpack.c.b16 %v969, %v968
      %v994 = vunpack.c.l.b16 %v204
      %v995 = vunpack.c.l.b16 %v205
      %v996 = vunpack.c.l.b16 %v206
      %v997 = vunpack.c.l.b16 %v207
      %v998 = vunpack.c.l.b16 %v208
      %v999 = vunpack.c.l.b16 %v209
      %v1000 = vunpack.c.l.b16 %v210
      %v1001 = vunpack.c.l.b16 %v211
      %v1002 = vpack.c.b16 %v995, %v994
      %v1003 = vpack.c.b16 %v997, %v996
      %v1004 = vpack.c.b16 %v999, %v998
      %v1005 = vpack.c.b16 %v1001, %v1000
      %v1011 = vsel %vm696, %v970, 0
      %v1014 = vsel %vm696, %v971, 0
      %v1017 = vsel %vm696, %v972, 0
      %v1020 = vsel %vm696, %v973, 0
      %v1023 = vsel %vm696, %v974, 0
      %v1026 = vsel %vm696, %v975, 0
      %v1029 = vsel %vm696, %v976, 0
      %v1032 = vsel %vm696, %v977, 0
      %v1035 = vsel %vm696, %v978, 0
      %v1038 = vsel %vm696, %v979, 0
      %v1041 = vsel %vm696, %v980, 0
      %v1044 = vsel %vm696, %v981, 0
      %v1047 = vsel %vm696, %v982, 0
      %v1050 = vsel %vm696, %v983, 0
      %v1053 = vsel %vm696, %v984, 0
      %v1056 = vsel %vm696, %v985, 0
      %1058 = vmatprep.subr.bf16.mxu0 0
      %1059 = vmatpush1.bf16.msra.mxu0 0
      %1060 = vmatprep.subr.bf16.mxu0 0
      %1061 = vmatpush1.bf16.msra.mxu0 0
      %1062 = vmatprep.subr.bf16.mxu0 0
      %1063 = vmatpush1.bf16.msra.mxu0 0
      %1064 = vmatprep.subr.bf16.mxu0 0
      %1065 = vmatpush1.bf16.msra.mxu0 0
      %1066 = vmatprep.subr.bf16.mxu0 0
      %1067 = vmatpush1.bf16.msra.mxu0 %v1005
      %1068 = vmatprep.subr.bf16.mxu0 0
      %1069 = vmatpush1.bf16.msra.mxu0 %v1004
      %1070 = vmatprep.subr.bf16.mxu0 0
      %1071 = vmatpush1.bf16.msra.mxu0 %v1003
      %1072 = vmatprep.subr.bf16.mxu0 0
      %1073 = vmatpush1.bf16.msra.mxu0 %v1002
      %1074 = vmatprep.subr.bf16.mxu0 0
      %1075 = vmatpush2.bf16.msra.mxu0 0
      %1076 = vmatprep.subr.bf16.mxu0 0
      %1077 = vmatpush2.bf16.msra.mxu0 0
      %1078 = vmatprep.subr.bf16.mxu0 0
      %1079 = vmatpush2.bf16.msra.mxu0 0
      %1080 = vmatprep.subr.bf16.mxu0 0
      %1081 = vmatpush2.bf16.msra.mxu0 0
      %1082 = vmatprep.subr.bf16.mxu0 0
      %1083 = vmatpush2.bf16.msra.mxu0 0
      %1084 = vmatprep.subr.bf16.mxu0 0
      %1085 = vmatpush2.bf16.msra.mxu0 0
      %1086 = vmatprep.subr.bf16.mxu0 0
      %1087 = vmatpush2.bf16.msra.mxu0 0
      %1088 = vmatprep.subr.bf16.mxu0 0
      %1089 = vmatpush2.bf16.msra.mxu0 0
      %1090 = vmatprep.mubr.bf16.mxu0 0
      %1091 = vmatmul.mubr.bf16.gmra.mxu0 %v1011
      %v1092 = vpop.f32.mrf.mxu0
      %v1093 = vadd.f32 %v780, %v1092
      %v1094 = vpop.f32.mrf.mxu0
      %v1095 = vpop.f32.mrf.mxu0
      %v1096 = vadd.f32 %v783, %v1095
      %v1097 = vpop.f32.mrf.mxu0
      %1098 = vmatprep.mubr.bf16.mxu0 0
      %1099 = vmatmul.mubr.bf16.gmra.mxu0 %v1014
      %v1100 = vpop.f32.mrf.mxu0
      %v1101 = vadd.f32 %v788, %v1100
      %v1102 = vpop.f32.mrf.mxu0
      %v1103 = vpop.f32.mrf.mxu0
      %v1104 = vadd.f32 %v791, %v1103
      %v1105 = vpop.f32.mrf.mxu0
      %1106 = vmatprep.mubr.bf16.mxu0 0
      %1107 = vmatmul.mubr.bf16.gmra.mxu0 %v1017
      %v1108 = vpop.f32.mrf.mxu0
      %v1109 = vadd.f32 %v796, %v1108
      %v1110 = vpop.f32.mrf.mxu0
      %v1111 = vpop.f32.mrf.mxu0
      %v1112 = vadd.f32 %v799, %v1111
      %v1113 = vpop.f32.mrf.mxu0
      %1114 = vmatprep.mubr.bf16.mxu0 0
      %1115 = vmatmul.mubr.bf16.gmra.mxu0 %v1020
      %v1116 = vpop.f32.mrf.mxu0
      %v1117 = vadd.f32 %v804, %v1116
      %v1118 = vpop.f32.mrf.mxu0
      %v1119 = vpop.f32.mrf.mxu0
      %v1120 = vadd.f32 %v807, %v1119
      %v1121 = vpop.f32.mrf.mxu0
      %1122 = vmatprep.mubr.bf16.mxu0 0
      %1123 = vmatmul.mubr.bf16.gmra.mxu0 %v1023
      %v1124 = vpop.f32.mrf.mxu0
      %v1125 = vadd.f32 %v812, %v1124
      %v1126 = vpop.f32.mrf.mxu0
      %v1127 = vpop.f32.mrf.mxu0
      %v1128 = vadd.f32 %v815, %v1127
      %v1129 = vpop.f32.mrf.mxu0
      %1130 = vmatprep.mubr.bf16.mxu0 0
      %1131 = vmatmul.mubr.bf16.gmra.mxu0 %v1026
      %v1132 = vpop.f32.mrf.mxu0
      %v1133 = vadd.f32 %v820, %v1132
      %v1134 = vpop.f32.mrf.mxu0
      %v1135 = vpop.f32.mrf.mxu0
      %v1136 = vadd.f32 %v823, %v1135
      %v1137 = vpop.f32.mrf.mxu0
      %1138 = vmatprep.mubr.bf16.mxu0 0
      %1139 = vmatmul.mubr.bf16.gmra.mxu0 %v1029
      %v1140 = vpop.f32.mrf.mxu0
      %v1141 = vadd.f32 %v828, %v1140
      %v1142 = vpop.f32.mrf.mxu0
      %v1143 = vpop.f32.mrf.mxu0
      %v1144 = vadd.f32 %v831, %v1143
      %v1145 = vpop.f32.mrf.mxu0
      %1146 = vmatprep.mubr.bf16.mxu0 0
      %1147 = vmatmul.mubr.bf16.gmra.mxu0 %v1032
      %v1148 = vpop.f32.mrf.mxu0
      %v1149 = vadd.f32 %v836, %v1148
      %v1150 = vpop.f32.mrf.mxu0
      %v1151 = vpop.f32.mrf.mxu0
      %v1152 = vadd.f32 %v839, %v1151
      %v1153 = vpop.f32.mrf.mxu0
      %1154 = vmatprep.mubr.bf16.mxu0 0
      %1155 = vmatmul.mubr.bf16.gmra.mxu0 %v1035
      %v1156 = vpop.f32.mrf.mxu0
      %v1157 = vadd.f32 %v844, %v1156
      %v1158 = vpop.f32.mrf.mxu0
      %v1159 = vpop.f32.mrf.mxu0
      %v1160 = vadd.f32 %v847, %v1159
      %v1161 = vpop.f32.mrf.mxu0
      %1162 = vmatprep.mubr.bf16.mxu0 0
      %1163 = vmatmul.mubr.bf16.gmra.mxu0 %v1038
      %v1164 = vpop.f32.mrf.mxu0
      %v1165 = vadd.f32 %v852, %v1164
      %v1166 = vpop.f32.mrf.mxu0
      %v1167 = vpop.f32.mrf.mxu0
      %v1168 = vadd.f32 %v855, %v1167
      %v1169 = vpop.f32.mrf.mxu0
      %1170 = vmatprep.mubr.bf16.mxu0 0
      %1171 = vmatmul.mubr.bf16.gmra.mxu0 %v1041
      %v1172 = vpop.f32.mrf.mxu0
      %v1173 = vadd.f32 %v860, %v1172
      %v1174 = vpop.f32.mrf.mxu0
      %v1175 = vpop.f32.mrf.mxu0
      %v1176 = vadd.f32 %v863, %v1175
      %v1177 = vpop.f32.mrf.mxu0
      %1178 = vmatprep.mubr.bf16.mxu0 0
      %1179 = vmatmul.mubr.bf16.gmra.mxu0 %v1044
      %v1180 = vpop.f32.mrf.mxu0
      %v1181 = vadd.f32 %v868, %v1180
      %v1182 = vpop.f32.mrf.mxu0
      %v1183 = vpop.f32.mrf.mxu0
      %v1184 = vadd.f32 %v871, %v1183
      %v1185 = vpop.f32.mrf.mxu0
      %1186 = vmatprep.mubr.bf16.mxu0 0
      %1187 = vmatmul.mubr.bf16.gmra.mxu0 %v1047
      %v1188 = vpop.f32.mrf.mxu0
      %v1189 = vadd.f32 %v876, %v1188
      %v1190 = vpop.f32.mrf.mxu0
      %v1191 = vpop.f32.mrf.mxu0
      %v1192 = vadd.f32 %v879, %v1191
      %v1193 = vpop.f32.mrf.mxu0
      %1194 = vmatprep.mubr.bf16.mxu0 0
      %1195 = vmatmul.mubr.bf16.gmra.mxu0 %v1050
      %v1196 = vpop.f32.mrf.mxu0
      %v1197 = vadd.f32 %v884, %v1196
      %v1198 = vpop.f32.mrf.mxu0
      %v1199 = vpop.f32.mrf.mxu0
      %v1200 = vadd.f32 %v887, %v1199
      %v1201 = vpop.f32.mrf.mxu0
      %1202 = vmatprep.mubr.bf16.mxu0 0
      %1203 = vmatmul.mubr.bf16.gmra.mxu0 %v1053
      %v1204 = vpop.f32.mrf.mxu0
      %v1205 = vadd.f32 %v892, %v1204
      %v1206 = vpop.f32.mrf.mxu0
      %v1207 = vpop.f32.mrf.mxu0
      %v1208 = vadd.f32 %v895, %v1207
      %v1209 = vpop.f32.mrf.mxu0
      %1210 = vmatprep.mubr.bf16.mxu0 0
      %1211 = vmatmul.mubr.bf16.gmra.mxu0 %v1056
      %v1212 = vpop.f32.mrf.mxu0
      %v1213 = vadd.f32 %v900, %v1212
      %v1214 = vpop.f32.mrf.mxu0
      %v1215 = vpop.f32.mrf.mxu0
      %v1216 = vadd.f32 %v903, %v1215
      %v1217 = vpop.f32.mrf.mxu0
      %1218 = vdwg.mxu0
      %v1219 = vld [vmem:[%s165] sm:$0xe]
      %v1220 = vld [vmem:[%s165 + $0xc] sm:$0xe]
      %v1221 = vld [vmem:[%s165 + $0x18] sm:$0xe]
      %v1222 = vld [vmem:[%s165 + $0x24] sm:$0xe]
      %v1223 = vld [vmem:[%s165 + $0x30] sm:$0xe]
      %v1224 = vld [vmem:[%s165 + $0x3c] sm:$0xe]
      %v1225 = vld [vmem:[%s165 + $0x48] sm:$0xe]
      %v1226 = vld [vmem:[%s165 + $0x54] sm:$0xe]
      %v1227 = vld [vmem:[%s165 + $0x60] sm:$0xe]
      %v1228 = vld [vmem:[%s165 + $0x6c] sm:$0xe]
      %v1229 = vld [vmem:[%s165 + $0x78] sm:$0xe]
      %v1230 = vld [vmem:[%s165 + $0x84] sm:$0xe]
      %v1231 = vld [vmem:[%s165 + $0x90] sm:$0xe]
      %v1232 = vld [vmem:[%s165 + $0x9c] sm:$0xe]
      %v1233 = vld [vmem:[%s165 + $0xa8] sm:$0xe]
      %v1234 = vld [vmem:[%s165 + $0xb4] sm:$0xe]
      %vm1267 = vcmask 1042432
      %vm1268 = vcmask 1046532
      %vm1269 = vmor %vm1267, %vm1268
      %v1270 = vrot.slane %v1219, 5
      %v1271 = vrot.slane %v1270, 4
      %v1272 = vrot.slane %v173, 5
      %v1273 = vsel %vm1269, %v1271, %v1272
      %v1274 = vrot.slane %v1272, 4
      %v1275 = vrot.slane %v212, 5
      %v1276 = vsel %vm1269, %v1274, %v1275
      %v1277 = vrot.slane %v1220, 5
      %v1278 = vrot.slane %v1277, 4
      %v1279 = vrot.slane %v175, 5
      %v1280 = vsel %vm1269, %v1278, %v1279
      %v1281 = vrot.slane %v1279, 4
      %v1282 = vrot.slane %v213, 5
      %v1283 = vsel %vm1269, %v1281, %v1282
      %v1284 = vrot.slane %v1221, 5
      %v1285 = vrot.slane %v1284, 4
      %v1286 = vrot.slane %v177, 5
      %v1287 = vsel %vm1269, %v1285, %v1286
      %v1288 = vrot.slane %v1286, 4
      %v1289 = vrot.slane %v214, 5
      %v1290 = vsel %vm1269, %v1288, %v1289
      %v1291 = vrot.slane %v1222, 5
      %v1292 = vrot.slane %v1291, 4
      %v1293 = vrot.slane %v179, 5
      %v1294 = vsel %vm1269, %v1292, %v1293
      %v1295 = vrot.slane %v1293, 4
      %v1296 = vrot.slane %v215, 5
      %v1297 = vsel %vm1269, %v1295, %v1296
      %v1298 = vrot.slane %v1223, 5
      %v1299 = vrot.slane %v1298, 4
      %v1300 = vrot.slane %v181, 5
      %v1301 = vsel %vm1269, %v1299, %v1300
      %v1302 = vrot.slane %v1300, 4
      %v1303 = vrot.slane %v216, 5
      %v1304 = vsel %vm1269, %v1302, %v1303
      %v1305 = vrot.slane %v1224, 5
      %v1306 = vrot.slane %v1305, 4
      %v1307 = vrot.slane %v183, 5
      %v1308 = vsel %vm1269, %v1306, %v1307
      %v1309 = vrot.slane %v1307, 4
      %v1310 = vrot.slane %v217, 5
      %v1311 = vsel %vm1269, %v1309, %v1310
      %v1312 = vrot.slane %v1225, 5
      %v1313 = vrot.slane %v1312, 4
      %v1314 = vrot.slane %v185, 5
      %v1315 = vsel %vm1269, %v1313, %v1314
      %v1316 = vrot.slane %v1314, 4
      %v1317 = vrot.slane %v218, 5
      %v1318 = vsel %vm1269, %v1316, %v1317
      %v1319 = vrot.slane %v1226, 5
      %v1320 = vrot.slane %v1319, 4
      %v1321 = vrot.slane %v187, 5
      %v1322 = vsel %vm1269, %v1320, %v1321
      %v1323 = vrot.slane %v1321, 4
      %v1324 = vrot.slane %v219, 5
      %v1325 = vsel %vm1269, %v1323, %v1324
      %v1326 = vrot.slane %v1227, 5
      %v1327 = vrot.slane %v1326, 4
      %v1328 = vrot.slane %v189, 5
      %v1329 = vsel %vm1269, %v1327, %v1328
      %v1330 = vrot.slane %v1328, 4
      %v1331 = vrot.slane %v220, 5
      %v1332 = vsel %vm1269, %v1330, %v1331
      %v1333 = vrot.slane %v1228, 5
      %v1334 = vrot.slane %v1333, 4
      %v1335 = vrot.slane %v191, 5
      %v1336 = vsel %vm1269, %v1334, %v1335
      %v1337 = vrot.slane %v1335, 4
      %v1338 = vrot.slane %v221, 5
      %v1339 = vsel %vm1269, %v1337, %v1338
      %v1340 = vrot.slane %v1229, 5
      %v1341 = vrot.slane %v1340, 4
      %v1342 = vrot.slane %v193, 5
      %v1343 = vsel %vm1269, %v1341, %v1342
      %v1344 = vrot.slane %v1342, 4
      %v1345 = vrot.slane %v222, 5
      %v1346 = vsel %vm1269, %v1344, %v1345
      %v1347 = vrot.slane %v1230, 5
      %v1348 = vrot.slane %v1347, 4
      %v1349 = vrot.slane %v195, 5
      %v1350 = vsel %vm1269, %v1348, %v1349
      %v1351 = vrot.slane %v1349, 4
      %v1352 = vrot.slane %v223, 5
      %v1353 = vsel %vm1269, %v1351, %v1352
      %v1354 = vrot.slane %v1231, 5
      %v1355 = vrot.slane %v1354, 4
      %v1356 = vrot.slane %v197, 5
      %v1357 = vsel %vm1269, %v1355, %v1356
      %v1358 = vrot.slane %v1356, 4
      %v1359 = vrot.slane %v224, 5
      %v1360 = vsel %vm1269, %v1358, %v1359
      %v1361 = vrot.slane %v1232, 5
      %v1362 = vrot.slane %v1361, 4
      %v1363 = vrot.slane %v199, 5
      %v1364 = vsel %vm1269, %v1362, %v1363
      %v1365 = vrot.slane %v1363, 4
      %v1366 = vrot.slane %v225, 5
      %v1367 = vsel %vm1269, %v1365, %v1366
      %v1368 = vrot.slane %v1233, 5
      %v1369 = vrot.slane %v1368, 4
      %v1370 = vrot.slane %v201, 5
      %v1371 = vsel %vm1269, %v1369, %v1370
      %v1372 = vrot.slane %v1370, 4
      %v1373 = vrot.slane %v226, 5
      %v1374 = vsel %vm1269, %v1372, %v1373
      %v1375 = vrot.slane %v1234, 5
      %v1376 = vrot.slane %v1375, 4
      %v1377 = vrot.slane %v203, 5
      %v1378 = vsel %vm1269, %v1376, %v1377
      %v1379 = vrot.slane %v1377, 4
      %v1380 = vrot.slane %v227, 5
      %v1381 = vsel %vm1269, %v1379, %v1380
      %s1382 = scalar_lea.vmem %s1, 64
      %v1383 = vld [vmem:[%s1382] sm:$0xf]
      %v1384 = vld [vmem:[%s1382 + $0x4] sm:$0xf]
      %v1385 = vld [vmem:[%s1382 + $0x8] sm:$0xf]
      %v1386 = vld [vmem:[%s1382 + $0xc] sm:$0xf]
      %v1387 = vld [vmem:[%s1382 + $0x10] sm:$0xf]
      %v1388 = vld [vmem:[%s1382 + $0x14] sm:$0xf]
      %v1389 = vld [vmem:[%s1382 + $0x18] sm:$0xf]
      %v1390 = vld [vmem:[%s1382 + $0x1c] sm:$0xf]
      %v1391 = vunpack.c.l.b16 %v1273
      %v1392 = vunpack.c.l.b16 %v1276
      %v1393 = vunpack.c.l.b16 %v1280
      %v1394 = vunpack.c.l.b16 %v1283
      %v1395 = vunpack.c.l.b16 %v1287
      %v1396 = vunpack.c.l.b16 %v1290
      %v1397 = vunpack.c.l.b16 %v1294
      %v1398 = vunpack.c.l.b16 %v1297
      %v1399 = vunpack.c.l.b16 %v1301
      %v1400 = vunpack.c.l.b16 %v1304
      %v1401 = vunpack.c.l.b16 %v1308
      %v1402 = vunpack.c.l.b16 %v1311
      %v1403 = vunpack.c.l.b16 %v1315
      %v1404 = vunpack.c.l.b16 %v1318
      %v1405 = vunpack.c.l.b16 %v1322
      %v1406 = vunpack.c.l.b16 %v1325
      %v1407 = vunpack.c.l.b16 %v1329
      %v1408 = vunpack.c.l.b16 %v1332
      %v1409 = vunpack.c.l.b16 %v1336
      %v1410 = vunpack.c.l.b16 %v1339
      %v1411 = vunpack.c.l.b16 %v1343
      %v1412 = vunpack.c.l.b16 %v1346
      %v1413 = vunpack.c.l.b16 %v1350
      %v1414 = vunpack.c.l.b16 %v1353
      %v1415 = vunpack.c.l.b16 %v1357
      %v1416 = vunpack.c.l.b16 %v1360
      %v1417 = vunpack.c.l.b16 %v1364
      %v1418 = vunpack.c.l.b16 %v1367
      %v1419 = vunpack.c.l.b16 %v1371
      %v1420 = vunpack.c.l.b16 %v1374
      %v1421 = vunpack.c.l.b16 %v1378
      %v1422 = vunpack.c.l.b16 %v1381
      %v1423 = vpack.c.b16 %v1392, %v1391
      %v1424 = vpack.c.b16 %v1394, %v1393
      %v1425 = vpack.c.b16 %v1396, %v1395
      %v1426 = vpack.c.b16 %v1398, %v1397
      %v1427 = vpack.c.b16 %v1400, %v1399
      %v1428 = vpack.c.b16 %v1402, %v1401
      %v1429 = vpack.c.b16 %v1404, %v1403
      %v1430 = vpack.c.b16 %v1406, %v1405
      %v1431 = vpack.c.b16 %v1408, %v1407
      %v1432 = vpack.c.b16 %v1410, %v1409
      %v1433 = vpack.c.b16 %v1412, %v1411
      %v1434 = vpack.c.b16 %v1414, %v1413
      %v1435 = vpack.c.b16 %v1416, %v1415
      %v1436 = vpack.c.b16 %v1418, %v1417
      %v1437 = vpack.c.b16 %v1420, %v1419
      %v1438 = vpack.c.b16 %v1422, %v1421
      %v1447 = vunpack.c.l.b16 %v1383
      %v1448 = vunpack.c.l.b16 %v1384
      %v1449 = vunpack.c.l.b16 %v1385
      %v1450 = vunpack.c.l.b16 %v1386
      %v1451 = vunpack.c.l.b16 %v1387
      %v1452 = vunpack.c.l.b16 %v1388
      %v1453 = vunpack.c.l.b16 %v1389
      %v1454 = vunpack.c.l.b16 %v1390
      %v1455 = vpack.c.b16 %v1448, %v1447
      %v1456 = vpack.c.b16 %v1450, %v1449
      %v1457 = vpack.c.b16 %v1452, %v1451
      %v1458 = vpack.c.b16 %v1454, %v1453
      %v1464 = vsel %vm696, %v1423, 0
      %v1467 = vsel %vm696, %v1424, 0
      %v1470 = vsel %vm696, %v1425, 0
      %v1473 = vsel %vm696, %v1426, 0
      %v1476 = vsel %vm696, %v1427, 0
      %v1479 = vsel %vm696, %v1428, 0
      %v1482 = vsel %vm696, %v1429, 0
      %v1485 = vsel %vm696, %v1430, 0
      %v1488 = vsel %vm696, %v1431, 0
      %v1491 = vsel %vm696, %v1432, 0
      %v1494 = vsel %vm696, %v1433, 0
      %v1497 = vsel %vm696, %v1434, 0
      %v1500 = vsel %vm696, %v1435, 0
      %v1503 = vsel %vm696, %v1436, 0
      %v1506 = vsel %vm696, %v1437, 0
      %v1509 = vsel %vm696, %v1438, 0
      %1511 = vmatprep.subr.bf16.mxu0 0
      %1512 = vmatpush1.bf16.msra.mxu0 0
      %1513 = vmatprep.subr.bf16.mxu0 0
      %1514 = vmatpush1.bf16.msra.mxu0 0
      %1515 = vmatprep.subr.bf16.mxu0 0
      %1516 = vmatpush1.bf16.msra.mxu0 0
      %1517 = vmatprep.subr.bf16.mxu0 0
      %1518 = vmatpush1.bf16.msra.mxu0 0
      %1519 = vmatprep.subr.bf16.mxu0 0
      %1520 = vmatpush1.bf16.msra.mxu0 %v1458
      %1521 = vmatprep.subr.bf16.mxu0 0
      %1522 = vmatpush1.bf16.msra.mxu0 %v1457
      %1523 = vmatprep.subr.bf16.mxu0 0
      %1524 = vmatpush1.bf16.msra.mxu0 %v1456
      %1525 = vmatprep.subr.bf16.mxu0 0
      %1526 = vmatpush1.bf16.msra.mxu0 %v1455
      %1527 = vmatprep.subr.bf16.mxu0 0
      %1528 = vmatpush2.bf16.msra.mxu0 0
      %1529 = vmatprep.subr.bf16.mxu0 0
      %1530 = vmatpush2.bf16.msra.mxu0 0
      %1531 = vmatprep.subr.bf16.mxu0 0
      %1532 = vmatpush2.bf16.msra.mxu0 0
      %1533 = vmatprep.subr.bf16.mxu0 0
      %1534 = vmatpush2.bf16.msra.mxu0 0
      %1535 = vmatprep.subr.bf16.mxu0 0
      %1536 = vmatpush2.bf16.msra.mxu0 0
      %1537 = vmatprep.subr.bf16.mxu0 0
      %1538 = vmatpush2.bf16.msra.mxu0 0
      %1539 = vmatprep.subr.bf16.mxu0 0
      %1540 = vmatpush2.bf16.msra.mxu0 0
      %1541 = vmatprep.subr.bf16.mxu0 0
      %1542 = vmatpush2.bf16.msra.mxu0 0
      %1543 = vmatprep.mubr.bf16.mxu0 0
      %1544 = vmatmul.mubr.bf16.gmra.mxu0 %v1464
      %v1545 = vpop.f32.mrf.mxu0
      %v1546 = vadd.f32 0.0, %v1545
      %v1547 = vpop.f32.mrf.mxu0
      %v1548 = vpop.f32.mrf.mxu0
      %v1549 = vadd.f32 0.0, %v1548
      %v1550 = vpop.f32.mrf.mxu0
      %1551 = vmatprep.mubr.bf16.mxu0 0
      %1552 = vmatmul.mubr.bf16.gmra.mxu0 %v1467
      %v1553 = vpop.f32.mrf.mxu0
      %v1554 = vadd.f32 0.0, %v1553
      %v1555 = vpop.f32.mrf.mxu0
      %v1556 = vpop.f32.mrf.mxu0
      %v1557 = vadd.f32 0.0, %v1556
      %v1558 = vpop.f32.mrf.mxu0
      %1559 = vmatprep.mubr.bf16.mxu0 0
      %1560 = vmatmul.mubr.bf16.gmra.mxu0 %v1470
      %v1561 = vpop.f32.mrf.mxu0
      %v1562 = vadd.f32 0.0, %v1561
      %v1563 = vpop.f32.mrf.mxu0
      %v1564 = vpop.f32.mrf.mxu0
      %v1565 = vadd.f32 0.0, %v1564
      %v1566 = vpop.f32.mrf.mxu0
      %1567 = vmatprep.mubr.bf16.mxu0 0
      %1568 = vmatmul.mubr.bf16.gmra.mxu0 %v1473
      %v1569 = vpop.f32.mrf.mxu0
      %v1570 = vadd.f32 0.0, %v1569
      %v1571 = vpop.f32.mrf.mxu0
      %v1572 = vpop.f32.mrf.mxu0
      %v1573 = vadd.f32 0.0, %v1572
      %v1574 = vpop.f32.mrf.mxu0
      %1575 = vmatprep.mubr.bf16.mxu0 0
      %1576 = vmatmul.mubr.bf16.gmra.mxu0 %v1476
      %v1577 = vpop.f32.mrf.mxu0
      %v1578 = vadd.f32 0.0, %v1577
      %v1579 = vpop.f32.mrf.mxu0
      %v1580 = vpop.f32.mrf.mxu0
      %v1581 = vadd.f32 0.0, %v1580
      %v1582 = vpop.f32.mrf.mxu0
      %1583 = vmatprep.mubr.bf16.mxu0 0
      %1584 = vmatmul.mubr.bf16.gmra.mxu0 %v1479
      %v1585 = vpop.f32.mrf.mxu0
      %v1586 = vadd.f32 0.0, %v1585
      %v1587 = vpop.f32.mrf.mxu0
      %v1588 = vpop.f32.mrf.mxu0
      %v1589 = vadd.f32 0.0, %v1588
      %v1590 = vpop.f32.mrf.mxu0
      %1591 = vmatprep.mubr.bf16.mxu0 0
      %1592 = vmatmul.mubr.bf16.gmra.mxu0 %v1482
      %v1593 = vpop.f32.mrf.mxu0
      %v1594 = vadd.f32 0.0, %v1593
      %v1595 = vpop.f32.mrf.mxu0
      %v1596 = vpop.f32.mrf.mxu0
      %v1597 = vadd.f32 0.0, %v1596
      %v1598 = vpop.f32.mrf.mxu0
      %1599 = vmatprep.mubr.bf16.mxu0 0
      %1600 = vmatmul.mubr.bf16.gmra.mxu0 %v1485
      %v1601 = vpop.f32.mrf.mxu0
      %v1602 = vadd.f32 0.0, %v1601
      %v1603 = vpop.f32.mrf.mxu0
      %v1604 = vpop.f32.mrf.mxu0
      %v1605 = vadd.f32 0.0, %v1604
      %v1606 = vpop.f32.mrf.mxu0
      %1607 = vmatprep.mubr.bf16.mxu0 0
      %1608 = vmatmul.mubr.bf16.gmra.mxu0 %v1488
      %v1609 = vpop.f32.mrf.mxu0
      %v1610 = vadd.f32 0.0, %v1609
      %v1611 = vpop.f32.mrf.mxu0
      %v1612 = vpop.f32.mrf.mxu0
      %v1613 = vadd.f32 0.0, %v1612
      %v1614 = vpop.f32.mrf.mxu0
      %1615 = vmatprep.mubr.bf16.mxu0 0
      %1616 = vmatmul.mubr.bf16.gmra.mxu0 %v1491
      %v1617 = vpop.f32.mrf.mxu0
      %v1618 = vadd.f32 0.0, %v1617
      %v1619 = vpop.f32.mrf.mxu0
      %v1620 = vpop.f32.mrf.mxu0
      %v1621 = vadd.f32 0.0, %v1620
      %v1622 = vpop.f32.mrf.mxu0
      %1623 = vmatprep.mubr.bf16.mxu0 0
      %1624 = vmatmul.mubr.bf16.gmra.mxu0 %v1494
      %v1625 = vpop.f32.mrf.mxu0
      %v1626 = vadd.f32 0.0, %v1625
      %v1627 = vpop.f32.mrf.mxu0
      %v1628 = vpop.f32.mrf.mxu0
      %v1629 = vadd.f32 0.0, %v1628
      %v1630 = vpop.f32.mrf.mxu0
      %1631 = vmatprep.mubr.bf16.mxu0 0
      %1632 = vmatmul.mubr.bf16.gmra.mxu0 %v1497
      %v1633 = vpop.f32.mrf.mxu0
      %v1634 = vadd.f32 0.0, %v1633
      %v1635 = vpop.f32.mrf.mxu0
      %v1636 = vpop.f32.mrf.mxu0
      %v1637 = vadd.f32 0.0, %v1636
      %v1638 = vpop.f32.mrf.mxu0
      %1639 = vmatprep.mubr.bf16.mxu0 0
      %1640 = vmatmul.mubr.bf16.gmra.mxu0 %v1500
      %v1641 = vpop.f32.mrf.mxu0
      %v1642 = vadd.f32 0.0, %v1641
      %v1643 = vpop.f32.mrf.mxu0
      %v1644 = vpop.f32.mrf.mxu0
      %v1645 = vadd.f32 0.0, %v1644
      %v1646 = vpop.f32.mrf.mxu0
      %1647 = vmatprep.mubr.bf16.mxu0 0
      %1648 = vmatmul.mubr.bf16.gmra.mxu0 %v1503
      %v1649 = vpop.f32.mrf.mxu0
      %v1650 = vadd.f32 0.0, %v1649
      %v1651 = vpop.f32.mrf.mxu0
      %v1652 = vpop.f32.mrf.mxu0
      %v1653 = vadd.f32 0.0, %v1652
      %v1654 = vpop.f32.mrf.mxu0
      %1655 = vmatprep.mubr.bf16.mxu0 0
      %1656 = vmatmul.mubr.bf16.gmra.mxu0 %v1506
      %v1657 = vpop.f32.mrf.mxu0
      %v1658 = vadd.f32 0.0, %v1657
      %v1659 = vpop.f32.mrf.mxu0
      %v1660 = vpop.f32.mrf.mxu0
      %v1661 = vadd.f32 0.0, %v1660
      %v1662 = vpop.f32.mrf.mxu0
      %1663 = vmatprep.mubr.bf16.mxu0 0
      %1664 = vmatmul.mubr.bf16.gmra.mxu0 %v1509
      %v1665 = vpop.f32.mrf.mxu0
      %v1666 = vadd.f32 0.0, %v1665
      %v1667 = vpop.f32.mrf.mxu0
      %v1668 = vpop.f32.mrf.mxu0
      %v1669 = vadd.f32 0.0, %v1668
      %v1670 = vpop.f32.mrf.mxu0
      %1671 = vdwg.mxu0
      %v1672 = vadd.f32 %v1093, %v1546
      %v1673 = vadd.f32 %v1096, %v1549
      %v1674 = vadd.f32 %v1101, %v1554
      %v1675 = vadd.f32 %v1104, %v1557
      %v1676 = vadd.f32 %v1109, %v1562
      %v1677 = vadd.f32 %v1112, %v1565
      %v1678 = vadd.f32 %v1117, %v1570
      %v1679 = vadd.f32 %v1120, %v1573
      %v1680 = vadd.f32 %v1125, %v1578
      %v1681 = vadd.f32 %v1128, %v1581
      %v1682 = vadd.f32 %v1133, %v1586
      %v1683 = vadd.f32 %v1136, %v1589
      %v1684 = vadd.f32 %v1141, %v1594
      %v1685 = vadd.f32 %v1144, %v1597
      %v1686 = vadd.f32 %v1149, %v1602
      %v1687 = vadd.f32 %v1152, %v1605
      %v1688 = vadd.f32 %v1157, %v1610
      %v1689 = vadd.f32 %v1160, %v1613
      %v1690 = vadd.f32 %v1165, %v1618
      %v1691 = vadd.f32 %v1168, %v1621
      %v1692 = vadd.f32 %v1173, %v1626
      %v1693 = vadd.f32 %v1176, %v1629
      %v1694 = vadd.f32 %v1181, %v1634
      %v1695 = vadd.f32 %v1184, %v1637
      %v1696 = vadd.f32 %v1189, %v1642
      %v1697 = vadd.f32 %v1192, %v1645
      %v1698 = vadd.f32 %v1197, %v1650
      %v1699 = vadd.f32 %v1200, %v1653
      %v1700 = vadd.f32 %v1205, %v1658
      %v1701 = vadd.f32 %v1208, %v1661
      %v1702 = vadd.f32 %v1213, %v1666
      %v1703 = vadd.f32 %v1216, %v1669
      %s1704 = scalar_lea.vmem %s165, 12
      %v1705 = vld [vmem:[%s1704] sm:$0xf]
      %v1706 = vld [vmem:[%s1704 + $0x4] sm:$0xf]
      %v1707 = vld [vmem:[%s1704 + $0xc] sm:$0xf]
      %v1708 = vld [vmem:[%s1704 + $0x10] sm:$0xf]
      %v1709 = vld [vmem:[%s1704 + $0x18] sm:$0xf]
      %v1710 = vld [vmem:[%s1704 + $0x1c] sm:$0xf]
      %v1711 = vld [vmem:[%s1704 + $0x24] sm:$0xf]
      %v1712 = vld [vmem:[%s1704 + $0x28] sm:$0xf]
      %v1713 = vld [vmem:[%s1704 + $0x30] sm:$0xf]
      %v1714 = vld [vmem:[%s1704 + $0x34] sm:$0xf]
      %v1715 = vld [vmem:[%s1704 + $0x3c] sm:$0xf]
      %v1716 = vld [vmem:[%s1704 + $0x40] sm:$0xf]
      %v1717 = vld [vmem:[%s1704 + $0x48] sm:$0xf]
      %v1718 = vld [vmem:[%s1704 + $0x4c] sm:$0xf]
      %v1719 = vld [vmem:[%s1704 + $0x54] sm:$0xf]
      %v1720 = vld [vmem:[%s1704 + $0x58] sm:$0xf]
      %v1721 = vld [vmem:[%s1704 + $0x60] sm:$0xf]
      %v1722 = vld [vmem:[%s1704 + $0x64] sm:$0xf]
      %v1723 = vld [vmem:[%s1704 + $0x6c] sm:$0xf]
      %v1724 = vld [vmem:[%s1704 + $0x70] sm:$0xf]
      %v1725 = vld [vmem:[%s1704 + $0x78] sm:$0xf]
      %v1726 = vld [vmem:[%s1704 + $0x7c] sm:$0xf]
      %v1727 = vld [vmem:[%s1704 + $0x84] sm:$0xf]
      %v1728 = vld [vmem:[%s1704 + $0x88] sm:$0xf]
      %v1729 = vld [vmem:[%s1704 + $0x90] sm:$0xf]
      %v1730 = vld [vmem:[%s1704 + $0x94] sm:$0xf]
      %v1731 = vld [vmem:[%s1704 + $0x9c] sm:$0xf]
      %v1732 = vld [vmem:[%s1704 + $0xa0] sm:$0xf]
      %v1733 = vld [vmem:[%s1704 + $0xa8] sm:$0xf]
      %v1734 = vld [vmem:[%s1704 + $0xac] sm:$0xf]
      %v1735 = vld [vmem:[%s1704 + $0xb4] sm:$0xf]
      %v1736 = vld [vmem:[%s1704 + $0xb8] sm:$0xf]
      %s1737 = scalar_lea.vmem %s1, 96
      %v1738 = vld [vmem:[%s1737] sm:$0xf]
      %v1739 = vld [vmem:[%s1737 + $0x4] sm:$0xf]
      %v1740 = vld [vmem:[%s1737 + $0x8] sm:$0xf]
      %v1741 = vld [vmem:[%s1737 + $0xc] sm:$0xf]
      %v1742 = vld [vmem:[%s1737 + $0x10] sm:$0xf]
      %v1743 = vld [vmem:[%s1737 + $0x14] sm:$0xf]
      %v1744 = vld [vmem:[%s1737 + $0x18] sm:$0xf]
      %v1745 = vld [vmem:[%s1737 + $0x1c] sm:$0xf]
      %v1778 = vunpack.c.l.b16 %v1705
      %v1779 = vunpack.c.l.b16 %v1706
      %v1780 = vunpack.c.l.b16 %v1707
      %v1781 = vunpack.c.l.b16 %v1708
      %v1782 = vunpack.c.l.b16 %v1709
      %v1783 = vunpack.c.l.b16 %v1710
      %v1784 = vunpack.c.l.b16 %v1711
      %v1785 = vunpack.c.l.b16 %v1712
      %v1786 = vunpack.c.l.b16 %v1713
      %v1787 = vunpack.c.l.b16 %v1714
      %v1788 = vunpack.c.l.b16 %v1715
      %v1789 = vunpack.c.l.b16 %v1716
      %v1790 = vunpack.c.l.b16 %v1717
      %v1791 = vunpack.c.l.b16 %v1718
      %v1792 = vunpack.c.l.b16 %v1719
      %v1793 = vunpack.c.l.b16 %v1720
      %v1794 = vunpack.c.l.b16 %v1721
      %v1795 = vunpack.c.l.b16 %v1722
      %v1796 = vunpack.c.l.b16 %v1723
      %v1797 = vunpack.c.l.b16 %v1724
      %v1798 = vunpack.c.l.b16 %v1725
      %v1799 = vunpack.c.l.b16 %v1726
      %v1800 = vunpack.c.l.b16 %v1727
      %v1801 = vunpack.c.l.b16 %v1728
      %v1802 = vunpack.c.l.b16 %v1729
      %v1803 = vunpack.c.l.b16 %v1730
      %v1804 = vunpack.c.l.b16 %v1731
      %v1805 = vunpack.c.l.b16 %v1732
      %v1806 = vunpack.c.l.b16 %v1733
      %v1807 = vunpack.c.l.b16 %v1734
      %v1808 = vunpack.c.l.b16 %v1735
      %v1809 = vunpack.c.l.b16 %v1736
      %v1810 = vpack.c.b16 %v1779, %v1778
      %v1811 = vpack.c.b16 %v1781, %v1780
      %v1812 = vpack.c.b16 %v1783, %v1782
      %v1813 = vpack.c.b16 %v1785, %v1784
      %v1814 = vpack.c.b16 %v1787, %v1786
      %v1815 = vpack.c.b16 %v1789, %v1788
      %v1816 = vpack.c.b16 %v1791, %v1790
      %v1817 = vpack.c.b16 %v1793, %v1792
      %v1818 = vpack.c.b16 %v1795, %v1794
      %v1819 = vpack.c.b16 %v1797, %v1796
      %v1820 = vpack.c.b16 %v1799, %v1798
      %v1821 = vpack.c.b16 %v1801, %v1800
      %v1822 = vpack.c.b16 %v1803, %v1802
      %v1823 = vpack.c.b16 %v1805, %v1804
      %v1824 = vpack.c.b16 %v1807, %v1806
      %v1825 = vpack.c.b16 %v1809, %v1808
      %v1834 = vunpack.c.l.b16 %v1738
      %v1835 = vunpack.c.l.b16 %v1739
      %v1836 = vunpack.c.l.b16 %v1740
      %v1837 = vunpack.c.l.b16 %v1741
      %v1838 = vunpack.c.l.b16 %v1742
      %v1839 = vunpack.c.l.b16 %v1743
      %v1840 = vunpack.c.l.b16 %v1744
      %v1841 = vunpack.c.l.b16 %v1745
      %v1842 = vpack.c.b16 %v1835, %v1834
      %v1843 = vpack.c.b16 %v1837, %v1836
      %v1844 = vpack.c.b16 %v1839, %v1838
      %v1845 = vpack.c.b16 %v1841, %v1840
      %v1851 = vsel %vm696, %v1810, 0
      %v1854 = vsel %vm696, %v1811, 0
      %v1857 = vsel %vm696, %v1812, 0
      %v1860 = vsel %vm696, %v1813, 0
      %v1863 = vsel %vm696, %v1814, 0
      %v1866 = vsel %vm696, %v1815, 0
      %v1869 = vsel %vm696, %v1816, 0
      %v1872 = vsel %vm696, %v1817, 0
      %v1875 = vsel %vm696, %v1818, 0
      %v1878 = vsel %vm696, %v1819, 0
      %v1881 = vsel %vm696, %v1820, 0
      %v1884 = vsel %vm696, %v1821, 0
      %v1887 = vsel %vm696, %v1822, 0
      %v1890 = vsel %vm696, %v1823, 0
      %v1893 = vsel %vm696, %v1824, 0
      %v1896 = vsel %vm696, %v1825, 0
      %1898 = vmatprep.subr.bf16.mxu0 0
      %1899 = vmatpush1.bf16.msra.mxu0 0
      %1900 = vmatprep.subr.bf16.mxu0 0
      %1901 = vmatpush1.bf16.msra.mxu0 0
      %1902 = vmatprep.subr.bf16.mxu0 0
      %1903 = vmatpush1.bf16.msra.mxu0 0
      %1904 = vmatprep.subr.bf16.mxu0 0
      %1905 = vmatpush1.bf16.msra.mxu0 0
      %1906 = vmatprep.subr.bf16.mxu0 0
      %1907 = vmatpush1.bf16.msra.mxu0 %v1845
      %1908 = vmatprep.subr.bf16.mxu0 0
      %1909 = vmatpush1.bf16.msra.mxu0 %v1844
      %1910 = vmatprep.subr.bf16.mxu0 0
      %1911 = vmatpush1.bf16.msra.mxu0 %v1843
      %1912 = vmatprep.subr.bf16.mxu0 0
      %1913 = vmatpush1.bf16.msra.mxu0 %v1842
      %1914 = vmatprep.subr.bf16.mxu0 0
      %1915 = vmatpush2.bf16.msra.mxu0 0
      %1916 = vmatprep.subr.bf16.mxu0 0
      %1917 = vmatpush2.bf16.msra.mxu0 0
      %1918 = vmatprep.subr.bf16.mxu0 0
      %1919 = vmatpush2.bf16.msra.mxu0 0
      %1920 = vmatprep.subr.bf16.mxu0 0
      %1921 = vmatpush2.bf16.msra.mxu0 0
      %1922 = vmatprep.subr.bf16.mxu0 0
      %1923 = vmatpush2.bf16.msra.mxu0 0
      %1924 = vmatprep.subr.bf16.mxu0 0
      %1925 = vmatpush2.bf16.msra.mxu0 0
      %1926 = vmatprep.subr.bf16.mxu0 0
      %1927 = vmatpush2.bf16.msra.mxu0 0
      %1928 = vmatprep.subr.bf16.mxu0 0
      %1929 = vmatpush2.bf16.msra.mxu0 0
      %1930 = vmatprep.mubr.bf16.mxu0 0
      %1931 = vmatmul.mubr.bf16.gmra.mxu0 %v1851
      %v1932 = vpop.f32.mrf.mxu0
      %v1933 = vadd.f32 0.0, %v1932
      %v1934 = vpop.f32.mrf.mxu0
      %v1935 = vpop.f32.mrf.mxu0
      %v1936 = vadd.f32 0.0, %v1935
      %v1937 = vpop.f32.mrf.mxu0
      %1938 = vmatprep.mubr.bf16.mxu0 0
      %1939 = vmatmul.mubr.bf16.gmra.mxu0 %v1854
      %v1940 = vpop.f32.mrf.mxu0
      %v1941 = vadd.f32 0.0, %v1940
      %v1942 = vpop.f32.mrf.mxu0
      %v1943 = vpop.f32.mrf.mxu0
      %v1944 = vadd.f32 0.0, %v1943
      %v1945 = vpop.f32.mrf.mxu0
      %1946 = vmatprep.mubr.bf16.mxu0 0
      %1947 = vmatmul.mubr.bf16.gmra.mxu0 %v1857
      %v1948 = vpop.f32.mrf.mxu0
      %v1949 = vadd.f32 0.0, %v1948
      %v1950 = vpop.f32.mrf.mxu0
      %v1951 = vpop.f32.mrf.mxu0
      %v1952 = vadd.f32 0.0, %v1951
      %v1953 = vpop.f32.mrf.mxu0
      %1954 = vmatprep.mubr.bf16.mxu0 0
      %1955 = vmatmul.mubr.bf16.gmra.mxu0 %v1860
      %v1956 = vpop.f32.mrf.mxu0
      %v1957 = vadd.f32 0.0, %v1956
      %v1958 = vpop.f32.mrf.mxu0
      %v1959 = vpop.f32.mrf.mxu0
      %v1960 = vadd.f32 0.0, %v1959
      %v1961 = vpop.f32.mrf.mxu0
      %1962 = vmatprep.mubr.bf16.mxu0 0
      %1963 = vmatmul.mubr.bf16.gmra.mxu0 %v1863
      %v1964 = vpop.f32.mrf.mxu0
      %v1965 = vadd.f32 0.0, %v1964
      %v1966 = vpop.f32.mrf.mxu0
      %v1967 = vpop.f32.mrf.mxu0
      %v1968 = vadd.f32 0.0, %v1967
      %v1969 = vpop.f32.mrf.mxu0
      %1970 = vmatprep.mubr.bf16.mxu0 0
      %1971 = vmatmul.mubr.bf16.gmra.mxu0 %v1866
      %v1972 = vpop.f32.mrf.mxu0
      %v1973 = vadd.f32 0.0, %v1972
      %v1974 = vpop.f32.mrf.mxu0
      %v1975 = vpop.f32.mrf.mxu0
      %v1976 = vadd.f32 0.0, %v1975
      %v1977 = vpop.f32.mrf.mxu0
      %1978 = vmatprep.mubr.bf16.mxu0 0
      %1979 = vmatmul.mubr.bf16.gmra.mxu0 %v1869
      %v1980 = vpop.f32.mrf.mxu0
      %v1981 = vadd.f32 0.0, %v1980
      %v1982 = vpop.f32.mrf.mxu0
      %v1983 = vpop.f32.mrf.mxu0
      %v1984 = vadd.f32 0.0, %v1983
      %v1985 = vpop.f32.mrf.mxu0
      %1986 = vmatprep.mubr.bf16.mxu0 0
      %1987 = vmatmul.mubr.bf16.gmra.mxu0 %v1872
      %v1988 = vpop.f32.mrf.mxu0
      %v1989 = vadd.f32 0.0, %v1988
      %v1990 = vpop.f32.mrf.mxu0
      %v1991 = vpop.f32.mrf.mxu0
      %v1992 = vadd.f32 0.0, %v1991
      %v1993 = vpop.f32.mrf.mxu0
      %1994 = vmatprep.mubr.bf16.mxu0 0
      %1995 = vmatmul.mubr.bf16.gmra.mxu0 %v1875
      %v1996 = vpop.f32.mrf.mxu0
      %v1997 = vadd.f32 0.0, %v1996
      %v1998 = vpop.f32.mrf.mxu0
      %v1999 = vpop.f32.mrf.mxu0
      %v2000 = vadd.f32 0.0, %v1999
      %v2001 = vpop.f32.mrf.mxu0
      %2002 = vmatprep.mubr.bf16.mxu0 0
      %2003 = vmatmul.mubr.bf16.gmra.mxu0 %v1878
      %v2004 = vpop.f32.mrf.mxu0
      %v2005 = vadd.f32 0.0, %v2004
      %v2006 = vpop.f32.mrf.mxu0
      %v2007 = vpop.f32.mrf.mxu0
      %v2008 = vadd.f32 0.0, %v2007
      %v2009 = vpop.f32.mrf.mxu0
      %2010 = vmatprep.mubr.bf16.mxu0 0
      %2011 = vmatmul.mubr.bf16.gmra.mxu0 %v1881
      %v2012 = vpop.f32.mrf.mxu0
      %v2013 = vadd.f32 0.0, %v2012
      %v2014 = vpop.f32.mrf.mxu0
      %v2015 = vpop.f32.mrf.mxu0
      %v2016 = vadd.f32 0.0, %v2015
      %v2017 = vpop.f32.mrf.mxu0
      %2018 = vmatprep.mubr.bf16.mxu0 0
      %2019 = vmatmul.mubr.bf16.gmra.mxu0 %v1884
      %v2020 = vpop.f32.mrf.mxu0
      %v2021 = vadd.f32 0.0, %v2020
      %v2022 = vpop.f32.mrf.mxu0
      %v2023 = vpop.f32.mrf.mxu0
      %v2024 = vadd.f32 0.0, %v2023
      %v2025 = vpop.f32.mrf.mxu0
      %2026 = vmatprep.mubr.bf16.mxu0 0
      %2027 = vmatmul.mubr.bf16.gmra.mxu0 %v1887
      %v2028 = vpop.f32.mrf.mxu0
      %v2029 = vadd.f32 0.0, %v2028
      %v2030 = vpop.f32.mrf.mxu0
      %v2031 = vpop.f32.mrf.mxu0
      %v2032 = vadd.f32 0.0, %v2031
      %v2033 = vpop.f32.mrf.mxu0
      %2034 = vmatprep.mubr.bf16.mxu0 0
      %2035 = vmatmul.mubr.bf16.gmra.mxu0 %v1890
      %v2036 = vpop.f32.mrf.mxu0
      %v2037 = vadd.f32 0.0, %v2036
      %v2038 = vpop.f32.mrf.mxu0
      %v2039 = vpop.f32.mrf.mxu0
      %v2040 = vadd.f32 0.0, %v2039
      %v2041 = vpop.f32.mrf.mxu0
      %2042 = vmatprep.mubr.bf16.mxu0 0
      %2043 = vmatmul.mubr.bf16.gmra.mxu0 %v1893
      %v2044 = vpop.f32.mrf.mxu0
      %v2045 = vadd.f32 0.0, %v2044
      %v2046 = vpop.f32.mrf.mxu0
      %v2047 = vpop.f32.mrf.mxu0
      %v2048 = vadd.f32 0.0, %v2047
      %v2049 = vpop.f32.mrf.mxu0
      %2050 = vmatprep.mubr.bf16.mxu0 0
      %2051 = vmatmul.mubr.bf16.gmra.mxu0 %v1896
      %v2052 = vpop.f32.mrf.mxu0
      %v2053 = vadd.f32 0.0, %v2052
      %v2054 = vpop.f32.mrf.mxu0
      %v2055 = vpop.f32.mrf.mxu0
      %v2056 = vadd.f32 0.0, %v2055
      %v2057 = vpop.f32.mrf.mxu0
      %2058 = vdwg.mxu0
      %v2059 = vadd.f32 %v1672, %v1933
      %v2060 = vadd.f32 %v1673, %v1936
      %v2061 = vadd.f32 %v1674, %v1941
      %v2062 = vadd.f32 %v1675, %v1944
      %v2063 = vadd.f32 %v1676, %v1949
      %v2064 = vadd.f32 %v1677, %v1952
      %v2065 = vadd.f32 %v1678, %v1957
      %v2066 = vadd.f32 %v1679, %v1960
      %v2067 = vadd.f32 %v1680, %v1965
      %v2068 = vadd.f32 %v1681, %v1968
      %v2069 = vadd.f32 %v1682, %v1973
      %v2070 = vadd.f32 %v1683, %v1976
      %v2071 = vadd.f32 %v1684, %v1981
      %v2072 = vadd.f32 %v1685, %v1984
      %v2073 = vadd.f32 %v1686, %v1989
      %v2074 = vadd.f32 %v1687, %v1992
      %v2075 = vadd.f32 %v1688, %v1997
      %v2076 = vadd.f32 %v1689, %v2000
      %v2077 = vadd.f32 %v1690, %v2005
      %v2078 = vadd.f32 %v1691, %v2008
      %v2079 = vadd.f32 %v1692, %v2013
      %v2080 = vadd.f32 %v1693, %v2016
      %v2081 = vadd.f32 %v1694, %v2021
      %v2082 = vadd.f32 %v1695, %v2024
      %v2083 = vadd.f32 %v1696, %v2029
      %v2084 = vadd.f32 %v1697, %v2032
      %v2085 = vadd.f32 %v1698, %v2037
      %v2086 = vadd.f32 %v1699, %v2040
      %v2087 = vadd.f32 %v1700, %v2045
      %v2088 = vadd.f32 %v1701, %v2048
      %v2089 = vadd.f32 %v1702, %v2053
      %v2090 = vadd.f32 %v1703, %v2056
      %v2091 = vld [vmem:[%s1704] sm:$0xf]
      %v2092 = vld [vmem:[%s1704 + $0x4] sm:$0xf]
      %v2093 = vld [vmem:[%s1704 + $0x8] sm:$0x1]
      %v2094 = vld [vmem:[%s1704 + $0xc] sm:$0xf]
      %v2095 = vld [vmem:[%s1704 + $0x10] sm:$0xf]
      %v2096 = vld [vmem:[%s1704 + $0x14] sm:$0x1]
      %v2097 = vld [vmem:[%s1704 + $0x18] sm:$0xf]
      %v2098 = vld [vmem:[%s1704 + $0x1c] sm:$0xf]
      %v2099 = vld [vmem:[%s1704 + $0x20] sm:$0x1]
      %v2100 = vld [vmem:[%s1704 + $0x24] sm:$0xf]
      %v2101 = vld [vmem:[%s1704 + $0x28] sm:$0xf]
      %v2102 = vld [vmem:[%s1704 + $0x2c] sm:$0x1]
      %v2103 = vld [vmem:[%s1704 + $0x30] sm:$0xf]
      %v2104 = vld [vmem:[%s1704 + $0x34] sm:$0xf]
      %v2105 = vld [vmem:[%s1704 + $0x38] sm:$0x1]
      %v2106 = vld [vmem:[%s1704 + $0x3c] sm:$0xf]
      %v2107 = vld [vmem:[%s1704 + $0x40] sm:$0xf]
      %v2108 = vld [vmem:[%s1704 + $0x44] sm:$0x1]
      %v2109 = vld [vmem:[%s1704 + $0x48] sm:$0xf]
      %v2110 = vld [vmem:[%s1704 + $0x4c] sm:$0xf]
      %v2111 = vld [vmem:[%s1704 + $0x50] sm:$0x1]
      %v2112 = vld [vmem:[%s1704 + $0x54] sm:$0xf]
      %v2113 = vld [vmem:[%s1704 + $0x58] sm:$0xf]
      %v2114 = vld [vmem:[%s1704 + $0x5c] sm:$0x1]
      %v2115 = vld [vmem:[%s1704 + $0x60] sm:$0xf]
      %v2116 = vld [vmem:[%s1704 + $0x64] sm:$0xf]
      %v2117 = vld [vmem:[%s1704 + $0x68] sm:$0x1]
      %v2118 = vld [vmem:[%s1704 + $0x6c] sm:$0xf]
      %v2119 = vld [vmem:[%s1704 + $0x70] sm:$0xf]
      %v2120 = vld [vmem:[%s1704 + $0x74] sm:$0x1]
      %v2121 = vld [vmem:[%s1704 + $0x78] sm:$0xf]
      %v2122 = vld [vmem:[%s1704 + $0x7c] sm:$0xf]
      %v2123 = vld [vmem:[%s1704 + $0x80] sm:$0x1]
      %v2124 = vld [vmem:[%s1704 + $0x84] sm:$0xf]
      %v2125 = vld [vmem:[%s1704 + $0x88] sm:$0xf]
      %v2126 = vld [vmem:[%s1704 + $0x8c] sm:$0x1]
      %v2127 = vld [vmem:[%s1704 + $0x90] sm:$0xf]
      %v2128 = vld [vmem:[%s1704 + $0x94] sm:$0xf]
      %v2129 = vld [vmem:[%s1704 + $0x98] sm:$0x1]
      %v2130 = vld [vmem:[%s1704 + $0x9c] sm:$0xf]
      %v2131 = vld [vmem:[%s1704 + $0xa0] sm:$0xf]
      %v2132 = vld [vmem:[%s1704 + $0xa4] sm:$0x1]
      %v2133 = vld [vmem:[%s1704 + $0xa8] sm:$0xf]
      %v2134 = vld [vmem:[%s1704 + $0xac] sm:$0xf]
      %v2135 = vld [vmem:[%s1704 + $0xb0] sm:$0x1]
      %v2136 = vld [vmem:[%s1704 + $0xb4] sm:$0xf]
      %v2137 = vld [vmem:[%s1704 + $0xb8] sm:$0xf]
      %v2138 = vld [vmem:[%s1704 + $0xbc] sm:$0x1]
      %v2140 = vshrl.u32 %v2091, 16
      %v2142 = vrot.slane %v2140, 4
      %v2143 = vshll.u32 %v2091, 16
      %v2145 = vrot.slane %v2143, 5
      %v2146 = vor.u32 %v2142, %v2145
      %v2147 = vrot.slane %v2146, 4
      %v2149 = vshll.u32 %v2092, 16
      %v2151 = vrot.slane %v2149, 5
      %v2152 = vsel %vm230, %v2147, %v2151
      %v2153 = vshrl.u32 %v2092, 16
      %v2155 = vrot.slane %v2153, 4
      %v2156 = vor.u32 %v2155, %v2151
      %v2157 = vrot.slane %v2156, 4
      %v2159 = vshll.u32 %v2093, 16
      %v2161 = vrot.slane %v2159, 5
      %v2162 = vsel %vm230, %v2157, %v2161
      %v2164 = vshrl.u32 %v2094, 16
      %v2166 = vrot.slane %v2164, 4
      %v2167 = vshll.u32 %v2094, 16
      %v2169 = vrot.slane %v2167, 5
      %v2170 = vor.u32 %v2166, %v2169
      %v2171 = vrot.slane %v2170, 4
      %v2173 = vshll.u32 %v2095, 16
      %v2175 = vrot.slane %v2173, 5
      %v2176 = vsel %vm230, %v2171, %v2175
      %v2177 = vshrl.u32 %v2095, 16
      %v2179 = vrot.slane %v2177, 4
      %v2180 = vor.u32 %v2179, %v2175
      %v2181 = vrot.slane %v2180, 4
      %v2183 = vshll.u32 %v2096, 16
      %v2185 = vrot.slane %v2183, 5
      %v2186 = vsel %vm230, %v2181, %v2185
      %v2188 = vshrl.u32 %v2097, 16
      %v2190 = vrot.slane %v2188, 4
      %v2191 = vshll.u32 %v2097, 16
      %v2193 = vrot.slane %v2191, 5
      %v2194 = vor.u32 %v2190, %v2193
      %v2195 = vrot.slane %v2194, 4
      %v2197 = vshll.u32 %v2098, 16
      %v2199 = vrot.slane %v2197, 5
      %v2200 = vsel %vm230, %v2195, %v2199
      %v2201 = vshrl.u32 %v2098, 16
      %v2203 = vrot.slane %v2201, 4
      %v2204 = vor.u32 %v2203, %v2199
      %v2205 = vrot.slane %v2204, 4
      %v2207 = vshll.u32 %v2099, 16
      %v2209 = vrot.slane %v2207, 5
      %v2210 = vsel %vm230, %v2205, %v2209
      %v2212 = vshrl.u32 %v2100, 16
      %v2214 = vrot.slane %v2212, 4
      %v2215 = vshll.u32 %v2100, 16
      %v2217 = vrot.slane %v2215, 5
      %v2218 = vor.u32 %v2214, %v2217
      %v2219 = vrot.slane %v2218, 4
      %v2221 = vshll.u32 %v2101, 16
      %v2223 = vrot.slane %v2221, 5
      %v2224 = vsel %vm230, %v2219, %v2223
      %v2225 = vshrl.u32 %v2101, 16
      %v2227 = vrot.slane %v2225, 4
      %v2228 = vor.u32 %v2227, %v2223
      %v2229 = vrot.slane %v2228, 4
      %v2231 = vshll.u32 %v2102, 16
      %v2233 = vrot.slane %v2231, 5
      %v2234 = vsel %vm230, %v2229, %v2233
      %v2236 = vshrl.u32 %v2103, 16
      %v2238 = vrot.slane %v2236, 4
      %v2239 = vshll.u32 %v2103, 16
      %v2241 = vrot.slane %v2239, 5
      %v2242 = vor.u32 %v2238, %v2241
      %v2243 = vrot.slane %v2242, 4
      %v2245 = vshll.u32 %v2104, 16
      %v2247 = vrot.slane %v2245, 5
      %v2248 = vsel %vm230, %v2243, %v2247
      %v2249 = vshrl.u32 %v2104, 16
      %v2251 = vrot.slane %v2249, 4
      %v2252 = vor.u32 %v2251, %v2247
      %v2253 = vrot.slane %v2252, 4
      %v2255 = vshll.u32 %v2105, 16
      %v2257 = vrot.slane %v2255, 5
      %v2258 = vsel %vm230, %v2253, %v2257
      %v2260 = vshrl.u32 %v2106, 16
      %v2262 = vrot.slane %v2260, 4
      %v2263 = vshll.u32 %v2106, 16
      %v2265 = vrot.slane %v2263, 5
      %v2266 = vor.u32 %v2262, %v2265
      %v2267 = vrot.slane %v2266, 4
      %v2269 = vshll.u32 %v2107, 16
      %v2271 = vrot.slane %v2269, 5
      %v2272 = vsel %vm230, %v2267, %v2271
      %v2273 = vshrl.u32 %v2107, 16
      %v2275 = vrot.slane %v2273, 4
      %v2276 = vor.u32 %v2275, %v2271
      %v2277 = vrot.slane %v2276, 4
      %v2279 = vshll.u32 %v2108, 16
      %v2281 = vrot.slane %v2279, 5
      %v2282 = vsel %vm230, %v2277, %v2281
      %v2284 = vshrl.u32 %v2109, 16
      %v2286 = vrot.slane %v2284, 4
      %v2287 = vshll.u32 %v2109, 16
      %v2289 = vrot.slane %v2287, 5
      %v2290 = vor.u32 %v2286, %v2289
      %v2291 = vrot.slane %v2290, 4
      %v2293 = vshll.u32 %v2110, 16
      %v2295 = vrot.slane %v2293, 5
      %v2296 = vsel %vm230, %v2291, %v2295
      %v2297 = vshrl.u32 %v2110, 16
      %v2299 = vrot.slane %v2297, 4
      %v2300 = vor.u32 %v2299, %v2295
      %v2301 = vrot.slane %v2300, 4
      %v2303 = vshll.u32 %v2111, 16
      %v2305 = vrot.slane %v2303, 5
      %v2306 = vsel %vm230, %v2301, %v2305
      %v2308 = vshrl.u32 %v2112, 16
      %v2310 = vrot.slane %v2308, 4
      %v2311 = vshll.u32 %v2112, 16
      %v2313 = vrot.slane %v2311, 5
      %v2314 = vor.u32 %v2310, %v2313
      %v2315 = vrot.slane %v2314, 4
      %v2317 = vshll.u32 %v2113, 16
      %v2319 = vrot.slane %v2317, 5
      %v2320 = vsel %vm230, %v2315, %v2319
      %v2321 = vshrl.u32 %v2113, 16
      %v2323 = vrot.slane %v2321, 4
      %v2324 = vor.u32 %v2323, %v2319
      %v2325 = vrot.slane %v2324, 4
      %v2327 = vshll.u32 %v2114, 16
      %v2329 = vrot.slane %v2327, 5
      %v2330 = vsel %vm230, %v2325, %v2329
      %v2332 = vshrl.u32 %v2115, 16
      %v2334 = vrot.slane %v2332, 4
      %v2335 = vshll.u32 %v2115, 16
      %v2337 = vrot.slane %v2335, 5
      %v2338 = vor.u32 %v2334, %v2337
      %v2339 = vrot.slane %v2338, 4
      %v2341 = vshll.u32 %v2116, 16
      %v2343 = vrot.slane %v2341, 5
      %v2344 = vsel %vm230, %v2339, %v2343
      %v2345 = vshrl.u32 %v2116, 16
      %v2347 = vrot.slane %v2345, 4
      %v2348 = vor.u32 %v2347, %v2343
      %v2349 = vrot.slane %v2348, 4
      %v2351 = vshll.u32 %v2117, 16
      %v2353 = vrot.slane %v2351, 5
      %v2354 = vsel %vm230, %v2349, %v2353
      %v2356 = vshrl.u32 %v2118, 16
      %v2358 = vrot.slane %v2356, 4
      %v2359 = vshll.u32 %v2118, 16
      %v2361 = vrot.slane %v2359, 5
      %v2362 = vor.u32 %v2358, %v2361
      %v2363 = vrot.slane %v2362, 4
      %v2365 = vshll.u32 %v2119, 16
      %v2367 = vrot.slane %v2365, 5
      %v2368 = vsel %vm230, %v2363, %v2367
      %v2369 = vshrl.u32 %v2119, 16
      %v2371 = vrot.slane %v2369, 4
      %v2372 = vor.u32 %v2371, %v2367
      %v2373 = vrot.slane %v2372, 4
      %v2375 = vshll.u32 %v2120, 16
      %v2377 = vrot.slane %v2375, 5
      %v2378 = vsel %vm230, %v2373, %v2377
      %v2380 = vshrl.u32 %v2121, 16
      %v2382 = vrot.slane %v2380, 4
      %v2383 = vshll.u32 %v2121, 16
      %v2385 = vrot.slane %v2383, 5
      %v2386 = vor.u32 %v2382, %v2385
      %v2387 = vrot.slane %v2386, 4
      %v2389 = vshll.u32 %v2122, 16
      %v2391 = vrot.slane %v2389, 5
      %v2392 = vsel %vm230, %v2387, %v2391
      %v2393 = vshrl.u32 %v2122, 16
      %v2395 = vrot.slane %v2393, 4
      %v2396 = vor.u32 %v2395, %v2391
      %v2397 = vrot.slane %v2396, 4
      %v2399 = vshll.u32 %v2123, 16
      %v2401 = vrot.slane %v2399, 5
      %v2402 = vsel %vm230, %v2397, %v2401
      %v2404 = vshrl.u32 %v2124, 16
      %v2406 = vrot.slane %v2404, 4
      %v2407 = vshll.u32 %v2124, 16
      %v2409 = vrot.slane %v2407, 5
      %v2410 = vor.u32 %v2406, %v2409
      %v2411 = vrot.slane %v2410, 4
      %v2413 = vshll.u32 %v2125, 16
      %v2415 = vrot.slane %v2413, 5
      %v2416 = vsel %vm230, %v2411, %v2415
      %v2417 = vshrl.u32 %v2125, 16
      %v2419 = vrot.slane %v2417, 4
      %v2420 = vor.u32 %v2419, %v2415
      %v2421 = vrot.slane %v2420, 4
      %v2423 = vshll.u32 %v2126, 16
      %v2425 = vrot.slane %v2423, 5
      %v2426 = vsel %vm230, %v2421, %v2425
      %v2428 = vshrl.u32 %v2127, 16
      %v2430 = vrot.slane %v2428, 4
      %v2431 = vshll.u32 %v2127, 16
      %v2433 = vrot.slane %v2431, 5
      %v2434 = vor.u32 %v2430, %v2433
      %v2435 = vrot.slane %v2434, 4
      %v2437 = vshll.u32 %v2128, 16
      %v2439 = vrot.slane %v2437, 5
      %v2440 = vsel %vm230, %v2435, %v2439
      %v2441 = vshrl.u32 %v2128, 16
      %v2443 = vrot.slane %v2441, 4
      %v2444 = vor.u32 %v2443, %v2439
      %v2445 = vrot.slane %v2444, 4
      %v2447 = vshll.u32 %v2129, 16
      %v2449 = vrot.slane %v2447, 5
      %v2450 = vsel %vm230, %v2445, %v2449
      %v2452 = vshrl.u32 %v2130, 16
      %v2454 = vrot.slane %v2452, 4
      %v2455 = vshll.u32 %v2130, 16
      %v2457 = vrot.slane %v2455, 5
      %v2458 = vor.u32 %v2454, %v2457
      %v2459 = vrot.slane %v2458, 4
      %v2461 = vshll.u32 %v2131, 16
      %v2463 = vrot.slane %v2461, 5
      %v2464 = vsel %vm230, %v2459, %v2463
      %v2465 = vshrl.u32 %v2131, 16
      %v2467 = vrot.slane %v2465, 4
      %v2468 = vor.u32 %v2467, %v2463
      %v2469 = vrot.slane %v2468, 4
      %v2471 = vshll.u32 %v2132, 16
      %v2473 = vrot.slane %v2471, 5
      %v2474 = vsel %vm230, %v2469, %v2473
      %v2476 = vshrl.u32 %v2133, 16
      %v2478 = vrot.slane %v2476, 4
      %v2479 = vshll.u32 %v2133, 16
      %v2481 = vrot.slane %v2479, 5
      %v2482 = vor.u32 %v2478, %v2481
      %v2483 = vrot.slane %v2482, 4
      %v2485 = vshll.u32 %v2134, 16
      %v2487 = vrot.slane %v2485, 5
      %v2488 = vsel %vm230, %v2483, %v2487
      %v2489 = vshrl.u32 %v2134, 16
      %v2491 = vrot.slane %v2489, 4
      %v2492 = vor.u32 %v2491, %v2487
      %v2493 = vrot.slane %v2492, 4
      %v2495 = vshll.u32 %v2135, 16
      %v2497 = vrot.slane %v2495, 5
      %v2498 = vsel %vm230, %v2493, %v2497
      %v2500 = vshrl.u32 %v2136, 16
      %v2502 = vrot.slane %v2500, 4
      %v2503 = vshll.u32 %v2136, 16
      %v2505 = vrot.slane %v2503, 5
      %v2506 = vor.u32 %v2502, %v2505
      %v2507 = vrot.slane %v2506, 4
      %v2509 = vshll.u32 %v2137, 16
      %v2511 = vrot.slane %v2509, 5
      %v2512 = vsel %vm230, %v2507, %v2511
      %v2513 = vshrl.u32 %v2137, 16
      %v2515 = vrot.slane %v2513, 4
      %v2516 = vor.u32 %v2515, %v2511
      %v2517 = vrot.slane %v2516, 4
      %v2519 = vshll.u32 %v2138, 16
      %v2521 = vrot.slane %v2519, 5
      %v2522 = vsel %vm230, %v2517, %v2521
      %s2523 = scalar_lea.vmem %s1, 128
      %v2524 = vld [vmem:[%s2523] sm:$0xf]
      %v2525 = vld [vmem:[%s2523 + $0x4] sm:$0xf]
      %v2526 = vld [vmem:[%s2523 + $0x8] sm:$0xf]
      %v2527 = vld [vmem:[%s2523 + $0xc] sm:$0xf]
      %v2528 = vld [vmem:[%s2523 + $0x10] sm:$0xf]
      %v2529 = vld [vmem:[%s2523 + $0x14] sm:$0xf]
      %v2530 = vld [vmem:[%s2523 + $0x18] sm:$0xf]
      %v2531 = vld [vmem:[%s2523 + $0x1c] sm:$0xf]
      %v2532 = vunpack.c.l.b16 %v2152
      %v2533 = vunpack.c.l.b16 %v2162
      %v2534 = vunpack.c.l.b16 %v2176
      %v2535 = vunpack.c.l.b16 %v2186
      %v2536 = vunpack.c.l.b16 %v2200
      %v2537 = vunpack.c.l.b16 %v2210
      %v2538 = vunpack.c.l.b16 %v2224
      %v2539 = vunpack.c.l.b16 %v2234
      %v2540 = vunpack.c.l.b16 %v2248
      %v2541 = vunpack.c.l.b16 %v2258
      %v2542 = vunpack.c.l.b16 %v2272
      %v2543 = vunpack.c.l.b16 %v2282
      %v2544 = vunpack.c.l.b16 %v2296
      %v2545 = vunpack.c.l.b16 %v2306
      %v2546 = vunpack.c.l.b16 %v2320
      %v2547 = vunpack.c.l.b16 %v2330
      %v2548 = vunpack.c.l.b16 %v2344
      %v2549 = vunpack.c.l.b16 %v2354
      %v2550 = vunpack.c.l.b16 %v2368
      %v2551 = vunpack.c.l.b16 %v2378
      %v2552 = vunpack.c.l.b16 %v2392
      %v2553 = vunpack.c.l.b16 %v2402
      %v2554 = vunpack.c.l.b16 %v2416
      %v2555 = vunpack.c.l.b16 %v2426
      %v2556 = vunpack.c.l.b16 %v2440
      %v2557 = vunpack.c.l.b16 %v2450
      %v2558 = vunpack.c.l.b16 %v2464
      %v2559 = vunpack.c.l.b16 %v2474
      %v2560 = vunpack.c.l.b16 %v2488
      %v2561 = vunpack.c.l.b16 %v2498
      %v2562 = vunpack.c.l.b16 %v2512
      %v2563 = vunpack.c.l.b16 %v2522
      %v2564 = vpack.c.b16 %v2533, %v2532
      %v2565 = vpack.c.b16 %v2535, %v2534
      %v2566 = vpack.c.b16 %v2537, %v2536
      %v2567 = vpack.c.b16 %v2539, %v2538
      %v2568 = vpack.c.b16 %v2541, %v2540
      %v2569 = vpack.c.b16 %v2543, %v2542
      %v2570 = vpack.c.b16 %v2545, %v2544
      %v2571 = vpack.c.b16 %v2547, %v2546
      %v2572 = vpack.c.b16 %v2549, %v2548
      %v2573 = vpack.c.b16 %v2551, %v2550
      %v2574 = vpack.c.b16 %v2553, %v2552
      %v2575 = vpack.c.b16 %v2555, %v2554
      %v2576 = vpack.c.b16 %v2557, %v2556
      %v2577 = vpack.c.b16 %v2559, %v2558
      %v2578 = vpack.c.b16 %v2561, %v2560
      %v2579 = vpack.c.b16 %v2563, %v2562
      %v2588 = vunpack.c.l.b16 %v2524
      %v2589 = vunpack.c.l.b16 %v2525
      %v2590 = vunpack.c.l.b16 %v2526
      %v2591 = vunpack.c.l.b16 %v2527
      %v2592 = vunpack.c.l.b16 %v2528
      %v2593 = vunpack.c.l.b16 %v2529
      %v2594 = vunpack.c.l.b16 %v2530
      %v2595 = vunpack.c.l.b16 %v2531
      %v2596 = vpack.c.b16 %v2589, %v2588
      %v2597 = vpack.c.b16 %v2591, %v2590
      %v2598 = vpack.c.b16 %v2593, %v2592
      %v2599 = vpack.c.b16 %v2595, %v2594
      %v2605 = vsel %vm696, %v2564, 0
      %v2608 = vsel %vm696, %v2565, 0
      %v2611 = vsel %vm696, %v2566, 0
      %v2614 = vsel %vm696, %v2567, 0
      %v2617 = vsel %vm696, %v2568, 0
      %v2620 = vsel %vm696, %v2569, 0
      %v2623 = vsel %vm696, %v2570, 0
      %v2626 = vsel %vm696, %v2571, 0
      %v2629 = vsel %vm696, %v2572, 0
      %v2632 = vsel %vm696, %v2573, 0
      %v2635 = vsel %vm696, %v2574, 0
      %v2638 = vsel %vm696, %v2575, 0
      %v2641 = vsel %vm696, %v2576, 0
      %v2644 = vsel %vm696, %v2577, 0
      %v2647 = vsel %vm696, %v2578, 0
      %v2650 = vsel %vm696, %v2579, 0
      %2652 = vmatprep.subr.bf16.mxu0 0
      %2653 = vmatpush1.bf16.msra.mxu0 0
      %2654 = vmatprep.subr.bf16.mxu0 0
      %2655 = vmatpush1.bf16.msra.mxu0 0
      %2656 = vmatprep.subr.bf16.mxu0 0
      %2657 = vmatpush1.bf16.msra.mxu0 0
      %2658 = vmatprep.subr.bf16.mxu0 0
      %2659 = vmatpush1.bf16.msra.mxu0 0
      %2660 = vmatprep.subr.bf16.mxu0 0
      %2661 = vmatpush1.bf16.msra.mxu0 %v2599
      %2662 = vmatprep.subr.bf16.mxu0 0
      %2663 = vmatpush1.bf16.msra.mxu0 %v2598
      %2664 = vmatprep.subr.bf16.mxu0 0
      %2665 = vmatpush1.bf16.msra.mxu0 %v2597
      %2666 = vmatprep.subr.bf16.mxu0 0
      %2667 = vmatpush1.bf16.msra.mxu0 %v2596
      %2668 = vmatprep.subr.bf16.mxu0 0
      %2669 = vmatpush2.bf16.msra.mxu0 0
      %2670 = vmatprep.subr.bf16.mxu0 0
      %2671 = vmatpush2.bf16.msra.mxu0 0
      %2672 = vmatprep.subr.bf16.mxu0 0
      %2673 = vmatpush2.bf16.msra.mxu0 0
      %2674 = vmatprep.subr.bf16.mxu0 0
      %2675 = vmatpush2.bf16.msra.mxu0 0
      %2676 = vmatprep.subr.bf16.mxu0 0
      %2677 = vmatpush2.bf16.msra.mxu0 0
      %2678 = vmatprep.subr.bf16.mxu0 0
      %2679 = vmatpush2.bf16.msra.mxu0 0
      %2680 = vmatprep.subr.bf16.mxu0 0
      %2681 = vmatpush2.bf16.msra.mxu0 0
      %2682 = vmatprep.subr.bf16.mxu0 0
      %2683 = vmatpush2.bf16.msra.mxu0 0
      %2684 = vmatprep.mubr.bf16.mxu0 0
      %2685 = vmatmul.mubr.bf16.gmra.mxu0 %v2605
      %v2686 = vpop.f32.mrf.mxu0
      %v2687 = vadd.f32 0.0, %v2686
      %v2688 = vpop.f32.mrf.mxu0
      %v2689 = vpop.f32.mrf.mxu0
      %v2690 = vadd.f32 0.0, %v2689
      %v2691 = vpop.f32.mrf.mxu0
      %2692 = vmatprep.mubr.bf16.mxu0 0
      %2693 = vmatmul.mubr.bf16.gmra.mxu0 %v2608
      %v2694 = vpop.f32.mrf.mxu0
      %v2695 = vadd.f32 0.0, %v2694
      %v2696 = vpop.f32.mrf.mxu0
      %v2697 = vpop.f32.mrf.mxu0
      %v2698 = vadd.f32 0.0, %v2697
      %v2699 = vpop.f32.mrf.mxu0
      %2700 = vmatprep.mubr.bf16.mxu0 0
      %2701 = vmatmul.mubr.bf16.gmra.mxu0 %v2611
      %v2702 = vpop.f32.mrf.mxu0
      %v2703 = vadd.f32 0.0, %v2702
      %v2704 = vpop.f32.mrf.mxu0
      %v2705 = vpop.f32.mrf.mxu0
      %v2706 = vadd.f32 0.0, %v2705
      %v2707 = vpop.f32.mrf.mxu0
      %2708 = vmatprep.mubr.bf16.mxu0 0
      %2709 = vmatmul.mubr.bf16.gmra.mxu0 %v2614
      %v2710 = vpop.f32.mrf.mxu0
      %v2711 = vadd.f32 0.0, %v2710
      %v2712 = vpop.f32.mrf.mxu0
      %v2713 = vpop.f32.mrf.mxu0
      %v2714 = vadd.f32 0.0, %v2713
      %v2715 = vpop.f32.mrf.mxu0
      %2716 = vmatprep.mubr.bf16.mxu0 0
      %2717 = vmatmul.mubr.bf16.gmra.mxu0 %v2617
      %v2718 = vpop.f32.mrf.mxu0
      %v2719 = vadd.f32 0.0, %v2718
      %v2720 = vpop.f32.mrf.mxu0
      %v2721 = vpop.f32.mrf.mxu0
      %v2722 = vadd.f32 0.0, %v2721
      %v2723 = vpop.f32.mrf.mxu0
      %2724 = vmatprep.mubr.bf16.mxu0 0
      %2725 = vmatmul.mubr.bf16.gmra.mxu0 %v2620
      %v2726 = vpop.f32.mrf.mxu0
      %v2727 = vadd.f32 0.0, %v2726
      %v2728 = vpop.f32.mrf.mxu0
      %v2729 = vpop.f32.mrf.mxu0
      %v2730 = vadd.f32 0.0, %v2729
      %v2731 = vpop.f32.mrf.mxu0
      %2732 = vmatprep.mubr.bf16.mxu0 0
      %2733 = vmatmul.mubr.bf16.gmra.mxu0 %v2623
      %v2734 = vpop.f32.mrf.mxu0
      %v2735 = vadd.f32 0.0, %v2734
      %v2736 = vpop.f32.mrf.mxu0
      %v2737 = vpop.f32.mrf.mxu0
      %v2738 = vadd.f32 0.0, %v2737
      %v2739 = vpop.f32.mrf.mxu0
      %2740 = vmatprep.mubr.bf16.mxu0 0
      %2741 = vmatmul.mubr.bf16.gmra.mxu0 %v2626
      %v2742 = vpop.f32.mrf.mxu0
      %v2743 = vadd.f32 0.0, %v2742
      %v2744 = vpop.f32.mrf.mxu0
      %v2745 = vpop.f32.mrf.mxu0
      %v2746 = vadd.f32 0.0, %v2745
      %v2747 = vpop.f32.mrf.mxu0
      %2748 = vmatprep.mubr.bf16.mxu0 0
      %2749 = vmatmul.mubr.bf16.gmra.mxu0 %v2629
      %v2750 = vpop.f32.mrf.mxu0
      %v2751 = vadd.f32 0.0, %v2750
      %v2752 = vpop.f32.mrf.mxu0
      %v2753 = vpop.f32.mrf.mxu0
      %v2754 = vadd.f32 0.0, %v2753
      %v2755 = vpop.f32.mrf.mxu0
      %2756 = vmatprep.mubr.bf16.mxu0 0
      %2757 = vmatmul.mubr.bf16.gmra.mxu0 %v2632
      %v2758 = vpop.f32.mrf.mxu0
      %v2759 = vadd.f32 0.0, %v2758
      %v2760 = vpop.f32.mrf.mxu0
      %v2761 = vpop.f32.mrf.mxu0
      %v2762 = vadd.f32 0.0, %v2761
      %v2763 = vpop.f32.mrf.mxu0
      %2764 = vmatprep.mubr.bf16.mxu0 0
      %2765 = vmatmul.mubr.bf16.gmra.mxu0 %v2635
      %v2766 = vpop.f32.mrf.mxu0
      %v2767 = vadd.f32 0.0, %v2766
      %v2768 = vpop.f32.mrf.mxu0
      %v2769 = vpop.f32.mrf.mxu0
      %v2770 = vadd.f32 0.0, %v2769
      %v2771 = vpop.f32.mrf.mxu0
      %2772 = vmatprep.mubr.bf16.mxu0 0
      %2773 = vmatmul.mubr.bf16.gmra.mxu0 %v2638
      %v2774 = vpop.f32.mrf.mxu0
      %v2775 = vadd.f32 0.0, %v2774
      %v2776 = vpop.f32.mrf.mxu0
      %v2777 = vpop.f32.mrf.mxu0
      %v2778 = vadd.f32 0.0, %v2777
      %v2779 = vpop.f32.mrf.mxu0
      %2780 = vmatprep.mubr.bf16.mxu0 0
      %2781 = vmatmul.mubr.bf16.gmra.mxu0 %v2641
      %v2782 = vpop.f32.mrf.mxu0
      %v2783 = vadd.f32 0.0, %v2782
      %v2784 = vpop.f32.mrf.mxu0
      %v2785 = vpop.f32.mrf.mxu0
      %v2786 = vadd.f32 0.0, %v2785
      %v2787 = vpop.f32.mrf.mxu0
      %2788 = vmatprep.mubr.bf16.mxu0 0
      %2789 = vmatmul.mubr.bf16.gmra.mxu0 %v2644
      %v2790 = vpop.f32.mrf.mxu0
      %v2791 = vadd.f32 0.0, %v2790
      %v2792 = vpop.f32.mrf.mxu0
      %v2793 = vpop.f32.mrf.mxu0
      %v2794 = vadd.f32 0.0, %v2793
      %v2795 = vpop.f32.mrf.mxu0
      %2796 = vmatprep.mubr.bf16.mxu0 0
      %2797 = vmatmul.mubr.bf16.gmra.mxu0 %v2647
      %v2798 = vpop.f32.mrf.mxu0
      %v2799 = vadd.f32 0.0, %v2798
      %v2800 = vpop.f32.mrf.mxu0
      %v2801 = vpop.f32.mrf.mxu0
      %v2802 = vadd.f32 0.0, %v2801
      %v2803 = vpop.f32.mrf.mxu0
      %2804 = vmatprep.mubr.bf16.mxu0 0
      %2805 = vmatmul.mubr.bf16.gmra.mxu0 %v2650
      %v2806 = vpop.f32.mrf.mxu0
      %v2807 = vadd.f32 0.0, %v2806
      %v2808 = vpop.f32.mrf.mxu0
      %v2809 = vpop.f32.mrf.mxu0
      %v2810 = vadd.f32 0.0, %v2809
      %v2811 = vpop.f32.mrf.mxu0
      %2812 = vdwg.mxu0
      %v2813 = vadd.f32 %v2059, %v2687
      %v2814 = vadd.f32 %v2060, %v2690
      %v2815 = vadd.f32 %v2061, %v2695
      %v2816 = vadd.f32 %v2062, %v2698
      %v2817 = vadd.f32 %v2063, %v2703
      %v2818 = vadd.f32 %v2064, %v2706
      %v2819 = vadd.f32 %v2065, %v2711
      %v2820 = vadd.f32 %v2066, %v2714
      %v2821 = vadd.f32 %v2067, %v2719
      %v2822 = vadd.f32 %v2068, %v2722
      %v2823 = vadd.f32 %v2069, %v2727
      %v2824 = vadd.f32 %v2070, %v2730
      %v2825 = vadd.f32 %v2071, %v2735
      %v2826 = vadd.f32 %v2072, %v2738
      %v2827 = vadd.f32 %v2073, %v2743
      %v2828 = vadd.f32 %v2074, %v2746
      %v2829 = vadd.f32 %v2075, %v2751
      %v2830 = vadd.f32 %v2076, %v2754
      %v2831 = vadd.f32 %v2077, %v2759
      %v2832 = vadd.f32 %v2078, %v2762
      %v2833 = vadd.f32 %v2079, %v2767
      %v2834 = vadd.f32 %v2080, %v2770
      %v2835 = vadd.f32 %v2081, %v2775
      %v2836 = vadd.f32 %v2082, %v2778
      %v2837 = vadd.f32 %v2083, %v2783
      %v2838 = vadd.f32 %v2084, %v2786
      %v2839 = vadd.f32 %v2085, %v2791
      %v2840 = vadd.f32 %v2086, %v2794
      %v2841 = vadd.f32 %v2087, %v2799
      %v2842 = vadd.f32 %v2088, %v2802
      %v2843 = vadd.f32 %v2089, %v2807
      %v2844 = vadd.f32 %v2090, %v2810
      %v2845 = vld [vmem:[%s1704] sm:$0xe]
      %v2846 = vld [vmem:[%s1704 + $0xc] sm:$0xe]
      %v2847 = vld [vmem:[%s1704 + $0x18] sm:$0xe]
      %v2848 = vld [vmem:[%s1704 + $0x24] sm:$0xe]
      %v2849 = vld [vmem:[%s1704 + $0x30] sm:$0xe]
      %v2850 = vld [vmem:[%s1704 + $0x3c] sm:$0xe]
      %v2851 = vld [vmem:[%s1704 + $0x48] sm:$0xe]
      %v2852 = vld [vmem:[%s1704 + $0x54] sm:$0xe]
      %v2853 = vld [vmem:[%s1704 + $0x60] sm:$0xe]
      %v2854 = vld [vmem:[%s1704 + $0x6c] sm:$0xe]
      %v2855 = vld [vmem:[%s1704 + $0x78] sm:$0xe]
      %v2856 = vld [vmem:[%s1704 + $0x84] sm:$0xe]
      %v2857 = vld [vmem:[%s1704 + $0x90] sm:$0xe]
      %v2858 = vld [vmem:[%s1704 + $0x9c] sm:$0xe]
      %v2859 = vld [vmem:[%s1704 + $0xa8] sm:$0xe]
      %v2860 = vld [vmem:[%s1704 + $0xb4] sm:$0xe]
      %v2909 = vrot.slane %v2845, 5
      %v2910 = vrot.slane %v2909, 4
      %v2911 = vrot.slane %v2092, 5
      %v2912 = vsel %vm1269, %v2910, %v2911
      %v2913 = vrot.slane %v2911, 4
      %v2914 = vrot.slane %v2093, 5
      %v2915 = vsel %vm1269, %v2913, %v2914
      %v2916 = vrot.slane %v2846, 5
      %v2917 = vrot.slane %v2916, 4
      %v2918 = vrot.slane %v2095, 5
      %v2919 = vsel %vm1269, %v2917, %v2918
      %v2920 = vrot.slane %v2918, 4
      %v2921 = vrot.slane %v2096, 5
      %v2922 = vsel %vm1269, %v2920, %v2921
      %v2923 = vrot.slane %v2847, 5
      %v2924 = vrot.slane %v2923, 4
      %v2925 = vrot.slane %v2098, 5
      %v2926 = vsel %vm1269, %v2924, %v2925
      %v2927 = vrot.slane %v2925, 4
      %v2928 = vrot.slane %v2099, 5
      %v2929 = vsel %vm1269, %v2927, %v2928
      %v2930 = vrot.slane %v2848, 5
      %v2931 = vrot.slane %v2930, 4
      %v2932 = vrot.slane %v2101, 5
      %v2933 = vsel %vm1269, %v2931, %v2932
      %v2934 = vrot.slane %v2932, 4
      %v2935 = vrot.slane %v2102, 5
      %v2936 = vsel %vm1269, %v2934, %v2935
      %v2937 = vrot.slane %v2849, 5
      %v2938 = vrot.slane %v2937, 4
      %v2939 = vrot.slane %v2104, 5
      %v2940 = vsel %vm1269, %v2938, %v2939
      %v2941 = vrot.slane %v2939, 4
      %v2942 = vrot.slane %v2105, 5
      %v2943 = vsel %vm1269, %v2941, %v2942
      %v2944 = vrot.slane %v2850, 5
      %v2945 = vrot.slane %v2944, 4
      %v2946 = vrot.slane %v2107, 5
      %v2947 = vsel %vm1269, %v2945, %v2946
      %v2948 = vrot.slane %v2946, 4
      %v2949 = vrot.slane %v2108, 5
      %v2950 = vsel %vm1269, %v2948, %v2949
      %v2951 = vrot.slane %v2851, 5
      %v2952 = vrot.slane %v2951, 4
      %v2953 = vrot.slane %v2110, 5
      %v2954 = vsel %vm1269, %v2952, %v2953
      %v2955 = vrot.slane %v2953, 4
      %v2956 = vrot.slane %v2111, 5
      %v2957 = vsel %vm1269, %v2955, %v2956
      %v2958 = vrot.slane %v2852, 5
      %v2959 = vrot.slane %v2958, 4
      %v2960 = vrot.slane %v2113, 5
      %v2961 = vsel %vm1269, %v2959, %v2960
      %v2962 = vrot.slane %v2960, 4
      %v2963 = vrot.slane %v2114, 5
      %v2964 = vsel %vm1269, %v2962, %v2963
      %v2965 = vrot.slane %v2853, 5
      %v2966 = vrot.slane %v2965, 4
      %v2967 = vrot.slane %v2116, 5
      %v2968 = vsel %vm1269, %v2966, %v2967
      %v2969 = vrot.slane %v2967, 4
      %v2970 = vrot.slane %v2117, 5
      %v2971 = vsel %vm1269, %v2969, %v2970
      %v2972 = vrot.slane %v2854, 5
      %v2973 = vrot.slane %v2972, 4
      %v2974 = vrot.slane %v2119, 5
      %v2975 = vsel %vm1269, %v2973, %v2974
      %v2976 = vrot.slane %v2974, 4
      %v2977 = vrot.slane %v2120, 5
      %v2978 = vsel %vm1269, %v2976, %v2977
      %v2979 = vrot.slane %v2855, 5
      %v2980 = vrot.slane %v2979, 4
      %v2981 = vrot.slane %v2122, 5
      %v2982 = vsel %vm1269, %v2980, %v2981
      %v2983 = vrot.slane %v2981, 4
      %v2984 = vrot.slane %v2123, 5
      %v2985 = vsel %vm1269, %v2983, %v2984
      %v2986 = vrot.slane %v2856, 5
      %v2987 = vrot.slane %v2986, 4
      %v2988 = vrot.slane %v2125, 5
      %v2989 = vsel %vm1269, %v2987, %v2988
      %v2990 = vrot.slane %v2988, 4
      %v2991 = vrot.slane %v2126, 5
      %v2992 = vsel %vm1269, %v2990, %v2991
      %v2993 = vrot.slane %v2857, 5
      %v2994 = vrot.slane %v2993, 4
      %v2995 = vrot.slane %v2128, 5
      %v2996 = vsel %vm1269, %v2994, %v2995
      %v2997 = vrot.slane %v2995, 4
      %v2998 = vrot.slane %v2129, 5
      %v2999 = vsel %vm1269, %v2997, %v2998
      %v3000 = vrot.slane %v2858, 5
      %v3001 = vrot.slane %v3000, 4
      %v3002 = vrot.slane %v2131, 5
      %v3003 = vsel %vm1269, %v3001, %v3002
      %v3004 = vrot.slane %v3002, 4
      %v3005 = vrot.slane %v2132, 5
      %v3006 = vsel %vm1269, %v3004, %v3005
      %v3007 = vrot.slane %v2859, 5
      %v3008 = vrot.slane %v3007, 4
      %v3009 = vrot.slane %v2134, 5
      %v3010 = vsel %vm1269, %v3008, %v3009
      %v3011 = vrot.slane %v3009, 4
      %v3012 = vrot.slane %v2135, 5
      %v3013 = vsel %vm1269, %v3011, %v3012
      %v3014 = vrot.slane %v2860, 5
      %v3015 = vrot.slane %v3014, 4
      %v3016 = vrot.slane %v2137, 5
      %v3017 = vsel %vm1269, %v3015, %v3016
      %v3018 = vrot.slane %v3016, 4
      %v3019 = vrot.slane %v2138, 5
      %v3020 = vsel %vm1269, %v3018, %v3019
      %s3021 = scalar_lea.vmem %s1, 160
      %v3022 = vld [vmem:[%s3021] sm:$0xf]
      %v3023 = vld [vmem:[%s3021 + $0x4] sm:$0xf]
      %v3024 = vld [vmem:[%s3021 + $0x8] sm:$0xf]
      %v3025 = vld [vmem:[%s3021 + $0xc] sm:$0xf]
      %v3026 = vld [vmem:[%s3021 + $0x10] sm:$0xf]
      %v3027 = vld [vmem:[%s3021 + $0x14] sm:$0xf]
      %v3028 = vld [vmem:[%s3021 + $0x18] sm:$0xf]
      %v3029 = vld [vmem:[%s3021 + $0x1c] sm:$0xf]
      %v3030 = vunpack.c.l.b16 %v2912
      %v3031 = vunpack.c.l.b16 %v2915
      %v3032 = vunpack.c.l.b16 %v2919
      %v3033 = vunpack.c.l.b16 %v2922
      %v3034 = vunpack.c.l.b16 %v2926
      %v3035 = vunpack.c.l.b16 %v2929
      %v3036 = vunpack.c.l.b16 %v2933
      %v3037 = vunpack.c.l.b16 %v2936
      %v3038 = vunpack.c.l.b16 %v2940
      %v3039 = vunpack.c.l.b16 %v2943
      %v3040 = vunpack.c.l.b16 %v2947
      %v3041 = vunpack.c.l.b16 %v2950
      %v3042 = vunpack.c.l.b16 %v2954
      %v3043 = vunpack.c.l.b16 %v2957
      %v3044 = vunpack.c.l.b16 %v2961
      %v3045 = vunpack.c.l.b16 %v2964
      %v3046 = vunpack.c.l.b16 %v2968
      %v3047 = vunpack.c.l.b16 %v2971
      %v3048 = vunpack.c.l.b16 %v2975
      %v3049 = vunpack.c.l.b16 %v2978
      %v3050 = vunpack.c.l.b16 %v2982
      %v3051 = vunpack.c.l.b16 %v2985
      %v3052 = vunpack.c.l.b16 %v2989
      %v3053 = vunpack.c.l.b16 %v2992
      %v3054 = vunpack.c.l.b16 %v2996
      %v3055 = vunpack.c.l.b16 %v2999
      %v3056 = vunpack.c.l.b16 %v3003
      %v3057 = vunpack.c.l.b16 %v3006
      %v3058 = vunpack.c.l.b16 %v3010
      %v3059 = vunpack.c.l.b16 %v3013
      %v3060 = vunpack.c.l.b16 %v3017
      %v3061 = vunpack.c.l.b16 %v3020
      %v3062 = vpack.c.b16 %v3031, %v3030
      %v3063 = vpack.c.b16 %v3033, %v3032
      %v3064 = vpack.c.b16 %v3035, %v3034
      %v3065 = vpack.c.b16 %v3037, %v3036
      %v3066 = vpack.c.b16 %v3039, %v3038
      %v3067 = vpack.c.b16 %v3041, %v3040
      %v3068 = vpack.c.b16 %v3043, %v3042
      %v3069 = vpack.c.b16 %v3045, %v3044
      %v3070 = vpack.c.b16 %v3047, %v3046
      %v3071 = vpack.c.b16 %v3049, %v3048
      %v3072 = vpack.c.b16 %v3051, %v3050
      %v3073 = vpack.c.b16 %v3053, %v3052
      %v3074 = vpack.c.b16 %v3055, %v3054
      %v3075 = vpack.c.b16 %v3057, %v3056
      %v3076 = vpack.c.b16 %v3059, %v3058
      %v3077 = vpack.c.b16 %v3061, %v3060
      %v3086 = vunpack.c.l.b16 %v3022
      %v3087 = vunpack.c.l.b16 %v3023
      %v3088 = vunpack.c.l.b16 %v3024
      %v3089 = vunpack.c.l.b16 %v3025
      %v3090 = vunpack.c.l.b16 %v3026
      %v3091 = vunpack.c.l.b16 %v3027
      %v3092 = vunpack.c.l.b16 %v3028
      %v3093 = vunpack.c.l.b16 %v3029
      %v3094 = vpack.c.b16 %v3087, %v3086
      %v3095 = vpack.c.b16 %v3089, %v3088
      %v3096 = vpack.c.b16 %v3091, %v3090
      %v3097 = vpack.c.b16 %v3093, %v3092
      %v3103 = vsel %vm696, %v3062, 0
      %v3106 = vsel %vm696, %v3063, 0
      %v3109 = vsel %vm696, %v3064, 0
      %v3112 = vsel %vm696, %v3065, 0
      %v3115 = vsel %vm696, %v3066, 0
      %v3118 = vsel %vm696, %v3067, 0
      %v3121 = vsel %vm696, %v3068, 0
      %v3124 = vsel %vm696, %v3069, 0
      %v3127 = vsel %vm696, %v3070, 0
      %v3130 = vsel %vm696, %v3071, 0
      %v3133 = vsel %vm696, %v3072, 0
      %v3136 = vsel %vm696, %v3073, 0
      %v3139 = vsel %vm696, %v3074, 0
      %v3142 = vsel %vm696, %v3075, 0
      %v3145 = vsel %vm696, %v3076, 0
      %v3148 = vsel %vm696, %v3077, 0
      %3150 = vmatprep.subr.bf16.mxu0 0
      %3151 = vmatpush1.bf16.msra.mxu0 0
      %3152 = vmatprep.subr.bf16.mxu0 0
      %3153 = vmatpush1.bf16.msra.mxu0 0
      %3154 = vmatprep.subr.bf16.mxu0 0
      %3155 = vmatpush1.bf16.msra.mxu0 0
      %3156 = vmatprep.subr.bf16.mxu0 0
      %3157 = vmatpush1.bf16.msra.mxu0 0
      %3158 = vmatprep.subr.bf16.mxu0 0
      %3159 = vmatpush1.bf16.msra.mxu0 %v3097
      %3160 = vmatprep.subr.bf16.mxu0 0
      %3161 = vmatpush1.bf16.msra.mxu0 %v3096
      %3162 = vmatprep.subr.bf16.mxu0 0
      %3163 = vmatpush1.bf16.msra.mxu0 %v3095
      %3164 = vmatprep.subr.bf16.mxu0 0
      %3165 = vmatpush1.bf16.msra.mxu0 %v3094
      %3166 = vmatprep.subr.bf16.mxu0 0
      %3167 = vmatpush2.bf16.msra.mxu0 0
      %3168 = vmatprep.subr.bf16.mxu0 0
      %3169 = vmatpush2.bf16.msra.mxu0 0
      %3170 = vmatprep.subr.bf16.mxu0 0
      %3171 = vmatpush2.bf16.msra.mxu0 0
      %3172 = vmatprep.subr.bf16.mxu0 0
      %3173 = vmatpush2.bf16.msra.mxu0 0
      %3174 = vmatprep.subr.bf16.mxu0 0
      %3175 = vmatpush2.bf16.msra.mxu0 0
      %3176 = vmatprep.subr.bf16.mxu0 0
      %3177 = vmatpush2.bf16.msra.mxu0 0
      %3178 = vmatprep.subr.bf16.mxu0 0
      %3179 = vmatpush2.bf16.msra.mxu0 0
      %3180 = vmatprep.subr.bf16.mxu0 0
      %3181 = vmatpush2.bf16.msra.mxu0 0
      %3182 = vmatprep.mubr.bf16.mxu0 0
      %3183 = vmatmul.mubr.bf16.gmra.mxu0 %v3103
      %v3184 = vpop.f32.mrf.mxu0
      %v3185 = vadd.f32 0.0, %v3184
      %v3186 = vpop.f32.mrf.mxu0
      %v3187 = vpop.f32.mrf.mxu0
      %v3188 = vadd.f32 0.0, %v3187
      %v3189 = vpop.f32.mrf.mxu0
      %3190 = vmatprep.mubr.bf16.mxu0 0
      %3191 = vmatmul.mubr.bf16.gmra.mxu0 %v3106
      %v3192 = vpop.f32.mrf.mxu0
      %v3193 = vadd.f32 0.0, %v3192
      %v3194 = vpop.f32.mrf.mxu0
      %v3195 = vpop.f32.mrf.mxu0
      %v3196 = vadd.f32 0.0, %v3195
      %v3197 = vpop.f32.mrf.mxu0
      %3198 = vmatprep.mubr.bf16.mxu0 0
      %3199 = vmatmul.mubr.bf16.gmra.mxu0 %v3109
      %v3200 = vpop.f32.mrf.mxu0
      %v3201 = vadd.f32 0.0, %v3200
      %v3202 = vpop.f32.mrf.mxu0
      %v3203 = vpop.f32.mrf.mxu0
      %v3204 = vadd.f32 0.0, %v3203
      %v3205 = vpop.f32.mrf.mxu0
      %3206 = vmatprep.mubr.bf16.mxu0 0
      %3207 = vmatmul.mubr.bf16.gmra.mxu0 %v3112
      %v3208 = vpop.f32.mrf.mxu0
      %v3209 = vadd.f32 0.0, %v3208
      %v3210 = vpop.f32.mrf.mxu0
      %v3211 = vpop.f32.mrf.mxu0
      %v3212 = vadd.f32 0.0, %v3211
      %v3213 = vpop.f32.mrf.mxu0
      %3214 = vmatprep.mubr.bf16.mxu0 0
      %3215 = vmatmul.mubr.bf16.gmra.mxu0 %v3115
      %v3216 = vpop.f32.mrf.mxu0
      %v3217 = vadd.f32 0.0, %v3216
      %v3218 = vpop.f32.mrf.mxu0
      %v3219 = vpop.f32.mrf.mxu0
      %v3220 = vadd.f32 0.0, %v3219
      %v3221 = vpop.f32.mrf.mxu0
      %3222 = vmatprep.mubr.bf16.mxu0 0
      %3223 = vmatmul.mubr.bf16.gmra.mxu0 %v3118
      %v3224 = vpop.f32.mrf.mxu0
      %v3225 = vadd.f32 0.0, %v3224
      %v3226 = vpop.f32.mrf.mxu0
      %v3227 = vpop.f32.mrf.mxu0
      %v3228 = vadd.f32 0.0, %v3227
      %v3229 = vpop.f32.mrf.mxu0
      %3230 = vmatprep.mubr.bf16.mxu0 0
      %3231 = vmatmul.mubr.bf16.gmra.mxu0 %v3121
      %v3232 = vpop.f32.mrf.mxu0
      %v3233 = vadd.f32 0.0, %v3232
      %v3234 = vpop.f32.mrf.mxu0
      %v3235 = vpop.f32.mrf.mxu0
      %v3236 = vadd.f32 0.0, %v3235
      %v3237 = vpop.f32.mrf.mxu0
      %3238 = vmatprep.mubr.bf16.mxu0 0
      %3239 = vmatmul.mubr.bf16.gmra.mxu0 %v3124
      %v3240 = vpop.f32.mrf.mxu0
      %v3241 = vadd.f32 0.0, %v3240
      %v3242 = vpop.f32.mrf.mxu0
      %v3243 = vpop.f32.mrf.mxu0
      %v3244 = vadd.f32 0.0, %v3243
      %v3245 = vpop.f32.mrf.mxu0
      %3246 = vmatprep.mubr.bf16.mxu0 0
      %3247 = vmatmul.mubr.bf16.gmra.mxu0 %v3127
      %v3248 = vpop.f32.mrf.mxu0
      %v3249 = vadd.f32 0.0, %v3248
      %v3250 = vpop.f32.mrf.mxu0
      %v3251 = vpop.f32.mrf.mxu0
      %v3252 = vadd.f32 0.0, %v3251
      %v3253 = vpop.f32.mrf.mxu0
      %3254 = vmatprep.mubr.bf16.mxu0 0
      %3255 = vmatmul.mubr.bf16.gmra.mxu0 %v3130
      %v3256 = vpop.f32.mrf.mxu0
      %v3257 = vadd.f32 0.0, %v3256
      %v3258 = vpop.f32.mrf.mxu0
      %v3259 = vpop.f32.mrf.mxu0
      %v3260 = vadd.f32 0.0, %v3259
      %v3261 = vpop.f32.mrf.mxu0
      %3262 = vmatprep.mubr.bf16.mxu0 0
      %3263 = vmatmul.mubr.bf16.gmra.mxu0 %v3133
      %v3264 = vpop.f32.mrf.mxu0
      %v3265 = vadd.f32 0.0, %v3264
      %v3266 = vpop.f32.mrf.mxu0
      %v3267 = vpop.f32.mrf.mxu0
      %v3268 = vadd.f32 0.0, %v3267
      %v3269 = vpop.f32.mrf.mxu0
      %3270 = vmatprep.mubr.bf16.mxu0 0
      %3271 = vmatmul.mubr.bf16.gmra.mxu0 %v3136
      %v3272 = vpop.f32.mrf.mxu0
      %v3273 = vadd.f32 0.0, %v3272
      %v3274 = vpop.f32.mrf.mxu0
      %v3275 = vpop.f32.mrf.mxu0
      %v3276 = vadd.f32 0.0, %v3275
      %v3277 = vpop.f32.mrf.mxu0
      %3278 = vmatprep.mubr.bf16.mxu0 0
      %3279 = vmatmul.mubr.bf16.gmra.mxu0 %v3139
      %v3280 = vpop.f32.mrf.mxu0
      %v3281 = vadd.f32 0.0, %v3280
      %v3282 = vpop.f32.mrf.mxu0
      %v3283 = vpop.f32.mrf.mxu0
      %v3284 = vadd.f32 0.0, %v3283
      %v3285 = vpop.f32.mrf.mxu0
      %3286 = vmatprep.mubr.bf16.mxu0 0
      %3287 = vmatmul.mubr.bf16.gmra.mxu0 %v3142
      %v3288 = vpop.f32.mrf.mxu0
      %v3289 = vadd.f32 0.0, %v3288
      %v3290 = vpop.f32.mrf.mxu0
      %v3291 = vpop.f32.mrf.mxu0
      %v3292 = vadd.f32 0.0, %v3291
      %v3293 = vpop.f32.mrf.mxu0
      %3294 = vmatprep.mubr.bf16.mxu0 0
      %3295 = vmatmul.mubr.bf16.gmra.mxu0 %v3145
      %v3296 = vpop.f32.mrf.mxu0
      %v3297 = vadd.f32 0.0, %v3296
      %v3298 = vpop.f32.mrf.mxu0
      %v3299 = vpop.f32.mrf.mxu0
      %v3300 = vadd.f32 0.0, %v3299
      %v3301 = vpop.f32.mrf.mxu0
      %3302 = vmatprep.mubr.bf16.mxu0 0
      %3303 = vmatmul.mubr.bf16.gmra.mxu0 %v3148
      %v3304 = vpop.f32.mrf.mxu0
      %v3305 = vadd.f32 0.0, %v3304
      %v3306 = vpop.f32.mrf.mxu0
      %v3307 = vpop.f32.mrf.mxu0
      %v3308 = vadd.f32 0.0, %v3307
      %v3309 = vpop.f32.mrf.mxu0
      %3310 = vdwg.mxu0
      %v3311 = vadd.f32 %v2813, %v3185
      %v3312 = vadd.f32 %v2814, %v3188
      %v3313 = vadd.f32 %v2815, %v3193
      %v3314 = vadd.f32 %v2816, %v3196
      %v3315 = vadd.f32 %v2817, %v3201
      %v3316 = vadd.f32 %v2818, %v3204
      %v3317 = vadd.f32 %v2819, %v3209
      %v3318 = vadd.f32 %v2820, %v3212
      %v3319 = vadd.f32 %v2821, %v3217
      %v3320 = vadd.f32 %v2822, %v3220
      %v3321 = vadd.f32 %v2823, %v3225
      %v3322 = vadd.f32 %v2824, %v3228
      %v3323 = vadd.f32 %v2825, %v3233
      %v3324 = vadd.f32 %v2826, %v3236
      %v3325 = vadd.f32 %v2827, %v3241
      %v3326 = vadd.f32 %v2828, %v3244
      %v3327 = vadd.f32 %v2829, %v3249
      %v3328 = vadd.f32 %v2830, %v3252
      %v3329 = vadd.f32 %v2831, %v3257
      %v3330 = vadd.f32 %v2832, %v3260
      %v3331 = vadd.f32 %v2833, %v3265
      %v3332 = vadd.f32 %v2834, %v3268
      %v3333 = vadd.f32 %v2835, %v3273
      %v3334 = vadd.f32 %v2836, %v3276
      %v3335 = vadd.f32 %v2837, %v3281
      %v3336 = vadd.f32 %v2838, %v3284
      %v3337 = vadd.f32 %v2839, %v3289
      %v3338 = vadd.f32 %v2840, %v3292
      %v3339 = vadd.f32 %v2841, %v3297
      %v3340 = vadd.f32 %v2842, %v3300
      %v3341 = vadd.f32 %v2843, %v3305
      %v3342 = vadd.f32 %v2844, %v3308
      %s3343 = scalar_lea.vmem %s165, 24
      %v3344 = vld [vmem:[%s3343] sm:$0xf]
      %v3345 = vld [vmem:[%s3343 + $0x4] sm:$0xf]
      %v3346 = vld [vmem:[%s3343 + $0xc] sm:$0xf]
      %v3347 = vld [vmem:[%s3343 + $0x10] sm:$0xf]
      %v3348 = vld [vmem:[%s3343 + $0x18] sm:$0xf]
      %v3349 = vld [vmem:[%s3343 + $0x1c] sm:$0xf]
      %v3350 = vld [vmem:[%s3343 + $0x24] sm:$0xf]
      %v3351 = vld [vmem:[%s3343 + $0x28] sm:$0xf]
      %v3352 = vld [vmem:[%s3343 + $0x30] sm:$0xf]
      %v3353 = vld [vmem:[%s3343 + $0x34] sm:$0xf]
      %v3354 = vld [vmem:[%s3343 + $0x3c] sm:$0xf]
      %v3355 = vld [vmem:[%s3343 + $0x40] sm:$0xf]
      %v3356 = vld [vmem:[%s3343 + $0x48] sm:$0xf]
      %v3357 = vld [vmem:[%s3343 + $0x4c] sm:$0xf]
      %v3358 = vld [vmem:[%s3343 + $0x54] sm:$0xf]
      %v3359 = vld [vmem:[%s3343 + $0x58] sm:$0xf]
      %v3360 = vld [vmem:[%s3343 + $0x60] sm:$0xf]
      %v3361 = vld [vmem:[%s3343 + $0x64] sm:$0xf]
      %v3362 = vld [vmem:[%s3343 + $0x6c] sm:$0xf]
      %v3363 = vld [vmem:[%s3343 + $0x70] sm:$0xf]
      %v3364 = vld [vmem:[%s3343 + $0x78] sm:$0xf]
      %v3365 = vld [vmem:[%s3343 + $0x7c] sm:$0xf]
      %v3366 = vld [vmem:[%s3343 + $0x84] sm:$0xf]
      %v3367 = vld [vmem:[%s3343 + $0x88] sm:$0xf]
      %v3368 = vld [vmem:[%s3343 + $0x90] sm:$0xf]
      %v3369 = vld [vmem:[%s3343 + $0x94] sm:$0xf]
      %v3370 = vld [vmem:[%s3343 + $0x9c] sm:$0xf]
      %v3371 = vld [vmem:[%s3343 + $0xa0] sm:$0xf]
      %v3372 = vld [vmem:[%s3343 + $0xa8] sm:$0xf]
      %v3373 = vld [vmem:[%s3343 + $0xac] sm:$0xf]
      %v3374 = vld [vmem:[%s3343 + $0xb4] sm:$0xf]
      %v3375 = vld [vmem:[%s3343 + $0xb8] sm:$0xf]
      %s3376 = scalar_lea.vmem %s1, 192
      %v3377 = vld [vmem:[%s3376] sm:$0xf]
      %v3378 = vld [vmem:[%s3376 + $0x4] sm:$0xf]
      %v3379 = vld [vmem:[%s3376 + $0x8] sm:$0xf]
      %v3380 = vld [vmem:[%s3376 + $0xc] sm:$0xf]
      %v3381 = vld [vmem:[%s3376 + $0x10] sm:$0xf]
      %v3382 = vld [vmem:[%s3376 + $0x14] sm:$0xf]
      %v3383 = vld [vmem:[%s3376 + $0x18] sm:$0xf]
      %v3384 = vld [vmem:[%s3376 + $0x1c] sm:$0xf]
      %v3417 = vunpack.c.l.b16 %v3344
      %v3418 = vunpack.c.l.b16 %v3345
      %v3419 = vunpack.c.l.b16 %v3346
      %v3420 = vunpack.c.l.b16 %v3347
      %v3421 = vunpack.c.l.b16 %v3348
      %v3422 = vunpack.c.l.b16 %v3349
      %v3423 = vunpack.c.l.b16 %v3350
      %v3424 = vunpack.c.l.b16 %v3351
      %v3425 = vunpack.c.l.b16 %v3352
      %v3426 = vunpack.c.l.b16 %v3353
      %v3427 = vunpack.c.l.b16 %v3354
      %v3428 = vunpack.c.l.b16 %v3355
      %v3429 = vunpack.c.l.b16 %v3356
      %v3430 = vunpack.c.l.b16 %v3357
      %v3431 = vunpack.c.l.b16 %v3358
      %v3432 = vunpack.c.l.b16 %v3359
      %v3433 = vunpack.c.l.b16 %v3360
      %v3434 = vunpack.c.l.b16 %v3361
      %v3435 = vunpack.c.l.b16 %v3362
      %v3436 = vunpack.c.l.b16 %v3363
      %v3437 = vunpack.c.l.b16 %v3364
      %v3438 = vunpack.c.l.b16 %v3365
      %v3439 = vunpack.c.l.b16 %v3366
      %v3440 = vunpack.c.l.b16 %v3367
      %v3441 = vunpack.c.l.b16 %v3368
      %v3442 = vunpack.c.l.b16 %v3369
      %v3443 = vunpack.c.l.b16 %v3370
      %v3444 = vunpack.c.l.b16 %v3371
      %v3445 = vunpack.c.l.b16 %v3372
      %v3446 = vunpack.c.l.b16 %v3373
      %v3447 = vunpack.c.l.b16 %v3374
      %v3448 = vunpack.c.l.b16 %v3375
      %v3449 = vpack.c.b16 %v3418, %v3417
      %v3450 = vpack.c.b16 %v3420, %v3419
      %v3451 = vpack.c.b16 %v3422, %v3421
      %v3452 = vpack.c.b16 %v3424, %v3423
      %v3453 = vpack.c.b16 %v3426, %v3425
      %v3454 = vpack.c.b16 %v3428, %v3427
      %v3455 = vpack.c.b16 %v3430, %v3429
      %v3456 = vpack.c.b16 %v3432, %v3431
      %v3457 = vpack.c.b16 %v3434, %v3433
      %v3458 = vpack.c.b16 %v3436, %v3435
      %v3459 = vpack.c.b16 %v3438, %v3437
      %v3460 = vpack.c.b16 %v3440, %v3439
      %v3461 = vpack.c.b16 %v3442, %v3441
      %v3462 = vpack.c.b16 %v3444, %v3443
      %v3463 = vpack.c.b16 %v3446, %v3445
      %v3464 = vpack.c.b16 %v3448, %v3447
      %v3473 = vunpack.c.l.b16 %v3377
      %v3474 = vunpack.c.l.b16 %v3378
      %v3475 = vunpack.c.l.b16 %v3379
      %v3476 = vunpack.c.l.b16 %v3380
      %v3477 = vunpack.c.l.b16 %v3381
      %v3478 = vunpack.c.l.b16 %v3382
      %v3479 = vunpack.c.l.b16 %v3383
      %v3480 = vunpack.c.l.b16 %v3384
      %v3481 = vpack.c.b16 %v3474, %v3473
      %v3482 = vpack.c.b16 %v3476, %v3475
      %v3483 = vpack.c.b16 %v3478, %v3477
      %v3484 = vpack.c.b16 %v3480, %v3479
      %v3490 = vsel %vm696, %v3449, 0
      %v3493 = vsel %vm696, %v3450, 0
      %v3496 = vsel %vm696, %v3451, 0
      %v3499 = vsel %vm696, %v3452, 0
      %v3502 = vsel %vm696, %v3453, 0
      %v3505 = vsel %vm696, %v3454, 0
      %v3508 = vsel %vm696, %v3455, 0
      %v3511 = vsel %vm696, %v3456, 0
      %v3514 = vsel %vm696, %v3457, 0
      %v3517 = vsel %vm696, %v3458, 0
      %v3520 = vsel %vm696, %v3459, 0
      %v3523 = vsel %vm696, %v3460, 0
      %v3526 = vsel %vm696, %v3461, 0
      %v3529 = vsel %vm696, %v3462, 0
      %v3532 = vsel %vm696, %v3463, 0
      %v3535 = vsel %vm696, %v3464, 0
      %3537 = vmatprep.subr.bf16.mxu0 0
      %3538 = vmatpush1.bf16.msra.mxu0 0
      %3539 = vmatprep.subr.bf16.mxu0 0
      %3540 = vmatpush1.bf16.msra.mxu0 0
      %3541 = vmatprep.subr.bf16.mxu0 0
      %3542 = vmatpush1.bf16.msra.mxu0 0
      %3543 = vmatprep.subr.bf16.mxu0 0
      %3544 = vmatpush1.bf16.msra.mxu0 0
      %3545 = vmatprep.subr.bf16.mxu0 0
      %3546 = vmatpush1.bf16.msra.mxu0 %v3484
      %3547 = vmatprep.subr.bf16.mxu0 0
      %3548 = vmatpush1.bf16.msra.mxu0 %v3483
      %3549 = vmatprep.subr.bf16.mxu0 0
      %3550 = vmatpush1.bf16.msra.mxu0 %v3482
      %3551 = vmatprep.subr.bf16.mxu0 0
      %3552 = vmatpush1.bf16.msra.mxu0 %v3481
      %3553 = vmatprep.subr.bf16.mxu0 0
      %3554 = vmatpush2.bf16.msra.mxu0 0
      %3555 = vmatprep.subr.bf16.mxu0 0
      %3556 = vmatpush2.bf16.msra.mxu0 0
      %3557 = vmatprep.subr.bf16.mxu0 0
      %3558 = vmatpush2.bf16.msra.mxu0 0
      %3559 = vmatprep.subr.bf16.mxu0 0
      %3560 = vmatpush2.bf16.msra.mxu0 0
      %3561 = vmatprep.subr.bf16.mxu0 0
      %3562 = vmatpush2.bf16.msra.mxu0 0
      %3563 = vmatprep.subr.bf16.mxu0 0
      %3564 = vmatpush2.bf16.msra.mxu0 0
      %3565 = vmatprep.subr.bf16.mxu0 0
      %3566 = vmatpush2.bf16.msra.mxu0 0
      %3567 = vmatprep.subr.bf16.mxu0 0
      %3568 = vmatpush2.bf16.msra.mxu0 0
      %3569 = vmatprep.mubr.bf16.mxu0 0
      %3570 = vmatmul.mubr.bf16.gmra.mxu0 %v3490
      %v3571 = vpop.f32.mrf.mxu0
      %v3572 = vadd.f32 0.0, %v3571
      %v3573 = vpop.f32.mrf.mxu0
      %v3574 = vpop.f32.mrf.mxu0
      %v3575 = vadd.f32 0.0, %v3574
      %v3576 = vpop.f32.mrf.mxu0
      %3577 = vmatprep.mubr.bf16.mxu0 0
      %3578 = vmatmul.mubr.bf16.gmra.mxu0 %v3493
      %v3579 = vpop.f32.mrf.mxu0
      %v3580 = vadd.f32 0.0, %v3579
      %v3581 = vpop.f32.mrf.mxu0
      %v3582 = vpop.f32.mrf.mxu0
      %v3583 = vadd.f32 0.0, %v3582
      %v3584 = vpop.f32.mrf.mxu0
      %3585 = vmatprep.mubr.bf16.mxu0 0
      %3586 = vmatmul.mubr.bf16.gmra.mxu0 %v3496
      %v3587 = vpop.f32.mrf.mxu0
      %v3588 = vadd.f32 0.0, %v3587
      %v3589 = vpop.f32.mrf.mxu0
      %v3590 = vpop.f32.mrf.mxu0
      %v3591 = vadd.f32 0.0, %v3590
      %v3592 = vpop.f32.mrf.mxu0
      %3593 = vmatprep.mubr.bf16.mxu0 0
      %3594 = vmatmul.mubr.bf16.gmra.mxu0 %v3499
      %v3595 = vpop.f32.mrf.mxu0
      %v3596 = vadd.f32 0.0, %v3595
      %v3597 = vpop.f32.mrf.mxu0
      %v3598 = vpop.f32.mrf.mxu0
      %v3599 = vadd.f32 0.0, %v3598
      %v3600 = vpop.f32.mrf.mxu0
      %3601 = vmatprep.mubr.bf16.mxu0 0
      %3602 = vmatmul.mubr.bf16.gmra.mxu0 %v3502
      %v3603 = vpop.f32.mrf.mxu0
      %v3604 = vadd.f32 0.0, %v3603
      %v3605 = vpop.f32.mrf.mxu0
      %v3606 = vpop.f32.mrf.mxu0
      %v3607 = vadd.f32 0.0, %v3606
      %v3608 = vpop.f32.mrf.mxu0
      %3609 = vmatprep.mubr.bf16.mxu0 0
      %3610 = vmatmul.mubr.bf16.gmra.mxu0 %v3505
      %v3611 = vpop.f32.mrf.mxu0
      %v3612 = vadd.f32 0.0, %v3611
      %v3613 = vpop.f32.mrf.mxu0
      %v3614 = vpop.f32.mrf.mxu0
      %v3615 = vadd.f32 0.0, %v3614
      %v3616 = vpop.f32.mrf.mxu0
      %3617 = vmatprep.mubr.bf16.mxu0 0
      %3618 = vmatmul.mubr.bf16.gmra.mxu0 %v3508
      %v3619 = vpop.f32.mrf.mxu0
      %v3620 = vadd.f32 0.0, %v3619
      %v3621 = vpop.f32.mrf.mxu0
      %v3622 = vpop.f32.mrf.mxu0
      %v3623 = vadd.f32 0.0, %v3622
      %v3624 = vpop.f32.mrf.mxu0
      %3625 = vmatprep.mubr.bf16.mxu0 0
      %3626 = vmatmul.mubr.bf16.gmra.mxu0 %v3511
      %v3627 = vpop.f32.mrf.mxu0
      %v3628 = vadd.f32 0.0, %v3627
      %v3629 = vpop.f32.mrf.mxu0
      %v3630 = vpop.f32.mrf.mxu0
      %v3631 = vadd.f32 0.0, %v3630
      %v3632 = vpop.f32.mrf.mxu0
      %3633 = vmatprep.mubr.bf16.mxu0 0
      %3634 = vmatmul.mubr.bf16.gmra.mxu0 %v3514
      %v3635 = vpop.f32.mrf.mxu0
      %v3636 = vadd.f32 0.0, %v3635
      %v3637 = vpop.f32.mrf.mxu0
      %v3638 = vpop.f32.mrf.mxu0
      %v3639 = vadd.f32 0.0, %v3638
      %v3640 = vpop.f32.mrf.mxu0
      %3641 = vmatprep.mubr.bf16.mxu0 0
      %3642 = vmatmul.mubr.bf16.gmra.mxu0 %v3517
      %v3643 = vpop.f32.mrf.mxu0
      %v3644 = vadd.f32 0.0, %v3643
      %v3645 = vpop.f32.mrf.mxu0
      %v3646 = vpop.f32.mrf.mxu0
      %v3647 = vadd.f32 0.0, %v3646
      %v3648 = vpop.f32.mrf.mxu0
      %3649 = vmatprep.mubr.bf16.mxu0 0
      %3650 = vmatmul.mubr.bf16.gmra.mxu0 %v3520
      %v3651 = vpop.f32.mrf.mxu0
      %v3652 = vadd.f32 0.0, %v3651
      %v3653 = vpop.f32.mrf.mxu0
      %v3654 = vpop.f32.mrf.mxu0
      %v3655 = vadd.f32 0.0, %v3654
      %v3656 = vpop.f32.mrf.mxu0
      %3657 = vmatprep.mubr.bf16.mxu0 0
      %3658 = vmatmul.mubr.bf16.gmra.mxu0 %v3523
      %v3659 = vpop.f32.mrf.mxu0
      %v3660 = vadd.f32 0.0, %v3659
      %v3661 = vpop.f32.mrf.mxu0
      %v3662 = vpop.f32.mrf.mxu0
      %v3663 = vadd.f32 0.0, %v3662
      %v3664 = vpop.f32.mrf.mxu0
      %3665 = vmatprep.mubr.bf16.mxu0 0
      %3666 = vmatmul.mubr.bf16.gmra.mxu0 %v3526
      %v3667 = vpop.f32.mrf.mxu0
      %v3668 = vadd.f32 0.0, %v3667
      %v3669 = vpop.f32.mrf.mxu0
      %v3670 = vpop.f32.mrf.mxu0
      %v3671 = vadd.f32 0.0, %v3670
      %v3672 = vpop.f32.mrf.mxu0
      %3673 = vmatprep.mubr.bf16.mxu0 0
      %3674 = vmatmul.mubr.bf16.gmra.mxu0 %v3529
      %v3675 = vpop.f32.mrf.mxu0
      %v3676 = vadd.f32 0.0, %v3675
      %v3677 = vpop.f32.mrf.mxu0
      %v3678 = vpop.f32.mrf.mxu0
      %v3679 = vadd.f32 0.0, %v3678
      %v3680 = vpop.f32.mrf.mxu0
      %3681 = vmatprep.mubr.bf16.mxu0 0
      %3682 = vmatmul.mubr.bf16.gmra.mxu0 %v3532
      %v3683 = vpop.f32.mrf.mxu0
      %v3684 = vadd.f32 0.0, %v3683
      %v3685 = vpop.f32.mrf.mxu0
      %v3686 = vpop.f32.mrf.mxu0
      %v3687 = vadd.f32 0.0, %v3686
      %v3688 = vpop.f32.mrf.mxu0
      %3689 = vmatprep.mubr.bf16.mxu0 0
      %3690 = vmatmul.mubr.bf16.gmra.mxu0 %v3535
      %v3691 = vpop.f32.mrf.mxu0
      %v3692 = vadd.f32 0.0, %v3691
      %v3693 = vpop.f32.mrf.mxu0
      %v3694 = vpop.f32.mrf.mxu0
      %v3695 = vadd.f32 0.0, %v3694
      %v3696 = vpop.f32.mrf.mxu0
      %3697 = vdwg.mxu0
      %v3698 = vadd.f32 %v3311, %v3572
      %v3699 = vadd.f32 %v3312, %v3575
      %v3700 = vadd.f32 %v3313, %v3580
      %v3701 = vadd.f32 %v3314, %v3583
      %v3702 = vadd.f32 %v3315, %v3588
      %v3703 = vadd.f32 %v3316, %v3591
      %v3704 = vadd.f32 %v3317, %v3596
      %v3705 = vadd.f32 %v3318, %v3599
      %v3706 = vadd.f32 %v3319, %v3604
      %v3707 = vadd.f32 %v3320, %v3607
      %v3708 = vadd.f32 %v3321, %v3612
      %v3709 = vadd.f32 %v3322, %v3615
      %v3710 = vadd.f32 %v3323, %v3620
      %v3711 = vadd.f32 %v3324, %v3623
      %v3712 = vadd.f32 %v3325, %v3628
      %v3713 = vadd.f32 %v3326, %v3631
      %v3714 = vadd.f32 %v3327, %v3636
      %v3715 = vadd.f32 %v3328, %v3639
      %v3716 = vadd.f32 %v3329, %v3644
      %v3717 = vadd.f32 %v3330, %v3647
      %v3718 = vadd.f32 %v3331, %v3652
      %v3719 = vadd.f32 %v3332, %v3655
      %v3720 = vadd.f32 %v3333, %v3660
      %v3721 = vadd.f32 %v3334, %v3663
      %v3722 = vadd.f32 %v3335, %v3668
      %v3723 = vadd.f32 %v3336, %v3671
      %v3724 = vadd.f32 %v3337, %v3676
      %v3725 = vadd.f32 %v3338, %v3679
      %v3726 = vadd.f32 %v3339, %v3684
      %v3727 = vadd.f32 %v3340, %v3687
      %v3728 = vadd.f32 %v3341, %v3692
      %v3729 = vadd.f32 %v3342, %v3695
      %v3730 = vld [vmem:[%s3343] sm:$0xf]
      %v3731 = vld [vmem:[%s3343 + $0x4] sm:$0xf]
      %v3732 = vld [vmem:[%s3343 + $0x8] sm:$0x1]
      %v3733 = vld [vmem:[%s3343 + $0xc] sm:$0xf]
      %v3734 = vld [vmem:[%s3343 + $0x10] sm:$0xf]
      %v3735 = vld [vmem:[%s3343 + $0x14] sm:$0x1]
      %v3736 = vld [vmem:[%s3343 + $0x18] sm:$0xf]
      %v3737 = vld [vmem:[%s3343 + $0x1c] sm:$0xf]
      %v3738 = vld [vmem:[%s3343 + $0x20] sm:$0x1]
      %v3739 = vld [vmem:[%s3343 + $0x24] sm:$0xf]
      %v3740 = vld [vmem:[%s3343 + $0x28] sm:$0xf]
      %v3741 = vld [vmem:[%s3343 + $0x2c] sm:$0x1]
      %v3742 = vld [vmem:[%s3343 + $0x30] sm:$0xf]
      %v3743 = vld [vmem:[%s3343 + $0x34] sm:$0xf]
      %v3744 = vld [vmem:[%s3343 + $0x38] sm:$0x1]
      %v3745 = vld [vmem:[%s3343 + $0x3c] sm:$0xf]
      %v3746 = vld [vmem:[%s3343 + $0x40] sm:$0xf]
      %v3747 = vld [vmem:[%s3343 + $0x44] sm:$0x1]
      %v3748 = vld [vmem:[%s3343 + $0x48] sm:$0xf]
      %v3749 = vld [vmem:[%s3343 + $0x4c] sm:$0xf]
      %v3750 = vld [vmem:[%s3343 + $0x50] sm:$0x1]
      %v3751 = vld [vmem:[%s3343 + $0x54] sm:$0xf]
      %v3752 = vld [vmem:[%s3343 + $0x58] sm:$0xf]
      %v3753 = vld [vmem:[%s3343 + $0x5c] sm:$0x1]
      %v3754 = vld [vmem:[%s3343 + $0x60] sm:$0xf]
      %v3755 = vld [vmem:[%s3343 + $0x64] sm:$0xf]
      %v3756 = vld [vmem:[%s3343 + $0x68] sm:$0x1]
      %v3757 = vld [vmem:[%s3343 + $0x6c] sm:$0xf]
      %v3758 = vld [vmem:[%s3343 + $0x70] sm:$0xf]
      %v3759 = vld [vmem:[%s3343 + $0x74] sm:$0x1]
      %v3760 = vld [vmem:[%s3343 + $0x78] sm:$0xf]
      %v3761 = vld [vmem:[%s3343 + $0x7c] sm:$0xf]
      %v3762 = vld [vmem:[%s3343 + $0x80] sm:$0x1]
      %v3763 = vld [vmem:[%s3343 + $0x84] sm:$0xf]
      %v3764 = vld [vmem:[%s3343 + $0x88] sm:$0xf]
      %v3765 = vld [vmem:[%s3343 + $0x8c] sm:$0x1]
      %v3766 = vld [vmem:[%s3343 + $0x90] sm:$0xf]
      %v3767 = vld [vmem:[%s3343 + $0x94] sm:$0xf]
      %v3768 = vld [vmem:[%s3343 + $0x98] sm:$0x1]
      %v3769 = vld [vmem:[%s3343 + $0x9c] sm:$0xf]
      %v3770 = vld [vmem:[%s3343 + $0xa0] sm:$0xf]
      %v3771 = vld [vmem:[%s3343 + $0xa4] sm:$0x1]
      %v3772 = vld [vmem:[%s3343 + $0xa8] sm:$0xf]
      %v3773 = vld [vmem:[%s3343 + $0xac] sm:$0xf]
      %v3774 = vld [vmem:[%s3343 + $0xb0] sm:$0x1]
      %v3775 = vld [vmem:[%s3343 + $0xb4] sm:$0xf]
      %v3776 = vld [vmem:[%s3343 + $0xb8] sm:$0xf]
      %v3777 = vld [vmem:[%s3343 + $0xbc] sm:$0x1]
      %v3779 = vshrl.u32 %v3730, 16
      %v3781 = vrot.slane %v3779, 4
      %v3782 = vshll.u32 %v3730, 16
      %v3784 = vrot.slane %v3782, 5
      %v3785 = vor.u32 %v3781, %v3784
      %v3786 = vrot.slane %v3785, 4
      %v3788 = vshll.u32 %v3731, 16
      %v3790 = vrot.slane %v3788, 5
      %v3791 = vsel %vm230, %v3786, %v3790
      %v3792 = vshrl.u32 %v3731, 16
      %v3794 = vrot.slane %v3792, 4
      %v3795 = vor.u32 %v3794, %v3790
      %v3796 = vrot.slane %v3795, 4
      %v3798 = vshll.u32 %v3732, 16
      %v3800 = vrot.slane %v3798, 5
      %v3801 = vsel %vm230, %v3796, %v3800
      %v3803 = vshrl.u32 %v3733, 16
      %v3805 = vrot.slane %v3803, 4
      %v3806 = vshll.u32 %v3733, 16
      %v3808 = vrot.slane %v3806, 5
      %v3809 = vor.u32 %v3805, %v3808
      %v3810 = vrot.slane %v3809, 4
      %v3812 = vshll.u32 %v3734, 16
      %v3814 = vrot.slane %v3812, 5
      %v3815 = vsel %vm230, %v3810, %v3814
      %v3816 = vshrl.u32 %v3734, 16
      %v3818 = vrot.slane %v3816, 4
      %v3819 = vor.u32 %v3818, %v3814
      %v3820 = vrot.slane %v3819, 4
      %v3822 = vshll.u32 %v3735, 16
      %v3824 = vrot.slane %v3822, 5
      %v3825 = vsel %vm230, %v3820, %v3824
      %v3827 = vshrl.u32 %v3736, 16
      %v3829 = vrot.slane %v3827, 4
      %v3830 = vshll.u32 %v3736, 16
      %v3832 = vrot.slane %v3830, 5
      %v3833 = vor.u32 %v3829, %v3832
      %v3834 = vrot.slane %v3833, 4
      %v3836 = vshll.u32 %v3737, 16
      %v3838 = vrot.slane %v3836, 5
      %v3839 = vsel %vm230, %v3834, %v3838
      %v3840 = vshrl.u32 %v3737, 16
      %v3842 = vrot.slane %v3840, 4
      %v3843 = vor.u32 %v3842, %v3838
      %v3844 = vrot.slane %v3843, 4
      %v3846 = vshll.u32 %v3738, 16
      %v3848 = vrot.slane %v3846, 5
      %v3849 = vsel %vm230, %v3844, %v3848
      %v3851 = vshrl.u32 %v3739, 16
      %v3853 = vrot.slane %v3851, 4
      %v3854 = vshll.u32 %v3739, 16
      %v3856 = vrot.slane %v3854, 5
      %v3857 = vor.u32 %v3853, %v3856
      %v3858 = vrot.slane %v3857, 4
      %v3860 = vshll.u32 %v3740, 16
      %v3862 = vrot.slane %v3860, 5
      %v3863 = vsel %vm230, %v3858, %v3862
      %v3864 = vshrl.u32 %v3740, 16
      %v3866 = vrot.slane %v3864, 4
      %v3867 = vor.u32 %v3866, %v3862
      %v3868 = vrot.slane %v3867, 4
      %v3870 = vshll.u32 %v3741, 16
      %v3872 = vrot.slane %v3870, 5
      %v3873 = vsel %vm230, %v3868, %v3872
      %v3875 = vshrl.u32 %v3742, 16
      %v3877 = vrot.slane %v3875, 4
      %v3878 = vshll.u32 %v3742, 16
      %v3880 = vrot.slane %v3878, 5
      %v3881 = vor.u32 %v3877, %v3880
      %v3882 = vrot.slane %v3881, 4
      %v3884 = vshll.u32 %v3743, 16
      %v3886 = vrot.slane %v3884, 5
      %v3887 = vsel %vm230, %v3882, %v3886
      %v3888 = vshrl.u32 %v3743, 16
      %v3890 = vrot.slane %v3888, 4
      %v3891 = vor.u32 %v3890, %v3886
      %v3892 = vrot.slane %v3891, 4
      %v3894 = vshll.u32 %v3744, 16
      %v3896 = vrot.slane %v3894, 5
      %v3897 = vsel %vm230, %v3892, %v3896
      %v3899 = vshrl.u32 %v3745, 16
      %v3901 = vrot.slane %v3899, 4
      %v3902 = vshll.u32 %v3745, 16
      %v3904 = vrot.slane %v3902, 5
      %v3905 = vor.u32 %v3901, %v3904
      %v3906 = vrot.slane %v3905, 4
      %v3908 = vshll.u32 %v3746, 16
      %v3910 = vrot.slane %v3908, 5
      %v3911 = vsel %vm230, %v3906, %v3910
      %v3912 = vshrl.u32 %v3746, 16
      %v3914 = vrot.slane %v3912, 4
      %v3915 = vor.u32 %v3914, %v3910
      %v3916 = vrot.slane %v3915, 4
      %v3918 = vshll.u32 %v3747, 16
      %v3920 = vrot.slane %v3918, 5
      %v3921 = vsel %vm230, %v3916, %v3920
      %v3923 = vshrl.u32 %v3748, 16
      %v3925 = vrot.slane %v3923, 4
      %v3926 = vshll.u32 %v3748, 16
      %v3928 = vrot.slane %v3926, 5
      %v3929 = vor.u32 %v3925, %v3928
      %v3930 = vrot.slane %v3929, 4
      %v3932 = vshll.u32 %v3749, 16
      %v3934 = vrot.slane %v3932, 5
      %v3935 = vsel %vm230, %v3930, %v3934
      %v3936 = vshrl.u32 %v3749, 16
      %v3938 = vrot.slane %v3936, 4
      %v3939 = vor.u32 %v3938, %v3934
      %v3940 = vrot.slane %v3939, 4
      %v3942 = vshll.u32 %v3750, 16
      %v3944 = vrot.slane %v3942, 5
      %v3945 = vsel %vm230, %v3940, %v3944
      %v3947 = vshrl.u32 %v3751, 16
      %v3949 = vrot.slane %v3947, 4
      %v3950 = vshll.u32 %v3751, 16
      %v3952 = vrot.slane %v3950, 5
      %v3953 = vor.u32 %v3949, %v3952
      %v3954 = vrot.slane %v3953, 4
      %v3956 = vshll.u32 %v3752, 16
      %v3958 = vrot.slane %v3956, 5
      %v3959 = vsel %vm230, %v3954, %v3958
      %v3960 = vshrl.u32 %v3752, 16
      %v3962 = vrot.slane %v3960, 4
      %v3963 = vor.u32 %v3962, %v3958
      %v3964 = vrot.slane %v3963, 4
      %v3966 = vshll.u32 %v3753, 16
      %v3968 = vrot.slane %v3966, 5
      %v3969 = vsel %vm230, %v3964, %v3968
      %v3971 = vshrl.u32 %v3754, 16
      %v3973 = vrot.slane %v3971, 4
      %v3974 = vshll.u32 %v3754, 16
      %v3976 = vrot.slane %v3974, 5
      %v3977 = vor.u32 %v3973, %v3976
      %v3978 = vrot.slane %v3977, 4
      %v3980 = vshll.u32 %v3755, 16
      %v3982 = vrot.slane %v3980, 5
      %v3983 = vsel %vm230, %v3978, %v3982
      %v3984 = vshrl.u32 %v3755, 16
      %v3986 = vrot.slane %v3984, 4
      %v3987 = vor.u32 %v3986, %v3982
      %v3988 = vrot.slane %v3987, 4
      %v3990 = vshll.u32 %v3756, 16
      %v3992 = vrot.slane %v3990, 5
      %v3993 = vsel %vm230, %v3988, %v3992
      %v3995 = vshrl.u32 %v3757, 16
      %v3997 = vrot.slane %v3995, 4
      %v3998 = vshll.u32 %v3757, 16
      %v4000 = vrot.slane %v3998, 5
      %v4001 = vor.u32 %v3997, %v4000
      %v4002 = vrot.slane %v4001, 4
      %v4004 = vshll.u32 %v3758, 16
      %v4006 = vrot.slane %v4004, 5
      %v4007 = vsel %vm230, %v4002, %v4006
      %v4008 = vshrl.u32 %v3758, 16
      %v4010 = vrot.slane %v4008, 4
      %v4011 = vor.u32 %v4010, %v4006
      %v4012 = vrot.slane %v4011, 4
      %v4014 = vshll.u32 %v3759, 16
      %v4016 = vrot.slane %v4014, 5
      %v4017 = vsel %vm230, %v4012, %v4016
      %v4019 = vshrl.u32 %v3760, 16
      %v4021 = vrot.slane %v4019, 4
      %v4022 = vshll.u32 %v3760, 16
      %v4024 = vrot.slane %v4022, 5
      %v4025 = vor.u32 %v4021, %v4024
      %v4026 = vrot.slane %v4025, 4
      %v4028 = vshll.u32 %v3761, 16
      %v4030 = vrot.slane %v4028, 5
      %v4031 = vsel %vm230, %v4026, %v4030
      %v4032 = vshrl.u32 %v3761, 16
      %v4034 = vrot.slane %v4032, 4
      %v4035 = vor.u32 %v4034, %v4030
      %v4036 = vrot.slane %v4035, 4
      %v4038 = vshll.u32 %v3762, 16
      %v4040 = vrot.slane %v4038, 5
      %v4041 = vsel %vm230, %v4036, %v4040
      %v4043 = vshrl.u32 %v3763, 16
      %v4045 = vrot.slane %v4043, 4
      %v4046 = vshll.u32 %v3763, 16
      %v4048 = vrot.slane %v4046, 5
      %v4049 = vor.u32 %v4045, %v4048
      %v4050 = vrot.slane %v4049, 4
      %v4052 = vshll.u32 %v3764, 16
      %v4054 = vrot.slane %v4052, 5
      %v4055 = vsel %vm230, %v4050, %v4054
      %v4056 = vshrl.u32 %v3764, 16
      %v4058 = vrot.slane %v4056, 4
      %v4059 = vor.u32 %v4058, %v4054
      %v4060 = vrot.slane %v4059, 4
      %v4062 = vshll.u32 %v3765, 16
      %v4064 = vrot.slane %v4062, 5
      %v4065 = vsel %vm230, %v4060, %v4064
      %v4067 = vshrl.u32 %v3766, 16
      %v4069 = vrot.slane %v4067, 4
      %v4070 = vshll.u32 %v3766, 16
      %v4072 = vrot.slane %v4070, 5
      %v4073 = vor.u32 %v4069, %v4072
      %v4074 = vrot.slane %v4073, 4
      %v4076 = vshll.u32 %v3767, 16
      %v4078 = vrot.slane %v4076, 5
      %v4079 = vsel %vm230, %v4074, %v4078
      %v4080 = vshrl.u32 %v3767, 16
      %v4082 = vrot.slane %v4080, 4
      %v4083 = vor.u32 %v4082, %v4078
      %v4084 = vrot.slane %v4083, 4
      %v4086 = vshll.u32 %v3768, 16
      %v4088 = vrot.slane %v4086, 5
      %v4089 = vsel %vm230, %v4084, %v4088
      %v4091 = vshrl.u32 %v3769, 16
      %v4093 = vrot.slane %v4091, 4
      %v4094 = vshll.u32 %v3769, 16
      %v4096 = vrot.slane %v4094, 5
      %v4097 = vor.u32 %v4093, %v4096
      %v4098 = vrot.slane %v4097, 4
      %v4100 = vshll.u32 %v3770, 16
      %v4102 = vrot.slane %v4100, 5
      %v4103 = vsel %vm230, %v4098, %v4102
      %v4104 = vshrl.u32 %v3770, 16
      %v4106 = vrot.slane %v4104, 4
      %v4107 = vor.u32 %v4106, %v4102
      %v4108 = vrot.slane %v4107, 4
      %v4110 = vshll.u32 %v3771, 16
      %v4112 = vrot.slane %v4110, 5
      %v4113 = vsel %vm230, %v4108, %v4112
      %v4115 = vshrl.u32 %v3772, 16
      %v4117 = vrot.slane %v4115, 4
      %v4118 = vshll.u32 %v3772, 16
      %v4120 = vrot.slane %v4118, 5
      %v4121 = vor.u32 %v4117, %v4120
      %v4122 = vrot.slane %v4121, 4
      %v4124 = vshll.u32 %v3773, 16
      %v4126 = vrot.slane %v4124, 5
      %v4127 = vsel %vm230, %v4122, %v4126
      %v4128 = vshrl.u32 %v3773, 16
      %v4130 = vrot.slane %v4128, 4
      %v4131 = vor.u32 %v4130, %v4126
      %v4132 = vrot.slane %v4131, 4
      %v4134 = vshll.u32 %v3774, 16
      %v4136 = vrot.slane %v4134, 5
      %v4137 = vsel %vm230, %v4132, %v4136
      %v4139 = vshrl.u32 %v3775, 16
      %v4141 = vrot.slane %v4139, 4
      %v4142 = vshll.u32 %v3775, 16
      %v4144 = vrot.slane %v4142, 5
      %v4145 = vor.u32 %v4141, %v4144
      %v4146 = vrot.slane %v4145, 4
      %v4148 = vshll.u32 %v3776, 16
      %v4150 = vrot.slane %v4148, 5
      %v4151 = vsel %vm230, %v4146, %v4150
      %v4152 = vshrl.u32 %v3776, 16
      %v4154 = vrot.slane %v4152, 4
      %v4155 = vor.u32 %v4154, %v4150
      %v4156 = vrot.slane %v4155, 4
      %v4158 = vshll.u32 %v3777, 16
      %v4160 = vrot.slane %v4158, 5
      %v4161 = vsel %vm230, %v4156, %v4160
      %s4162 = scalar_lea.vmem %s1, 224
      %v4163 = vld [vmem:[%s4162] sm:$0xf]
      %v4164 = vld [vmem:[%s4162 + $0x4] sm:$0xf]
      %v4165 = vld [vmem:[%s4162 + $0x8] sm:$0xf]
      %v4166 = vld [vmem:[%s4162 + $0xc] sm:$0xf]
      %v4167 = vld [vmem:[%s4162 + $0x10] sm:$0xf]
      %v4168 = vld [vmem:[%s4162 + $0x14] sm:$0xf]
      %v4169 = vld [vmem:[%s4162 + $0x18] sm:$0xf]
      %v4170 = vld [vmem:[%s4162 + $0x1c] sm:$0xf]
      %v4171 = vunpack.c.l.b16 %v3791
      %v4172 = vunpack.c.l.b16 %v3801
      %v4173 = vunpack.c.l.b16 %v3815
      %v4174 = vunpack.c.l.b16 %v3825
      %v4175 = vunpack.c.l.b16 %v3839
      %v4176 = vunpack.c.l.b16 %v3849
      %v4177 = vunpack.c.l.b16 %v3863
      %v4178 = vunpack.c.l.b16 %v3873
      %v4179 = vunpack.c.l.b16 %v3887
      %v4180 = vunpack.c.l.b16 %v3897
      %v4181 = vunpack.c.l.b16 %v3911
      %v4182 = vunpack.c.l.b16 %v3921
      %v4183 = vunpack.c.l.b16 %v3935
      %v4184 = vunpack.c.l.b16 %v3945
      %v4185 = vunpack.c.l.b16 %v3959
      %v4186 = vunpack.c.l.b16 %v3969
      %v4187 = vunpack.c.l.b16 %v3983
      %v4188 = vunpack.c.l.b16 %v3993
      %v4189 = vunpack.c.l.b16 %v4007
      %v4190 = vunpack.c.l.b16 %v4017
      %v4191 = vunpack.c.l.b16 %v4031
      %v4192 = vunpack.c.l.b16 %v4041
      %v4193 = vunpack.c.l.b16 %v4055
      %v4194 = vunpack.c.l.b16 %v4065
      %v4195 = vunpack.c.l.b16 %v4079
      %v4196 = vunpack.c.l.b16 %v4089
      %v4197 = vunpack.c.l.b16 %v4103
      %v4198 = vunpack.c.l.b16 %v4113
      %v4199 = vunpack.c.l.b16 %v4127
      %v4200 = vunpack.c.l.b16 %v4137
      %v4201 = vunpack.c.l.b16 %v4151
      %v4202 = vunpack.c.l.b16 %v4161
      %v4203 = vpack.c.b16 %v4172, %v4171
      %v4204 = vpack.c.b16 %v4174, %v4173
      %v4205 = vpack.c.b16 %v4176, %v4175
      %v4206 = vpack.c.b16 %v4178, %v4177
      %v4207 = vpack.c.b16 %v4180, %v4179
      %v4208 = vpack.c.b16 %v4182, %v4181
      %v4209 = vpack.c.b16 %v4184, %v4183
      %v4210 = vpack.c.b16 %v4186, %v4185
      %v4211 = vpack.c.b16 %v4188, %v4187
      %v4212 = vpack.c.b16 %v4190, %v4189
      %v4213 = vpack.c.b16 %v4192, %v4191
      %v4214 = vpack.c.b16 %v4194, %v4193
      %v4215 = vpack.c.b16 %v4196, %v4195
      %v4216 = vpack.c.b16 %v4198, %v4197
      %v4217 = vpack.c.b16 %v4200, %v4199
      %v4218 = vpack.c.b16 %v4202, %v4201
      %v4227 = vunpack.c.l.b16 %v4163
      %v4228 = vunpack.c.l.b16 %v4164
      %v4229 = vunpack.c.l.b16 %v4165
      %v4230 = vunpack.c.l.b16 %v4166
      %v4231 = vunpack.c.l.b16 %v4167
      %v4232 = vunpack.c.l.b16 %v4168
      %v4233 = vunpack.c.l.b16 %v4169
      %v4234 = vunpack.c.l.b16 %v4170
      %v4235 = vpack.c.b16 %v4228, %v4227
      %v4236 = vpack.c.b16 %v4230, %v4229
      %v4237 = vpack.c.b16 %v4232, %v4231
      %v4238 = vpack.c.b16 %v4234, %v4233
      %v4244 = vsel %vm696, %v4203, 0
      %v4247 = vsel %vm696, %v4204, 0
      %v4250 = vsel %vm696, %v4205, 0
      %v4253 = vsel %vm696, %v4206, 0
      %v4256 = vsel %vm696, %v4207, 0
      %v4259 = vsel %vm696, %v4208, 0
      %v4262 = vsel %vm696, %v4209, 0
      %v4265 = vsel %vm696, %v4210, 0
      %v4268 = vsel %vm696, %v4211, 0
      %v4271 = vsel %vm696, %v4212, 0
      %v4274 = vsel %vm696, %v4213, 0
      %v4277 = vsel %vm696, %v4214, 0
      %v4280 = vsel %vm696, %v4215, 0
      %v4283 = vsel %vm696, %v4216, 0
      %v4286 = vsel %vm696, %v4217, 0
      %v4289 = vsel %vm696, %v4218, 0
      %4291 = vmatprep.subr.bf16.mxu0 0
      %4292 = vmatpush1.bf16.msra.mxu0 0
      %4293 = vmatprep.subr.bf16.mxu0 0
      %4294 = vmatpush1.bf16.msra.mxu0 0
      %4295 = vmatprep.subr.bf16.mxu0 0
      %4296 = vmatpush1.bf16.msra.mxu0 0
      %4297 = vmatprep.subr.bf16.mxu0 0
      %4298 = vmatpush1.bf16.msra.mxu0 0
      %4299 = vmatprep.subr.bf16.mxu0 0
      %4300 = vmatpush1.bf16.msra.mxu0 %v4238
      %4301 = vmatprep.subr.bf16.mxu0 0
      %4302 = vmatpush1.bf16.msra.mxu0 %v4237
      %4303 = vmatprep.subr.bf16.mxu0 0
      %4304 = vmatpush1.bf16.msra.mxu0 %v4236
      %4305 = vmatprep.subr.bf16.mxu0 0
      %4306 = vmatpush1.bf16.msra.mxu0 %v4235
      %4307 = vmatprep.subr.bf16.mxu0 0
      %4308 = vmatpush2.bf16.msra.mxu0 0
      %4309 = vmatprep.subr.bf16.mxu0 0
      %4310 = vmatpush2.bf16.msra.mxu0 0
      %4311 = vmatprep.subr.bf16.mxu0 0
      %4312 = vmatpush2.bf16.msra.mxu0 0
      %4313 = vmatprep.subr.bf16.mxu0 0
      %4314 = vmatpush2.bf16.msra.mxu0 0
      %4315 = vmatprep.subr.bf16.mxu0 0
      %4316 = vmatpush2.bf16.msra.mxu0 0
      %4317 = vmatprep.subr.bf16.mxu0 0
      %4318 = vmatpush2.bf16.msra.mxu0 0
      %4319 = vmatprep.subr.bf16.mxu0 0
      %4320 = vmatpush2.bf16.msra.mxu0 0
      %4321 = vmatprep.subr.bf16.mxu0 0
      %4322 = vmatpush2.bf16.msra.mxu0 0
      %4323 = vmatprep.mubr.bf16.mxu0 0
      %4324 = vmatmul.mubr.bf16.gmra.mxu0 %v4244
      %v4325 = vpop.f32.mrf.mxu0
      %v4326 = vadd.f32 0.0, %v4325
      %v4327 = vpop.f32.mrf.mxu0
      %v4328 = vpop.f32.mrf.mxu0
      %v4329 = vadd.f32 0.0, %v4328
      %v4330 = vpop.f32.mrf.mxu0
      %4331 = vmatprep.mubr.bf16.mxu0 0
      %4332 = vmatmul.mubr.bf16.gmra.mxu0 %v4247
      %v4333 = vpop.f32.mrf.mxu0
      %v4334 = vadd.f32 0.0, %v4333
      %v4335 = vpop.f32.mrf.mxu0
      %v4336 = vpop.f32.mrf.mxu0
      %v4337 = vadd.f32 0.0, %v4336
      %v4338 = vpop.f32.mrf.mxu0
      %4339 = vmatprep.mubr.bf16.mxu0 0
      %4340 = vmatmul.mubr.bf16.gmra.mxu0 %v4250
      %v4341 = vpop.f32.mrf.mxu0
      %v4342 = vadd.f32 0.0, %v4341
      %v4343 = vpop.f32.mrf.mxu0
      %v4344 = vpop.f32.mrf.mxu0
      %v4345 = vadd.f32 0.0, %v4344
      %v4346 = vpop.f32.mrf.mxu0
      %4347 = vmatprep.mubr.bf16.mxu0 0
      %4348 = vmatmul.mubr.bf16.gmra.mxu0 %v4253
      %v4349 = vpop.f32.mrf.mxu0
      %v4350 = vadd.f32 0.0, %v4349
      %v4351 = vpop.f32.mrf.mxu0
      %v4352 = vpop.f32.mrf.mxu0
      %v4353 = vadd.f32 0.0, %v4352
      %v4354 = vpop.f32.mrf.mxu0
      %4355 = vmatprep.mubr.bf16.mxu0 0
      %4356 = vmatmul.mubr.bf16.gmra.mxu0 %v4256
      %v4357 = vpop.f32.mrf.mxu0
      %v4358 = vadd.f32 0.0, %v4357
      %v4359 = vpop.f32.mrf.mxu0
      %v4360 = vpop.f32.mrf.mxu0
      %v4361 = vadd.f32 0.0, %v4360
      %v4362 = vpop.f32.mrf.mxu0
      %4363 = vmatprep.mubr.bf16.mxu0 0
      %4364 = vmatmul.mubr.bf16.gmra.mxu0 %v4259
      %v4365 = vpop.f32.mrf.mxu0
      %v4366 = vadd.f32 0.0, %v4365
      %v4367 = vpop.f32.mrf.mxu0
      %v4368 = vpop.f32.mrf.mxu0
      %v4369 = vadd.f32 0.0, %v4368
      %v4370 = vpop.f32.mrf.mxu0
      %4371 = vmatprep.mubr.bf16.mxu0 0
      %4372 = vmatmul.mubr.bf16.gmra.mxu0 %v4262
      %v4373 = vpop.f32.mrf.mxu0
      %v4374 = vadd.f32 0.0, %v4373
      %v4375 = vpop.f32.mrf.mxu0
      %v4376 = vpop.f32.mrf.mxu0
      %v4377 = vadd.f32 0.0, %v4376
      %v4378 = vpop.f32.mrf.mxu0
      %4379 = vmatprep.mubr.bf16.mxu0 0
      %4380 = vmatmul.mubr.bf16.gmra.mxu0 %v4265
      %v4381 = vpop.f32.mrf.mxu0
      %v4382 = vadd.f32 0.0, %v4381
      %v4383 = vpop.f32.mrf.mxu0
      %v4384 = vpop.f32.mrf.mxu0
      %v4385 = vadd.f32 0.0, %v4384
      %v4386 = vpop.f32.mrf.mxu0
      %4387 = vmatprep.mubr.bf16.mxu0 0
      %4388 = vmatmul.mubr.bf16.gmra.mxu0 %v4268
      %v4389 = vpop.f32.mrf.mxu0
      %v4390 = vadd.f32 0.0, %v4389
      %v4391 = vpop.f32.mrf.mxu0
      %v4392 = vpop.f32.mrf.mxu0
      %v4393 = vadd.f32 0.0, %v4392
      %v4394 = vpop.f32.mrf.mxu0
      %4395 = vmatprep.mubr.bf16.mxu0 0
      %4396 = vmatmul.mubr.bf16.gmra.mxu0 %v4271
      %v4397 = vpop.f32.mrf.mxu0
      %v4398 = vadd.f32 0.0, %v4397
      %v4399 = vpop.f32.mrf.mxu0
      %v4400 = vpop.f32.mrf.mxu0
      %v4401 = vadd.f32 0.0, %v4400
      %v4402 = vpop.f32.mrf.mxu0
      %4403 = vmatprep.mubr.bf16.mxu0 0
      %4404 = vmatmul.mubr.bf16.gmra.mxu0 %v4274
      %v4405 = vpop.f32.mrf.mxu0
      %v4406 = vadd.f32 0.0, %v4405
      %v4407 = vpop.f32.mrf.mxu0
      %v4408 = vpop.f32.mrf.mxu0
      %v4409 = vadd.f32 0.0, %v4408
      %v4410 = vpop.f32.mrf.mxu0
      %4411 = vmatprep.mubr.bf16.mxu0 0
      %4412 = vmatmul.mubr.bf16.gmra.mxu0 %v4277
      %v4413 = vpop.f32.mrf.mxu0
      %v4414 = vadd.f32 0.0, %v4413
      %v4415 = vpop.f32.mrf.mxu0
      %v4416 = vpop.f32.mrf.mxu0
      %v4417 = vadd.f32 0.0, %v4416
      %v4418 = vpop.f32.mrf.mxu0
      %4419 = vmatprep.mubr.bf16.mxu0 0
      %4420 = vmatmul.mubr.bf16.gmra.mxu0 %v4280
      %v4421 = vpop.f32.mrf.mxu0
      %v4422 = vadd.f32 0.0, %v4421
      %v4423 = vpop.f32.mrf.mxu0
      %v4424 = vpop.f32.mrf.mxu0
      %v4425 = vadd.f32 0.0, %v4424
      %v4426 = vpop.f32.mrf.mxu0
      %4427 = vmatprep.mubr.bf16.mxu0 0
      %4428 = vmatmul.mubr.bf16.gmra.mxu0 %v4283
      %v4429 = vpop.f32.mrf.mxu0
      %v4430 = vadd.f32 0.0, %v4429
      %v4431 = vpop.f32.mrf.mxu0
      %v4432 = vpop.f32.mrf.mxu0
      %v4433 = vadd.f32 0.0, %v4432
      %v4434 = vpop.f32.mrf.mxu0
      %4435 = vmatprep.mubr.bf16.mxu0 0
      %4436 = vmatmul.mubr.bf16.gmra.mxu0 %v4286
      %v4437 = vpop.f32.mrf.mxu0
      %v4438 = vadd.f32 0.0, %v4437
      %v4439 = vpop.f32.mrf.mxu0
      %v4440 = vpop.f32.mrf.mxu0
      %v4441 = vadd.f32 0.0, %v4440
      %v4442 = vpop.f32.mrf.mxu0
      %4443 = vmatprep.mubr.bf16.mxu0 0
      %4444 = vmatmul.mubr.bf16.gmra.mxu0 %v4289
      %v4445 = vpop.f32.mrf.mxu0
      %v4446 = vadd.f32 0.0, %v4445
      %v4447 = vpop.f32.mrf.mxu0
      %v4448 = vpop.f32.mrf.mxu0
      %v4449 = vadd.f32 0.0, %v4448
      %v4450 = vpop.f32.mrf.mxu0
      %4451 = vdwg.mxu0
      %v4452 = vadd.f32 %v3698, %v4326
      %v4453 = vadd.f32 %v3699, %v4329
      %v4454 = vadd.f32 %v3700, %v4334
      %v4455 = vadd.f32 %v3701, %v4337
      %v4456 = vadd.f32 %v3702, %v4342
      %v4457 = vadd.f32 %v3703, %v4345
      %v4458 = vadd.f32 %v3704, %v4350
      %v4459 = vadd.f32 %v3705, %v4353
      %v4460 = vadd.f32 %v3706, %v4358
      %v4461 = vadd.f32 %v3707, %v4361
      %v4462 = vadd.f32 %v3708, %v4366
      %v4463 = vadd.f32 %v3709, %v4369
      %v4464 = vadd.f32 %v3710, %v4374
      %v4465 = vadd.f32 %v3711, %v4377
      %v4466 = vadd.f32 %v3712, %v4382
      %v4467 = vadd.f32 %v3713, %v4385
      %v4468 = vadd.f32 %v3714, %v4390
      %v4469 = vadd.f32 %v3715, %v4393
      %v4470 = vadd.f32 %v3716, %v4398
      %v4471 = vadd.f32 %v3717, %v4401
      %v4472 = vadd.f32 %v3718, %v4406
      %v4473 = vadd.f32 %v3719, %v4409
      %v4474 = vadd.f32 %v3720, %v4414
      %v4475 = vadd.f32 %v3721, %v4417
      %v4476 = vadd.f32 %v3722, %v4422
      %v4477 = vadd.f32 %v3723, %v4425
      %v4478 = vadd.f32 %v3724, %v4430
      %v4479 = vadd.f32 %v3725, %v4433
      %v4480 = vadd.f32 %v3726, %v4438
      %v4481 = vadd.f32 %v3727, %v4441
      %v4482 = vadd.f32 %v3728, %v4446
      %v4483 = vadd.f32 %v3729, %v4449
      %v4484 = vld [vmem:[%s3343] sm:$0xe]
      %v4485 = vld [vmem:[%s3343 + $0xc] sm:$0xe]
      %v4486 = vld [vmem:[%s3343 + $0x18] sm:$0xe]
      %v4487 = vld [vmem:[%s3343 + $0x24] sm:$0xe]
      %v4488 = vld [vmem:[%s3343 + $0x30] sm:$0xe]
      %v4489 = vld [vmem:[%s3343 + $0x3c] sm:$0xe]
      %v4490 = vld [vmem:[%s3343 + $0x48] sm:$0xe]
      %v4491 = vld [vmem:[%s3343 + $0x54] sm:$0xe]
      %v4492 = vld [vmem:[%s3343 + $0x60] sm:$0xe]
      %v4493 = vld [vmem:[%s3343 + $0x6c] sm:$0xe]
      %v4494 = vld [vmem:[%s3343 + $0x78] sm:$0xe]
      %v4495 = vld [vmem:[%s3343 + $0x84] sm:$0xe]
      %v4496 = vld [vmem:[%s3343 + $0x90] sm:$0xe]
      %v4497 = vld [vmem:[%s3343 + $0x9c] sm:$0xe]
      %v4498 = vld [vmem:[%s3343 + $0xa8] sm:$0xe]
      %v4499 = vld [vmem:[%s3343 + $0xb4] sm:$0xe]
      %v4548 = vrot.slane %v4484, 5
      %v4549 = vrot.slane %v4548, 4
      %v4550 = vrot.slane %v3731, 5
      %v4551 = vsel %vm1269, %v4549, %v4550
      %v4552 = vrot.slane %v4550, 4
      %v4553 = vrot.slane %v3732, 5
      %v4554 = vsel %vm1269, %v4552, %v4553
      %v4555 = vrot.slane %v4485, 5
      %v4556 = vrot.slane %v4555, 4
      %v4557 = vrot.slane %v3734, 5
      %v4558 = vsel %vm1269, %v4556, %v4557
      %v4559 = vrot.slane %v4557, 4
      %v4560 = vrot.slane %v3735, 5
      %v4561 = vsel %vm1269, %v4559, %v4560
      %v4562 = vrot.slane %v4486, 5
      %v4563 = vrot.slane %v4562, 4
      %v4564 = vrot.slane %v3737, 5
      %v4565 = vsel %vm1269, %v4563, %v4564
      %v4566 = vrot.slane %v4564, 4
      %v4567 = vrot.slane %v3738, 5
      %v4568 = vsel %vm1269, %v4566, %v4567
      %v4569 = vrot.slane %v4487, 5
      %v4570 = vrot.slane %v4569, 4
      %v4571 = vrot.slane %v3740, 5
      %v4572 = vsel %vm1269, %v4570, %v4571
      %v4573 = vrot.slane %v4571, 4
      %v4574 = vrot.slane %v3741, 5
      %v4575 = vsel %vm1269, %v4573, %v4574
      %v4576 = vrot.slane %v4488, 5
      %v4577 = vrot.slane %v4576, 4
      %v4578 = vrot.slane %v3743, 5
      %v4579 = vsel %vm1269, %v4577, %v4578
      %v4580 = vrot.slane %v4578, 4
      %v4581 = vrot.slane %v3744, 5
      %v4582 = vsel %vm1269, %v4580, %v4581
      %v4583 = vrot.slane %v4489, 5
      %v4584 = vrot.slane %v4583, 4
      %v4585 = vrot.slane %v3746, 5
      %v4586 = vsel %vm1269, %v4584, %v4585
      %v4587 = vrot.slane %v4585, 4
      %v4588 = vrot.slane %v3747, 5
      %v4589 = vsel %vm1269, %v4587, %v4588
      %v4590 = vrot.slane %v4490, 5
      %v4591 = vrot.slane %v4590, 4
      %v4592 = vrot.slane %v3749, 5
      %v4593 = vsel %vm1269, %v4591, %v4592
      %v4594 = vrot.slane %v4592, 4
      %v4595 = vrot.slane %v3750, 5
      %v4596 = vsel %vm1269, %v4594, %v4595
      %v4597 = vrot.slane %v4491, 5
      %v4598 = vrot.slane %v4597, 4
      %v4599 = vrot.slane %v3752, 5
      %v4600 = vsel %vm1269, %v4598, %v4599
      %v4601 = vrot.slane %v4599, 4
      %v4602 = vrot.slane %v3753, 5
      %v4603 = vsel %vm1269, %v4601, %v4602
      %v4604 = vrot.slane %v4492, 5
      %v4605 = vrot.slane %v4604, 4
      %v4606 = vrot.slane %v3755, 5
      %v4607 = vsel %vm1269, %v4605, %v4606
      %v4608 = vrot.slane %v4606, 4
      %v4609 = vrot.slane %v3756, 5
      %v4610 = vsel %vm1269, %v4608, %v4609
      %v4611 = vrot.slane %v4493, 5
      %v4612 = vrot.slane %v4611, 4
      %v4613 = vrot.slane %v3758, 5
      %v4614 = vsel %vm1269, %v4612, %v4613
      %v4615 = vrot.slane %v4613, 4
      %v4616 = vrot.slane %v3759, 5
      %v4617 = vsel %vm1269, %v4615, %v4616
      %v4618 = vrot.slane %v4494, 5
      %v4619 = vrot.slane %v4618, 4
      %v4620 = vrot.slane %v3761, 5
      %v4621 = vsel %vm1269, %v4619, %v4620
      %v4622 = vrot.slane %v4620, 4
      %v4623 = vrot.slane %v3762, 5
      %v4624 = vsel %vm1269, %v4622, %v4623
      %v4625 = vrot.slane %v4495, 5
      %v4626 = vrot.slane %v4625, 4
      %v4627 = vrot.slane %v3764, 5
      %v4628 = vsel %vm1269, %v4626, %v4627
      %v4629 = vrot.slane %v4627, 4
      %v4630 = vrot.slane %v3765, 5
      %v4631 = vsel %vm1269, %v4629, %v4630
      %v4632 = vrot.slane %v4496, 5
      %v4633 = vrot.slane %v4632, 4
      %v4634 = vrot.slane %v3767, 5
      %v4635 = vsel %vm1269, %v4633, %v4634
      %v4636 = vrot.slane %v4634, 4
      %v4637 = vrot.slane %v3768, 5
      %v4638 = vsel %vm1269, %v4636, %v4637
      %v4639 = vrot.slane %v4497, 5
      %v4640 = vrot.slane %v4639, 4
      %v4641 = vrot.slane %v3770, 5
      %v4642 = vsel %vm1269, %v4640, %v4641
      %v4643 = vrot.slane %v4641, 4
      %v4644 = vrot.slane %v3771, 5
      %v4645 = vsel %vm1269, %v4643, %v4644
      %v4646 = vrot.slane %v4498, 5
      %v4647 = vrot.slane %v4646, 4
      %v4648 = vrot.slane %v3773, 5
      %v4649 = vsel %vm1269, %v4647, %v4648
      %v4650 = vrot.slane %v4648, 4
      %v4651 = vrot.slane %v3774, 5
      %v4652 = vsel %vm1269, %v4650, %v4651
      %v4653 = vrot.slane %v4499, 5
      %v4654 = vrot.slane %v4653, 4
      %v4655 = vrot.slane %v3776, 5
      %v4656 = vsel %vm1269, %v4654, %v4655
      %v4657 = vrot.slane %v4655, 4
      %v4658 = vrot.slane %v3777, 5
      %v4659 = vsel %vm1269, %v4657, %v4658
      %s4660 = scalar_lea.vmem %s1, 256
      %v4661 = vld [vmem:[%s4660] sm:$0xf]
      %v4662 = vld [vmem:[%s4660 + $0x4] sm:$0xf]
      %v4663 = vld [vmem:[%s4660 + $0x8] sm:$0xf]
      %v4664 = vld [vmem:[%s4660 + $0xc] sm:$0xf]
      %v4665 = vld [vmem:[%s4660 + $0x10] sm:$0xf]
      %v4666 = vld [vmem:[%s4660 + $0x14] sm:$0xf]
      %v4667 = vld [vmem:[%s4660 + $0x18] sm:$0xf]
      %v4668 = vld [vmem:[%s4660 + $0x1c] sm:$0xf]
      %v4669 = vunpack.c.l.b16 %v4551
      %v4670 = vunpack.c.l.b16 %v4554
      %v4671 = vunpack.c.l.b16 %v4558
      %v4672 = vunpack.c.l.b16 %v4561
      %v4673 = vunpack.c.l.b16 %v4565
      %v4674 = vunpack.c.l.b16 %v4568
      %v4675 = vunpack.c.l.b16 %v4572
      %v4676 = vunpack.c.l.b16 %v4575
      %v4677 = vunpack.c.l.b16 %v4579
      %v4678 = vunpack.c.l.b16 %v4582
      %v4679 = vunpack.c.l.b16 %v4586
      %v4680 = vunpack.c.l.b16 %v4589
      %v4681 = vunpack.c.l.b16 %v4593
      %v4682 = vunpack.c.l.b16 %v4596
      %v4683 = vunpack.c.l.b16 %v4600
      %v4684 = vunpack.c.l.b16 %v4603
      %v4685 = vunpack.c.l.b16 %v4607
      %v4686 = vunpack.c.l.b16 %v4610
      %v4687 = vunpack.c.l.b16 %v4614
      %v4688 = vunpack.c.l.b16 %v4617
      %v4689 = vunpack.c.l.b16 %v4621
      %v4690 = vunpack.c.l.b16 %v4624
      %v4691 = vunpack.c.l.b16 %v4628
      %v4692 = vunpack.c.l.b16 %v4631
      %v4693 = vunpack.c.l.b16 %v4635
      %v4694 = vunpack.c.l.b16 %v4638
      %v4695 = vunpack.c.l.b16 %v4642
      %v4696 = vunpack.c.l.b16 %v4645
      %v4697 = vunpack.c.l.b16 %v4649
      %v4698 = vunpack.c.l.b16 %v4652
      %v4699 = vunpack.c.l.b16 %v4656
      %v4700 = vunpack.c.l.b16 %v4659
      %v4701 = vpack.c.b16 %v4670, %v4669
      %v4702 = vpack.c.b16 %v4672, %v4671
      %v4703 = vpack.c.b16 %v4674, %v4673
      %v4704 = vpack.c.b16 %v4676, %v4675
      %v4705 = vpack.c.b16 %v4678, %v4677
      %v4706 = vpack.c.b16 %v4680, %v4679
      %v4707 = vpack.c.b16 %v4682, %v4681
      %v4708 = vpack.c.b16 %v4684, %v4683
      %v4709 = vpack.c.b16 %v4686, %v4685
      %v4710 = vpack.c.b16 %v4688, %v4687
      %v4711 = vpack.c.b16 %v4690, %v4689
      %v4712 = vpack.c.b16 %v4692, %v4691
      %v4713 = vpack.c.b16 %v4694, %v4693
      %v4714 = vpack.c.b16 %v4696, %v4695
      %v4715 = vpack.c.b16 %v4698, %v4697
      %v4716 = vpack.c.b16 %v4700, %v4699
      %v4725 = vunpack.c.l.b16 %v4661
      %v4726 = vunpack.c.l.b16 %v4662
      %v4727 = vunpack.c.l.b16 %v4663
      %v4728 = vunpack.c.l.b16 %v4664
      %v4729 = vunpack.c.l.b16 %v4665
      %v4730 = vunpack.c.l.b16 %v4666
      %v4731 = vunpack.c.l.b16 %v4667
      %v4732 = vunpack.c.l.b16 %v4668
      %v4733 = vpack.c.b16 %v4726, %v4725
      %v4734 = vpack.c.b16 %v4728, %v4727
      %v4735 = vpack.c.b16 %v4730, %v4729
      %v4736 = vpack.c.b16 %v4732, %v4731
      %v4742 = vsel %vm696, %v4701, 0
      %v4745 = vsel %vm696, %v4702, 0
      %v4748 = vsel %vm696, %v4703, 0
      %v4751 = vsel %vm696, %v4704, 0
      %v4754 = vsel %vm696, %v4705, 0
      %v4757 = vsel %vm696, %v4706, 0
      %v4760 = vsel %vm696, %v4707, 0
      %v4763 = vsel %vm696, %v4708, 0
      %v4766 = vsel %vm696, %v4709, 0
      %v4769 = vsel %vm696, %v4710, 0
      %v4772 = vsel %vm696, %v4711, 0
      %v4775 = vsel %vm696, %v4712, 0
      %v4778 = vsel %vm696, %v4713, 0
      %v4781 = vsel %vm696, %v4714, 0
      %v4784 = vsel %vm696, %v4715, 0
      %v4787 = vsel %vm696, %v4716, 0
      %4789 = vmatprep.subr.bf16.mxu0 0
      %4790 = vmatpush1.bf16.msra.mxu0 0
      %4791 = vmatprep.subr.bf16.mxu0 0
      %4792 = vmatpush1.bf16.msra.mxu0 0
      %4793 = vmatprep.subr.bf16.mxu0 0
      %4794 = vmatpush1.bf16.msra.mxu0 0
      %4795 = vmatprep.subr.bf16.mxu0 0
      %4796 = vmatpush1.bf16.msra.mxu0 0
      %4797 = vmatprep.subr.bf16.mxu0 0
      %4798 = vmatpush1.bf16.msra.mxu0 %v4736
      %4799 = vmatprep.subr.bf16.mxu0 0
      %4800 = vmatpush1.bf16.msra.mxu0 %v4735
      %4801 = vmatprep.subr.bf16.mxu0 0
      %4802 = vmatpush1.bf16.msra.mxu0 %v4734
      %4803 = vmatprep.subr.bf16.mxu0 0
      %4804 = vmatpush1.bf16.msra.mxu0 %v4733
      %4805 = vmatprep.subr.bf16.mxu0 0
      %4806 = vmatpush2.bf16.msra.mxu0 0
      %4807 = vmatprep.subr.bf16.mxu0 0
      %4808 = vmatpush2.bf16.msra.mxu0 0
      %4809 = vmatprep.subr.bf16.mxu0 0
      %4810 = vmatpush2.bf16.msra.mxu0 0
      %4811 = vmatprep.subr.bf16.mxu0 0
      %4812 = vmatpush2.bf16.msra.mxu0 0
      %4813 = vmatprep.subr.bf16.mxu0 0
      %4814 = vmatpush2.bf16.msra.mxu0 0
      %4815 = vmatprep.subr.bf16.mxu0 0
      %4816 = vmatpush2.bf16.msra.mxu0 0
      %4817 = vmatprep.subr.bf16.mxu0 0
      %4818 = vmatpush2.bf16.msra.mxu0 0
      %4819 = vmatprep.subr.bf16.mxu0 0
      %4820 = vmatpush2.bf16.msra.mxu0 0
      %4821 = vmatprep.mubr.bf16.mxu0 0
      %4822 = vmatmul.mubr.bf16.gmra.mxu0 %v4742
      %v4823 = vpop.f32.mrf.mxu0
      %v4824 = vadd.f32 0.0, %v4823
      %v4825 = vpop.f32.mrf.mxu0
      %v4826 = vpop.f32.mrf.mxu0
      %v4827 = vadd.f32 0.0, %v4826
      %v4828 = vpop.f32.mrf.mxu0
      %4829 = vmatprep.mubr.bf16.mxu0 0
      %4830 = vmatmul.mubr.bf16.gmra.mxu0 %v4745
      %v4831 = vpop.f32.mrf.mxu0
      %v4832 = vadd.f32 0.0, %v4831
      %v4833 = vpop.f32.mrf.mxu0
      %v4834 = vpop.f32.mrf.mxu0
      %v4835 = vadd.f32 0.0, %v4834
      %v4836 = vpop.f32.mrf.mxu0
      %4837 = vmatprep.mubr.bf16.mxu0 0
      %4838 = vmatmul.mubr.bf16.gmra.mxu0 %v4748
      %v4839 = vpop.f32.mrf.mxu0
      %v4840 = vadd.f32 0.0, %v4839
      %v4841 = vpop.f32.mrf.mxu0
      %v4842 = vpop.f32.mrf.mxu0
      %v4843 = vadd.f32 0.0, %v4842
      %v4844 = vpop.f32.mrf.mxu0
      %4845 = vmatprep.mubr.bf16.mxu0 0
      %4846 = vmatmul.mubr.bf16.gmra.mxu0 %v4751
      %v4847 = vpop.f32.mrf.mxu0
      %v4848 = vadd.f32 0.0, %v4847
      %v4849 = vpop.f32.mrf.mxu0
      %v4850 = vpop.f32.mrf.mxu0
      %v4851 = vadd.f32 0.0, %v4850
      %v4852 = vpop.f32.mrf.mxu0
      %4853 = vmatprep.mubr.bf16.mxu0 0
      %4854 = vmatmul.mubr.bf16.gmra.mxu0 %v4754
      %v4855 = vpop.f32.mrf.mxu0
      %v4856 = vadd.f32 0.0, %v4855
      %v4857 = vpop.f32.mrf.mxu0
      %v4858 = vpop.f32.mrf.mxu0
      %v4859 = vadd.f32 0.0, %v4858
      %v4860 = vpop.f32.mrf.mxu0
      %4861 = vmatprep.mubr.bf16.mxu0 0
      %4862 = vmatmul.mubr.bf16.gmra.mxu0 %v4757
      %v4863 = vpop.f32.mrf.mxu0
      %v4864 = vadd.f32 0.0, %v4863
      %v4865 = vpop.f32.mrf.mxu0
      %v4866 = vpop.f32.mrf.mxu0
      %v4867 = vadd.f32 0.0, %v4866
      %v4868 = vpop.f32.mrf.mxu0
      %4869 = vmatprep.mubr.bf16.mxu0 0
      %4870 = vmatmul.mubr.bf16.gmra.mxu0 %v4760
      %v4871 = vpop.f32.mrf.mxu0
      %v4872 = vadd.f32 0.0, %v4871
      %v4873 = vpop.f32.mrf.mxu0
      %v4874 = vpop.f32.mrf.mxu0
      %v4875 = vadd.f32 0.0, %v4874
      %v4876 = vpop.f32.mrf.mxu0
      %4877 = vmatprep.mubr.bf16.mxu0 0
      %4878 = vmatmul.mubr.bf16.gmra.mxu0 %v4763
      %v4879 = vpop.f32.mrf.mxu0
      %v4880 = vadd.f32 0.0, %v4879
      %v4881 = vpop.f32.mrf.mxu0
      %v4882 = vpop.f32.mrf.mxu0
      %v4883 = vadd.f32 0.0, %v4882
      %v4884 = vpop.f32.mrf.mxu0
      %4885 = vmatprep.mubr.bf16.mxu0 0
      %4886 = vmatmul.mubr.bf16.gmra.mxu0 %v4766
      %v4887 = vpop.f32.mrf.mxu0
      %v4888 = vadd.f32 0.0, %v4887
      %v4889 = vpop.f32.mrf.mxu0
      %v4890 = vpop.f32.mrf.mxu0
      %v4891 = vadd.f32 0.0, %v4890
      %v4892 = vpop.f32.mrf.mxu0
      %4893 = vmatprep.mubr.bf16.mxu0 0
      %4894 = vmatmul.mubr.bf16.gmra.mxu0 %v4769
      %v4895 = vpop.f32.mrf.mxu0
      %v4896 = vadd.f32 0.0, %v4895
      %v4897 = vpop.f32.mrf.mxu0
      %v4898 = vpop.f32.mrf.mxu0
      %v4899 = vadd.f32 0.0, %v4898
      %v4900 = vpop.f32.mrf.mxu0
      %4901 = vmatprep.mubr.bf16.mxu0 0
      %4902 = vmatmul.mubr.bf16.gmra.mxu0 %v4772
      %v4903 = vpop.f32.mrf.mxu0
      %v4904 = vadd.f32 0.0, %v4903
      %v4905 = vpop.f32.mrf.mxu0
      %v4906 = vpop.f32.mrf.mxu0
      %v4907 = vadd.f32 0.0, %v4906
      %v4908 = vpop.f32.mrf.mxu0
      %4909 = vmatprep.mubr.bf16.mxu0 0
      %4910 = vmatmul.mubr.bf16.gmra.mxu0 %v4775
      %v4911 = vpop.f32.mrf.mxu0
      %v4912 = vadd.f32 0.0, %v4911
      %v4913 = vpop.f32.mrf.mxu0
      %v4914 = vpop.f32.mrf.mxu0
      %v4915 = vadd.f32 0.0, %v4914
      %v4916 = vpop.f32.mrf.mxu0
      %4917 = vmatprep.mubr.bf16.mxu0 0
      %4918 = vmatmul.mubr.bf16.gmra.mxu0 %v4778
      %v4919 = vpop.f32.mrf.mxu0
      %v4920 = vadd.f32 0.0, %v4919
      %v4921 = vpop.f32.mrf.mxu0
      %v4922 = vpop.f32.mrf.mxu0
      %v4923 = vadd.f32 0.0, %v4922
      %v4924 = vpop.f32.mrf.mxu0
      %4925 = vmatprep.mubr.bf16.mxu0 0
      %4926 = vmatmul.mubr.bf16.gmra.mxu0 %v4781
      %v4927 = vpop.f32.mrf.mxu0
      %v4928 = vadd.f32 0.0, %v4927
      %v4929 = vpop.f32.mrf.mxu0
      %v4930 = vpop.f32.mrf.mxu0
      %v4931 = vadd.f32 0.0, %v4930
      %v4932 = vpop.f32.mrf.mxu0
      %4933 = vmatprep.mubr.bf16.mxu0 0
      %4934 = vmatmul.mubr.bf16.gmra.mxu0 %v4784
      %v4935 = vpop.f32.mrf.mxu0
      %v4936 = vadd.f32 0.0, %v4935
      %v4937 = vpop.f32.mrf.mxu0
      %v4938 = vpop.f32.mrf.mxu0
      %v4939 = vadd.f32 0.0, %v4938
      %v4940 = vpop.f32.mrf.mxu0
      %4941 = vmatprep.mubr.bf16.mxu0 0
      %4942 = vmatmul.mubr.bf16.gmra.mxu0 %v4787
      %v4943 = vpop.f32.mrf.mxu0
      %v4944 = vadd.f32 0.0, %v4943
      %v4945 = vpop.f32.mrf.mxu0
      %v4946 = vpop.f32.mrf.mxu0
      %v4947 = vadd.f32 0.0, %v4946
      %v4948 = vpop.f32.mrf.mxu0
      %4949 = vdwg.mxu0
      %v4950 = vadd.f32 %v4452, %v4824
      %v4951 = vadd.f32 %v4453, %v4827
      %v4952 = vadd.f32 %v4454, %v4832
      %v4953 = vadd.f32 %v4455, %v4835
      %v4954 = vadd.f32 %v4456, %v4840
      %v4955 = vadd.f32 %v4457, %v4843
      %v4956 = vadd.f32 %v4458, %v4848
      %v4957 = vadd.f32 %v4459, %v4851
      %v4958 = vadd.f32 %v4460, %v4856
      %v4959 = vadd.f32 %v4461, %v4859
      %v4960 = vadd.f32 %v4462, %v4864
      %v4961 = vadd.f32 %v4463, %v4867
      %v4962 = vadd.f32 %v4464, %v4872
      %v4963 = vadd.f32 %v4465, %v4875
      %v4964 = vadd.f32 %v4466, %v4880
      %v4965 = vadd.f32 %v4467, %v4883
      %v4966 = vadd.f32 %v4468, %v4888
      %v4967 = vadd.f32 %v4469, %v4891
      %v4968 = vadd.f32 %v4470, %v4896
      %v4969 = vadd.f32 %v4471, %v4899
      %v4970 = vadd.f32 %v4472, %v4904
      %v4971 = vadd.f32 %v4473, %v4907
      %v4972 = vadd.f32 %v4474, %v4912
      %v4973 = vadd.f32 %v4475, %v4915
      %v4974 = vadd.f32 %v4476, %v4920
      %v4975 = vadd.f32 %v4477, %v4923
      %v4976 = vadd.f32 %v4478, %v4928
      %v4977 = vadd.f32 %v4479, %v4931
      %v4978 = vadd.f32 %v4480, %v4936
      %v4979 = vadd.f32 %v4481, %v4939
      %v4980 = vadd.f32 %v4482, %v4944
      %v4981 = vadd.f32 %v4483, %v4947
      %v4982 = vld [vmem:[%s2] sm:$0x1]
      %v4984 = vlaneseq
      %v4985 = vshrl.u32 %v4984, 7
      %v4986 = vsub.s32 0, %v4985
      %v4987 = vrot.slane %v4982, %v4986
      %v4989 = vadd.f32 %v4950, %v4987
      %v4990 = vadd.f32 %v4951, %v4987
      %v4991 = vadd.f32 %v4952, %v4987
      %v4992 = vadd.f32 %v4953, %v4987
      %v4993 = vadd.f32 %v4954, %v4987
      %v4994 = vadd.f32 %v4955, %v4987
      %v4995 = vadd.f32 %v4956, %v4987
      %v4996 = vadd.f32 %v4957, %v4987
      %v4997 = vadd.f32 %v4958, %v4987
      %v4998 = vadd.f32 %v4959, %v4987
      %v4999 = vadd.f32 %v4960, %v4987
      %v5000 = vadd.f32 %v4961, %v4987
      %v5001 = vadd.f32 %v4962, %v4987
      %v5002 = vadd.f32 %v4963, %v4987
      %v5003 = vadd.f32 %v4964, %v4987
      %v5004 = vadd.f32 %v4965, %v4987
      %v5005 = vadd.f32 %v4966, %v4987
      %v5006 = vadd.f32 %v4967, %v4987
      %v5007 = vadd.f32 %v4968, %v4987
      %v5008 = vadd.f32 %v4969, %v4987
      %v5009 = vadd.f32 %v4970, %v4987
      %v5010 = vadd.f32 %v4971, %v4987
      %v5011 = vadd.f32 %v4972, %v4987
      %v5012 = vadd.f32 %v4973, %v4987
      %v5013 = vadd.f32 %v4974, %v4987
      %v5014 = vadd.f32 %v4975, %v4987
      %v5015 = vadd.f32 %v4976, %v4987
      %v5016 = vadd.f32 %v4977, %v4987
      %v5017 = vadd.f32 %v4978, %v4987
      %v5018 = vadd.f32 %v4979, %v4987
      %v5019 = vadd.f32 %v4980, %v4987
      %v5020 = vadd.f32 %v4981, %v4987
      %vm5021 = vcmask 261120
      %5022 = vst.msk [vmem:[%s170] sm:$0xff] %vm5021, %v4989
      %5023 = vst.msk [vmem:[%s170 + $0x8] sm:$0xff] %vm5021, %v4990
      %5024 = vst.msk [vmem:[%s170 + $0x10] sm:$0xff] %vm5021, %v4991
      %5025 = vst.msk [vmem:[%s170 + $0x18] sm:$0xff] %vm5021, %v4992
      %5026 = vst.msk [vmem:[%s170 + $0x20] sm:$0xff] %vm5021, %v4993
      %5027 = vst.msk [vmem:[%s170 + $0x28] sm:$0xff] %vm5021, %v4994
      %5028 = vst.msk [vmem:[%s170 + $0x30] sm:$0xff] %vm5021, %v4995
      %5029 = vst.msk [vmem:[%s170 + $0x38] sm:$0xff] %vm5021, %v4996
      %5030 = vst.msk [vmem:[%s170 + $0x40] sm:$0xff] %vm5021, %v4997
      %5031 = vst.msk [vmem:[%s170 + $0x48] sm:$0xff] %vm5021, %v4998
      %5032 = vst.msk [vmem:[%s170 + $0x50] sm:$0xff] %vm5021, %v4999
      %5033 = vst.msk [vmem:[%s170 + $0x58] sm:$0xff] %vm5021, %v5000
      %5034 = vst.msk [vmem:[%s170 + $0x60] sm:$0xff] %vm5021, %v5001
      %5035 = vst.msk [vmem:[%s170 + $0x68] sm:$0xff] %vm5021, %v5002
      %5036 = vst.msk [vmem:[%s170 + $0x70] sm:$0xff] %vm5021, %v5003
      %5037 = vst.msk [vmem:[%s170 + $0x78] sm:$0xff] %vm5021, %v5004
      %5038 = vst.msk [vmem:[%s170 + $0x80] sm:$0xff] %vm5021, %v5005
      %5039 = vst.msk [vmem:[%s170 + $0x88] sm:$0xff] %vm5021, %v5006
      %5040 = vst.msk [vmem:[%s170 + $0x90] sm:$0xff] %vm5021, %v5007
      %5041 = vst.msk [vmem:[%s170 + $0x98] sm:$0xff] %vm5021, %v5008
      %5042 = vst.msk [vmem:[%s170 + $0xa0] sm:$0xff] %vm5021, %v5009
      %5043 = vst.msk [vmem:[%s170 + $0xa8] sm:$0xff] %vm5021, %v5010
      %5044 = vst.msk [vmem:[%s170 + $0xb0] sm:$0xff] %vm5021, %v5011
      %5045 = vst.msk [vmem:[%s170 + $0xb8] sm:$0xff] %vm5021, %v5012
      %5046 = vst.msk [vmem:[%s170 + $0xc0] sm:$0xff] %vm5021, %v5013
      %5047 = vst.msk [vmem:[%s170 + $0xc8] sm:$0xff] %vm5021, %v5014
      %5048 = vst.msk [vmem:[%s170 + $0xd0] sm:$0xff] %vm5021, %v5015
      %5049 = vst.msk [vmem:[%s170 + $0xd8] sm:$0xff] %vm5021, %v5016
      %5050 = vst.msk [vmem:[%s170 + $0xe0] sm:$0xff] %vm5021, %v5017
      %5051 = vst.msk [vmem:[%s170 + $0xe8] sm:$0xff] %vm5021, %v5018
      %5052 = vst.msk [vmem:[%s170 + $0xf0] sm:$0xff] %vm5021, %v5019
      %5053 = vst.msk [vmem:[%s170 + $0xf8] sm:$0xff] %vm5021, %v5020
      %p5054 = scmp.lt.s32.totalorder %s14, 1
      %s5055 = scalar_select %p5054, %s14, 1
      %s5056 = smul.addr %s5055, 32
      %s5057 = smul.addr %s5056, 8
      %s5058 = scalar_lea.vmem %s3, %s5057
      // Predicated region
      $region33: #{tpu_custom_call.1} parent=31 // pred_check
        %p5059 = pneg %p100
      $region34: #{tpu_custom_call.1} parent=31 // pred_check_branch
        %5061 = sbr.rel (%p5059) target = $region36
      $region35: #{tpu_custom_call.1} parent=31 // pred_region
        _
      $region36: #{tpu_custom_call.1} parent=31 // pred_fallthru
        _
    $region32: #{tpu_custom_call.1} parent=5 // pred_fallthru
      _
    %p5062 = scmp.le.s32.totalorder 2, %s9
    // Predicated region
    $region37: #{tpu_custom_call.1} parent=5 // pred_check
      %p5063 = pneg %p5062
    $region38: #{tpu_custom_call.1} parent=5 // pred_check_branch
      %5065 = sbr.rel (%p5063) target = $region40
    $region39: #{tpu_custom_call.1} parent=5 // pred_region
      %s5066 = ssub.s32 %s9, 2
      // Predicated region
      $region41: #{tpu_custom_call.1} parent=39 // pred_check
        %p5067 = pneg %p106
      $region42: #{tpu_custom_call.1} parent=39 // pred_check_branch
        %5069 = sbr.rel (%p5067) target = $region44
      $region43: #{tpu_custom_call.1} parent=39 // pred_region
        %p5070 = scmp.lt.s32.totalorder %s15, 1
        %s5071 = scalar_select %p5070, %s15, 1
        %s5072 = smul.addr %s5071, 32
        %s5073 = smul.addr %s5072, 8
        %s5074 = scalar_lea.vmem %s3, %s5073
      $region44: #{tpu_custom_call.1} parent=39 // pred_fallthru
        _
    $region40: #{tpu_custom_call.1} parent=5 // pred_fallthru
      _
  $region6: #{tpu_custom_call.1} parent=0 // loop_footer
    %s13 = sadd.s32 1, %s9
  $region7: #{tpu_custom_call.1} parent=0 // loop_footer_branch
    %8 = sbr.rel target = $region3
  $region8: #{tpu_custom_call.1} parent=0 // loop_exit
    _

</llo_original>
